<compile_context>
chip_gen: v7x
topology: tpu7x:2x2x1
jax: 0.10.0
libtpu: 0.0.40
codegen_flags: <defaults>
</compile_context>

<pallas_src>
import functools

import numpy as np
import jax
import jax.numpy as jnp
from jax import lax
from jax.experimental import pallas as pl
from jax.experimental.pallas import tpu as pltpu

_EPS = 1e-5                      # PyTorch BatchNorm2d default eps
_VMEM_LIMIT = 32 * 1024 * 1024   # explicit scoped-VMEM budget (portable incl. v7x 64MiB)
_DECONV_TILE = 512               # pixels per deconv grid step (lane axis)
# Matmul operand dtype.  jnp.bfloat16 enables the MXU-native path (perf-review item for
# v5e/v6e/v7x); default float32 keeps the fp32 PyTorch forward semantics to ~1e-5.
_MM_DTYPE = jnp.float32


# ----------------------------- Pallas kernels ------------------------------

def _deconv_kernel(x_ref, w_ref, b_ref, o_ref):
    """ConvTranspose2d(k=2, s=2) as one lane-dense matmul.

    x: (Cin, tile_pixels), w: (4*Cout, Cin) [row = (kh,kw,co)], out: (4*Cout, tile)."""
    o_ref[...] = (
        jnp.dot(w_ref[...].astype(_MM_DTYPE), x_ref[...].astype(_MM_DTYPE),
                preferred_element_type=jnp.float32)
        + b_ref[...]
    )


def _conv_pass1_kernel(xe_ref, w_ref, mask_ref, y_ref, s1_ref, s2_ref, *, wp, npix):
    """Pass 1: 3x3 conv (s=1, p=1) on one flattened padded image + BN stat accumulation.

    xe_ref:   (Cin, Le)  padded-flattened image with an extra (Wp+1) halo on each end.
    w_ref:    (9, Cout, Cin)  per-tap weights.
    mask_ref: (1, L)  1.0 at interior (valid) pixel positions, 0.0 on the pad border.
    y_ref:    (Cout, L)  raw conv output for this image (border positions are garbage,
                         masked in pass 2).
    s1/s2:    (Cout, 1)  running per-channel sum / sum-of-squares over the whole batch
                         (same block every grid step -> resident accumulators)."""
    cout = w_ref.shape[1]
    acc = jnp.zeros((cout, npix), jnp.float32)
    # 9 taps = 9 lane-shifted windows of the same slab; no HBM im2col anywhere.
    for t in range(9):
        dh, dw = divmod(t, 3)
        off = dh * wp + dw
        xt = xe_ref[:, off:off + npix]                      # (Cin, L)
        acc = acc + jnp.dot(w_ref[t].astype(_MM_DTYPE), xt.astype(_MM_DTYPE),
                            preferred_element_type=jnp.float32)
    # NOTE: conv bias intentionally omitted — training-mode BN cancels it exactly.
    y_ref[...] = acc

    masked = acc * mask_ref[...]                            # zero out border garbage

    @pl.when(pl.program_id(0) == 0)
    def _init():
        s1_ref[...] = jnp.zeros_like(s1_ref)
        s2_ref[...] = jnp.zeros_like(s2_ref)

    s1_ref[...] += jnp.sum(masked, axis=1, keepdims=True)
    s2_ref[...] += jnp.sum(masked * acc, axis=1, keepdims=True)


def _bn_act_kernel(y_ref, scale_ref, shift_ref, mask_ref, o_ref, *, slope, leaky):
    """Pass 2: y*scale + shift, ReLU/LeakyReLU, then re-zero the pad border."""
    y = y_ref[...] * scale_ref[...] + shift_ref[...]
    if leaky:
        y = jnp.where(y >= 0.0, y, slope * y)
    else:
        y = jnp.maximum(y, 0.0)
    o_ref[...] = y * mask_ref[...]


# ------------------------------ Pallas wrappers -----------------------------

def _deconv_both(xa, xb, w_pt, b):
    """Apply ConvTranspose2d(Cin, Cout, 2, 2) to xa and xb (NCHW) in ONE pallas_call.

    Returns (N, 2*Cout, 2H, 2W) with channels ordered [deconv(xa), deconv(xb)],
    i.e. the channel concat is fused into the pixel-shuffle glue."""
    N, Cin, H0, W0 = xa.shape
    Cout = w_pt.shape[1]

    xs = jnp.concatenate([xa, xb], axis=0)                       # (2N, Cin, H0, W0)
    xs = xs.transpose(1, 0, 2, 3).reshape(Cin, 2 * N * H0 * W0)  # channels x pixels
    M = xs.shape[1]
    TM = _DECONV_TILE
    Mp = -(-M // TM) * TM                                        # pad pixels to tile
    xs = jnp.pad(xs, ((0, 0), (0, Mp - M)))

    wT = jnp.transpose(w_pt, (2, 3, 1, 0)).reshape(4 * Cout, Cin)  # row = (kh,kw,co)
    bT = jnp.tile(b, 4).reshape(4 * Cout, 1)

    y = pl.pallas_call(
        _deconv_kernel,
        out_shape=jax.ShapeDtypeStruct((4 * Cout, Mp), jnp.float32),
        grid=(Mp // TM,),
        in_specs=[
            pl.BlockSpec((Cin, TM), lambda i: (0, i)),
            pl.BlockSpec((4 * Cout, Cin), lambda i: (0, 0)),
            pl.BlockSpec((4 * Cout, 1), lambda i: (0, 0)),
        ],
        out_specs=pl.BlockSpec((4 * Cout, TM), lambda i: (0, i)),
        compiler_params=pltpu.CompilerParams(
            dimension_semantics=("parallel",),
            vmem_limit_bytes=_VMEM_LIMIT),
    )(xs, wT, bT)

    # pixel-shuffle + channel-concat glue: (kh,kw,co, src,n,h,w) -> (n, src*Cout+co, 2h+kh, 2w+kw)
    y = y[:, :M].reshape(2, 2, Cout, 2, N, H0, W0)
    y = y.transpose(4, 3, 2, 5, 0, 6, 1)
    return y.reshape(N, 2 * Cout, 2 * H0, 2 * W0)


def _interior_mask(H, W):
    """(1, Hp*Wp) float mask: 1 at interior pixels of the zero-padded grid."""
    Hp, Wp = H + 2, W + 2
    hh = (jnp.arange(Hp) >= 1) & (jnp.arange(Hp) <= H)
    ww = (jnp.arange(Wp) >= 1) & (jnp.arange(Wp) <= W)
    return (hh[:, None] & ww[None, :]).astype(jnp.float32).reshape(1, Hp * Wp)


def _conv3x3_bn_act(x, w_pt, gamma, beta, mask, dims, *, slope, leaky):
    """Conv2d(k=3,s=1,p=1) + BatchNorm2d(batch stats) + activation, two Pallas passes.

    x: (N, Cin, L) activations on the zero-padded Hp x Wp grid, row-major flattened,
       zero at all non-interior positions.  Returns (N, Cout, L) in the same layout."""
    H, W, Hp, Wp = dims
    N, Cin, L = x.shape
    assert L == Hp * Wp
    Cout = w_pt.shape[0]
    Le = L + 2 * (Wp + 1)

    xe = jnp.pad(x, ((0, 0), (0, 0), (Wp + 1, Wp + 1)))           # tap halo (zeros)
    w9 = jnp.transpose(w_pt, (2, 3, 0, 1)).reshape(9, Cout, Cin)  # [tap, co, ci]

    y, s1, s2 = pl.pallas_call(
        functools.partial(_conv_pass1_kernel, wp=Wp, npix=L),
        out_shape=(
            jax.ShapeDtypeStruct((N, Cout, L), jnp.float32),
            jax.ShapeDtypeStruct((Cout, 1), jnp.float32),
            jax.ShapeDtypeStruct((Cout, 1), jnp.float32),
        ),
        grid=(N,),
        in_specs=[
            pl.BlockSpec((None, Cin, Le), lambda n: (n, 0, 0)),
            pl.BlockSpec((9, Cout, Cin), lambda n: (0, 0, 0)),
            pl.BlockSpec((1, L), lambda n: (0, 0)),
        ],
        out_specs=(
            pl.BlockSpec((None, Cout, L), lambda n: (n, 0, 0)),
            pl.BlockSpec((Cout, 1), lambda n: (0, 0)),   # resident stat accumulators
            pl.BlockSpec((Cout, 1), lambda n: (0, 0)),
        ),
        compiler_params=pltpu.CompilerParams(
            dimension_semantics=("arbitrary",),          # stats accumulate across steps
            vmem_limit_bytes=_VMEM_LIMIT),
    )(xe, w9, mask)

    # Tiny per-channel BN finalisation (training-mode: biased batch variance).
    count = jnp.float32(N * H * W)
    mean = s1[:, 0] / count
    var = s2[:, 0] / count - jnp.square(mean)
    scale = gamma * lax.rsqrt(var + _EPS)
    shift = beta - mean * scale

    return pl.pallas_call(
        functools.partial(_bn_act_kernel, slope=slope, leaky=leaky),
        out_shape=jax.ShapeDtypeStruct((N, Cout, L), jnp.float32),
        grid=(N,),
        in_specs=[
            pl.BlockSpec((None, Cout, L), lambda n: (n, 0, 0)),
            pl.BlockSpec((Cout, 1), lambda n: (0, 0)),
            pl.BlockSpec((Cout, 1), lambda n: (0, 0)),
            pl.BlockSpec((1, L), lambda n: (0, 0)),
        ],
        out_specs=pl.BlockSpec((None, Cout, L), lambda n: (n, 0, 0)),
        compiler_params=pltpu.CompilerParams(
            dimension_semantics=("parallel",),
            vmem_limit_bytes=_VMEM_LIMIT),
    )(y, scale.reshape(Cout, 1), shift.reshape(Cout, 1), mask)


# ------------------------------ module forward ------------------------------

def _encoder_block_pallas(x, p, slope, mask, dims):
    """EncoderConvBlock with pool=False: n_layers x [conv3x3, BN, ReLU/LeakyReLU]."""
    n_layers = p["n_layers"]
    for layer in range(n_layers):
        w = p["base_w"] if layer == 0 else p["add_w"]
        leaky = (layer == n_layers - 1)          # last layer LeakyReLU, others ReLU
        x = _conv3x3_bn_act(x, w, p["bn_g"], p["bn_b"], mask, dims,
                            slope=slope, leaky=leaky)
    return x


def decoder_conv_block_forward(params, input1, input2, slope):
    x1 = input1.astype(jnp.float32)
    x2 = input2.astype(jnp.float32)
    N, Cin, H0, W0 = x1.shape

    # both deconvs in one matmul; torch.cat([input2, input1], dim=1) fused into glue
    h = _deconv_both(x2, x1, params["deconv_w"], params["deconv_b"])  # (N, 2Cin, 2H0, 2W0)

    H, W = 2 * H0, 2 * W0
    Hp, Wp = H + 2, W + 2
    L = Hp * Wp
    mask = _interior_mask(H, W)

    # move to the padded-flattened (N, C, Hp*Wp) layout used by the conv kernels
    x = jnp.pad(h, ((0, 0), (0, 0), (1, 1), (1, 1))).reshape(N, 2 * Cin, L)
    x = _encoder_block_pallas(x, params["conv1"], slope, mask, (H, W, Hp, Wp))
    x = _encoder_block_pallas(x, params["conv2"], slope, mask, (H, W, Hp, Wp))

    Cf = x.shape[1]
    return x.reshape(N, Cf, Hp, Wp)[:, :, 1:H + 1, 1:W + 1]          # NCHW output


# --------------------------- pure-JAX reference -----------------------------

def decoder_conv_block_reference(params, input1, input2, slope):
    x1 = input1.astype(jnp.float32)
    x2 = input2.astype(jnp.float32)

    def deconv(x):
        w, b = params["deconv_w"], params["deconv_b"]
        N, _, H0, W0 = x.shape
        Cout = w.shape[1]
        y = jnp.einsum("nchw,cokl->nohkwl", x, w, precision=lax.Precision.HIGHEST)
        return y.reshape(N, Cout, 2 * H0, 2 * W0) + b[None, :, None, None]

    def conv_bn_act(x, w, b, gamma, beta, leaky):
        y = lax.conv_general_dilated(
            x, w, window_strides=(1, 1), padding=((1, 1), (1, 1)),
            dimension_numbers=("NCHW", "OIHW", "NCHW"),
            precision=lax.Precision.HIGHEST) + b[None, :, None, None]
        mean = jnp.mean(y, axis=(0, 2, 3), keepdims=True)
        var = jnp.mean(jnp.square(y - mean), axis=(0, 2, 3), keepdims=True)
        y = (y - mean) * lax.rsqrt(var + _EPS)
        y = y * gamma[None, :, None, None] + beta[None, :, None, None]
        return jnp.where(y >= 0.0, y, slope * y) if leaky else jnp.maximum(y, 0.0)

    def enc(x, p):
        for layer in range(p["n_layers"]):
            w = p["base_w"] if layer == 0 else p["add_w"]
            b = p["base_b"] if layer == 0 else p["add_b"]
            x = conv_bn_act(x, w, b, p["bn_g"], p["bn_b"],
                            layer == p["n_layers"] - 1)
        return x

    h = jnp.concatenate([deconv(x2), deconv(x1)], axis=1)
    return enc(enc(h, params["conv1"]), params["conv2"])


# ------------------------------- parameters ---------------------------------

def init_params(key, kernel_size, in_dim, out_dim):
    """Deterministic synthetic parameters, shapes per the PyTorch __init__."""
    n_layers = int(kernel_size // 2)
    keys = iter(jax.random.split(key, 16))

    def normal(shape, scale=0.1):
        return scale * jax.random.normal(next(keys), shape, jnp.float32)

    def enc_block(cin, cout):
        return {
            "n_layers": n_layers,
            "base_w": normal((cout, cin, 3, 3)),   # Conv2d(cin, cout, 3, p=1)
            "base_b": normal((cout,)),
            "add_w": normal((cout, cout, 3, 3)),   # Conv2d(cout, cout, 3, p=1)
            "add_b": normal((cout,)),
            "bn_g": 1.0 + normal((cout,)),         # shared BatchNorm2d affine
            "bn_b": normal((cout,)),
        }

    return {
        "deconv_w": normal((in_dim, in_dim, 2, 2)),  # ConvTranspose2d(in, in, 2, 2)
        "deconv_b": normal((in_dim,)),
        "conv1": enc_block(in_dim * 2, in_dim),
        "conv2": enc_block(in_dim, out_dim),
    }


# ---------------------------------- main -------------------------------------

if __name__ == "__main__":
    KERNEL_SIZE = 4          # -> n_layers = 2 per EncoderConvBlock
    IN_DIM, OUT_DIM = 4, 4
    SLOPE = 0.1
    N, H0, W0 = 2, 8, 8      # deconv upsamples to 16 x 16

    key = jax.random.PRNGKey(0)
    k1, k2, kp = jax.random.split(key, 3)
    input1 = jax.random.normal(k1, (N, IN_DIM, H0, W0), jnp.float32)
    input2 = jax.random.normal(k2, (N, IN_DIM, H0, W0), jnp.float32)
    params = init_params(kp, KERNEL_SIZE, IN_DIM, OUT_DIM)

    fwd = jax.jit(lambda a, b: decoder_conv_block_forward(params, a, b, SLOPE))
    out = jax.block_until_ready(fwd(input1, input2))
    assert out.shape == (N, OUT_DIM, 2 * H0, 2 * W0), out.shape

    ref = jax.block_until_ready(
        decoder_conv_block_reference(params, input1, input2, SLOPE))
    np.testing.assert_allclose(np.asarray(out), np.asarray(ref), rtol=1e-3, atol=1e-3)

    print("KERNEL_OK")
</pallas_src>

<mosaic_0001>
module attributes {stable_mosaic.version = 11 : i64} {
  func.func @_deconv_kernel(%arg0: i32, %arg1: memref<4x512xf32, #tpu.memory_space<vmem>>, %arg2: memref<16x4xf32, #tpu.memory_space<vmem>>, %arg3: memref<16x1xf32, #tpu.memory_space<vmem>>, %arg4: memref<16x512xf32, #tpu.memory_space<vmem>>) attributes {dimension_semantics = [#tpu.dimension_semantics<parallel>], iteration_bounds = array<i64: 1>, scalar_prefetch = 0 : i64, scratch_operands = 0 : i64, tpu.core_type = #tpu.core_type<tc>, window_params = [{transform_indices = @transform_0, window_bounds = array<i64: 4, 512>}, {pipeline_mode = #tpu.pipeline_mode<synchronous>, transform_indices = @transform_1, window_bounds = array<i64: 16, 4>}, {pipeline_mode = #tpu.pipeline_mode<synchronous>, transform_indices = @transform_2, window_bounds = array<i64: 16, 1>}, {transform_indices = @transform_3, window_bounds = array<i64: 16, 512>}]} {
    %c0 = arith.constant 0 : index
    %c0_0 = arith.constant 0 : index
    %0 = vector.load %arg2[%c0, %c0_0] : memref<16x4xf32, #tpu.memory_space<vmem>>, vector<16x4xf32>
    %c0_1 = arith.constant 0 : index
    %c0_2 = arith.constant 0 : index
    %1 = vector.load %arg1[%c0_1, %c0_2] : memref<4x512xf32, #tpu.memory_space<vmem>>, vector<4x512xf32>
    %cst = arith.constant dense<0.000000e+00> : vector<16x512xf32>
    %2 = tpu.matmul %0, %1, %cst {dimension_numbers = #tpu.dot_dimension_numbers<[1], [0], [0], [1], [0, 0, 1, 1], [], []>} : vector<16x4xf32>, vector<4x512xf32>, vector<16x512xf32> -> vector<16x512xf32>
    %c0_3 = arith.constant 0 : index
    %c0_4 = arith.constant 0 : index
    %3 = vector.load %arg3[%c0_3, %c0_4] : memref<16x1xf32, #tpu.memory_space<vmem>>, vector<16x1xf32>
    %4 = vector.broadcast %3 : vector<16x1xf32> to vector<16x512xf32>
    %5 = arith.addf %2, %4 : vector<16x512xf32>
    %c0_5 = arith.constant 0 : index
    %c0_6 = arith.constant 0 : index
    %6 = vector.load %arg4[%c0_5, %c0_6] : memref<16x512xf32, #tpu.memory_space<vmem>>, vector<16x512xf32>
    tpu.vector_store %arg4[%c0_5, %c0_6], %5 {strides = array<i32>} : memref<16x512xf32, #tpu.memory_space<vmem>>, vector<16x512xf32>,
    return
  }
  func.func @transform_0(%arg0: i32) -> (i32, i32) {
    %c0_i32 = arith.constant 0 : i32
    %c0_i32_0 = arith.constant 0 : i32
    return %c0_i32, %arg0 : i32, i32
  }
  func.func @transform_1(%arg0: i32) -> (i32, i32) {
    %c0_i32 = arith.constant 0 : i32
    %c0_i32_0 = arith.constant 0 : i32
    %c0_i32_1 = arith.constant 0 : i32
    return %c0_i32, %c0_i32_0 : i32, i32
  }
  func.func @transform_2(%arg0: i32) -> (i32, i32) {
    %c0_i32 = arith.constant 0 : i32
    %c0_i32_0 = arith.constant 0 : i32
    %c0_i32_1 = arith.constant 0 : i32
    return %c0_i32, %c0_i32_0 : i32, i32
  }
  func.func @transform_3(%arg0: i32) -> (i32, i32) {
    %c0_i32 = arith.constant 0 : i32
    %c0_i32_0 = arith.constant 0 : i32
    return %c0_i32, %arg0 : i32, i32
  }
}

module attributes {stable_mosaic.version = 11 : i64} {
  func.func @_conv_pass1_kernel(%arg0: i32, %arg1: memref<1x8x362xf32, #tpu.memory_space<vmem>>, %arg2: memref<9x4x8xf32, #tpu.memory_space<vmem>>, %arg3: memref<1x324xf32, #tpu.memory_space<vmem>>, %arg4: memref<1x4x324xf32, #tpu.memory_space<vmem>>, %arg5: memref<4x1xf32, #tpu.memory_space<vmem>>, %arg6: memref<4x1xf32, #tpu.memory_space<vmem>>) attributes {dimension_semantics = [#tpu.dimension_semantics<arbitrary>], iteration_bounds = array<i64: 2>, scalar_prefetch = 0 : i64, scratch_operands = 0 : i64, tpu.core_type = #tpu.core_type<tc>, window_params = [{transform_indices = @transform_0, window_bounds = array<i64: 1, 8, 362>}, {pipeline_mode = #tpu.pipeline_mode<synchronous>, transform_indices = @transform_1, window_bounds = array<i64: 9, 4, 8>}, {pipeline_mode = #tpu.pipeline_mode<synchronous>, transform_indices = @transform_2, window_bounds = array<i64: 1, 324>}, {transform_indices = @transform_3, window_bounds = array<i64: 1, 4, 324>}, {pipeline_mode = #tpu.pipeline_mode<synchronous>, transform_indices = @transform_4, window_bounds = array<i64: 4, 1>}, {pipeline_mode = #tpu.pipeline_mode<synchronous>, transform_indices = @transform_5, window_bounds = array<i64: 4, 1>}]} {
    %cst = arith.constant 0.000000e+00 : f32
    %0 = vector.broadcast %cst : f32 to vector<4x324xf32>
    %c0 = arith.constant 0 : index
    %c0_0 = arith.constant 0 : index
    %c0_1 = arith.constant 0 : index
    %1 = vector.load %arg1[%c0, %c0_0, %c0_1] : memref<1x8x362xf32, #tpu.memory_space<vmem>>, vector<1x8x324xf32>
    %2 = vector.shape_cast %1 : vector<1x8x324xf32> to vector<8x324xf32>
    %c0_2 = arith.constant 0 : index
    %c0_3 = arith.constant 0 : index
    %c0_4 = arith.constant 0 : index
    %3 = vector.load %arg2[%c0_2, %c0_3, %c0_4] : memref<9x4x8xf32, #tpu.memory_space<vmem>>, vector<1x4x8xf32>
    %4 = vector.shape_cast %3 : vector<1x4x8xf32> to vector<4x8xf32>
    %cst_5 = arith.constant dense<0.000000e+00> : vector<4x324xf32>
    %5 = tpu.matmul %4, %2, %cst_5 {dimension_numbers = #tpu.dot_dimension_numbers<[1], [0], [0], [1], [0, 0, 1, 1], [], []>} : vector<4x8xf32>, vector<8x324xf32>, vector<4x324xf32> -> vector<4x324xf32>
    %6 = arith.addf %0, %5 : vector<4x324xf32>
    %c0_6 = arith.constant 0 : index
    %c0_7 = arith.constant 0 : index
    %c1 = arith.constant 1 : index
    %7 = vector.load %arg1[%c0_6, %c0_7, %c1] : memref<1x8x362xf32, #tpu.memory_space<vmem>>, vector<1x8x324xf32>
    %8 = vector.shape_cast %7 : vector<1x8x324xf32> to vector<8x324xf32>
    %c1_8 = arith.constant 1 : index
    %c0_9 = arith.constant 0 : index
    %c0_10 = arith.constant 0 : index
    %9 = vector.load %arg2[%c1_8, %c0_9, %c0_10] : memref<9x4x8xf32, #tpu.memory_space<vmem>>, vector<1x4x8xf32>
    %10 = vector.shape_cast %9 : vector<1x4x8xf32> to vector<4x8xf32>
    %cst_11 = arith.constant dense<0.000000e+00> : vector<4x324xf32>
    %11 = tpu.matmul %10, %8, %cst_11 {dimension_numbers = #tpu.dot_dimension_numbers<[1], [0], [0], [1], [0, 0, 1, 1], [], []>} : vector<4x8xf32>, vector<8x324xf32>, vector<4x324xf32> -> vector<4x324xf32>
    %12 = arith.addf %6, %11 : vector<4x324xf32>
    %c0_12 = arith.constant 0 : index
    %c0_13 = arith.constant 0 : index
    %c2 = arith.constant 2 : index
    %13 = vector.load %arg1[%c0_12, %c0_13, %c2] : memref<1x8x362xf32, #tpu.memory_space<vmem>>, vector<1x8x324xf32>
    %14 = vector.shape_cast %13 : vector<1x8x324xf32> to vector<8x324xf32>
    %c2_14 = arith.constant 2 : index
    %c0_15 = arith.constant 0 : index
    %c0_16 = arith.constant 0 : index
    %15 = vector.load %arg2[%c2_14, %c0_15, %c0_16] : memref<9x4x8xf32, #tpu.memory_space<vmem>>, vector<1x4x8xf32>
    %16 = vector.shape_cast %15 : vector<1x4x8xf32> to vector<4x8xf32>
    %cst_17 = arith.constant dense<0.000000e+00> : vector<4x324xf32>
    %17 = tpu.matmul %16, %14, %cst_17 {dimension_numbers = #tpu.dot_dimension_numbers<[1], [0], [0], [1], [0, 0, 1, 1], [], []>} : vector<4x8xf32>, vector<8x324xf32>, vector<4x324xf32> -> vector<4x324xf32>
    %18 = arith.addf %12, %17 : vector<4x324xf32>
    %c0_18 = arith.constant 0 : index
    %c0_19 = arith.constant 0 : index
    %c18 = arith.constant 18 : index
    %19 = vector.load %arg1[%c0_18, %c0_19, %c18] : memref<1x8x362xf32, #tpu.memory_space<vmem>>, vector<1x8x324xf32>
    %20 = vector.shape_cast %19 : vector<1x8x324xf32> to vector<8x324xf32>
    %c3 = arith.constant 3 : index
    %c0_20 = arith.constant 0 : index
    %c0_21 = arith.constant 0 : index
    %21 = vector.load %arg2[%c3, %c0_20, %c0_21] : memref<9x4x8xf32, #tpu.memory_space<vmem>>, vector<1x4x8xf32>
    %22 = vector.shape_cast %21 : vector<1x4x8xf32> to vector<4x8xf32>
    %cst_22 = arith.constant dense<0.000000e+00> : vector<4x324xf32>
    %23 = tpu.matmul %22, %20, %cst_22 {dimension_numbers = #tpu.dot_dimension_numbers<[1], [0], [0], [1], [0, 0, 1, 1], [], []>} : vector<4x8xf32>, vector<8x324xf32>, vector<4x324xf32> -> vector<4x324xf32>
    %24 = arith.addf %18, %23 : vector<4x324xf32>
    %c0_23 = arith.constant 0 : index
    %c0_24 = arith.constant 0 : index
    %c19 = arith.constant 19 : index
    %25 = vector.load %arg1[%c0_23, %c0_24, %c19] : memref<1x8x362xf32, #tpu.memory_space<vmem>>, vector<1x8x324xf32>
    %26 = vector.shape_cast %25 : vector<1x8x324xf32> to vector<8x324xf32>
    %c4 = arith.constant 4 : index
    %c0_25 = arith.constant 0 : index
    %c0_26 = arith.constant 0 : index
    %27 = vector.load %arg2[%c4, %c0_25, %c0_26] : memref<9x4x8xf32, #tpu.memory_space<vmem>>, vector<1x4x8xf32>
    %28 = vector.shape_cast %27 : vector<1x4x8xf32> to vector<4x8xf32>
    %cst_27 = arith.constant dense<0.000000e+00> : vector<4x324xf32>
    %29 = tpu.matmul %28, %26, %cst_27 {dimension_numbers = #tpu.dot_dimension_numbers<[1], [0], [0], [1], [0, 0, 1, 1], [], []>} : vector<4x8xf32>, vector<8x324xf32>, vector<4x324xf32> -> vector<4x324xf32>
    %30 = arith.addf %24, %29 : vector<4x324xf32>
    %c0_28 = arith.constant 0 : index
    %c0_29 = arith.constant 0 : index
    %c20 = arith.constant 20 : index
    %31 = vector.load %arg1[%c0_28, %c0_29, %c20] : memref<1x8x362xf32, #tpu.memory_space<vmem>>, vector<1x8x324xf32>
    %32 = vector.shape_cast %31 : vector<1x8x324xf32> to vector<8x324xf32>
    %c5 = arith.constant 5 : index
    %c0_30 = arith.constant 0 : index
    %c0_31 = arith.constant 0 : index
    %33 = vector.load %arg2[%c5, %c0_30, %c0_31] : memref<9x4x8xf32, #tpu.memory_space<vmem>>, vector<1x4x8xf32>
    %34 = vector.shape_cast %33 : vector<1x4x8xf32> to vector<4x8xf32>
    %cst_32 = arith.constant dense<0.000000e+00> : vector<4x324xf32>
    %35 = tpu.matmul %34, %32, %cst_32 {dimension_numbers = #tpu.dot_dimension_numbers<[1], [0], [0], [1], [0, 0, 1, 1], [], []>} : vector<4x8xf32>, vector<8x324xf32>, vector<4x324xf32> -> vector<4x324xf32>
    %36 = arith.addf %30, %35 : vector<4x324xf32>
    %c0_33 = arith.constant 0 : index
    %c0_34 = arith.constant 0 : index
    %c36 = arith.constant 36 : index
    %37 = vector.load %arg1[%c0_33, %c0_34, %c36] : memref<1x8x362xf32, #tpu.memory_space<vmem>>, vector<1x8x324xf32>
    %38 = vector.shape_cast %37 : vector<1x8x324xf32> to vector<8x324xf32>
    %c6 = arith.constant 6 : index
    %c0_35 = arith.constant 0 : index
    %c0_36 = arith.constant 0 : index
    %39 = vector.load %arg2[%c6, %c0_35, %c0_36] : memref<9x4x8xf32, #tpu.memory_space<vmem>>, vector<1x4x8xf32>
    %40 = vector.shape_cast %39 : vector<1x4x8xf32> to vector<4x8xf32>
    %cst_37 = arith.constant dense<0.000000e+00> : vector<4x324xf32>
    %41 = tpu.matmul %40, %38, %cst_37 {dimension_numbers = #tpu.dot_dimension_numbers<[1], [0], [0], [1], [0, 0, 1, 1], [], []>} : vector<4x8xf32>, vector<8x324xf32>, vector<4x324xf32> -> vector<4x324xf32>
    %42 = arith.addf %36, %41 : vector<4x324xf32>
    %c0_38 = arith.constant 0 : index
    %c0_39 = arith.constant 0 : index
    %c37 = arith.constant 37 : index
    %43 = vector.load %arg1[%c0_38, %c0_39, %c37] : memref<1x8x362xf32, #tpu.memory_space<vmem>>, vector<1x8x324xf32>
    %44 = vector.shape_cast %43 : vector<1x8x324xf32> to vector<8x324xf32>
    %c7 = arith.constant 7 : index
    %c0_40 = arith.constant 0 : index
    %c0_41 = arith.constant 0 : index
    %45 = vector.load %arg2[%c7, %c0_40, %c0_41] : memref<9x4x8xf32, #tpu.memory_space<vmem>>, vector<1x4x8xf32>
    %46 = vector.shape_cast %45 : vector<1x4x8xf32> to vector<4x8xf32>
    %cst_42 = arith.constant dense<0.000000e+00> : vector<4x324xf32>
    %47 = tpu.matmul %46, %44, %cst_42 {dimension_numbers = #tpu.dot_dimension_numbers<[1], [0], [0], [1], [0, 0, 1, 1], [], []>} : vector<4x8xf32>, vector<8x324xf32>, vector<4x324xf32> -> vector<4x324xf32>
    %48 = arith.addf %42, %47 : vector<4x324xf32>
    %c0_43 = arith.constant 0 : index
    %c0_44 = arith.constant 0 : index
    %c38 = arith.constant 38 : index
    %49 = vector.load %arg1[%c0_43, %c0_44, %c38] : memref<1x8x362xf32, #tpu.memory_space<vmem>>, vector<1x8x324xf32>
    %50 = vector.shape_cast %49 : vector<1x8x324xf32> to vector<8x324xf32>
    %c8 = arith.constant 8 : index
    %c0_45 = arith.constant 0 : index
    %c0_46 = arith.constant 0 : index
    %51 = vector.load %arg2[%c8, %c0_45, %c0_46] : memref<9x4x8xf32, #tpu.memory_space<vmem>>, vector<1x4x8xf32>
    %52 = vector.shape_cast %51 : vector<1x4x8xf32> to vector<4x8xf32>
    %cst_47 = arith.constant dense<0.000000e+00> : vector<4x324xf32>
    %53 = tpu.matmul %52, %50, %cst_47 {dimension_numbers = #tpu.dot_dimension_numbers<[1], [0], [0], [1], [0, 0, 1, 1], [], []>} : vector<4x8xf32>, vector<8x324xf32>, vector<4x324xf32> -> vector<4x324xf32>
    %54 = arith.addf %48, %53 : vector<4x324xf32>
    %c0_48 = arith.constant 0 : index
    %c0_49 = arith.constant 0 : index
    %c0_50 = arith.constant 0 : index
    %55 = vector.load %arg4[%c0_48, %c0_49, %c0_50] : memref<1x4x324xf32, #tpu.memory_space<vmem>>, vector<1x4x324xf32>
    %56 = vector.shape_cast %55 : vector<1x4x324xf32> to vector<4x324xf32>
    %57 = vector.shape_cast %54 : vector<4x324xf32> to vector<1x4x324xf32>
    tpu.vector_store %arg4[%c0_48, %c0_49, %c0_50], %57 {strides = array<i32>} : memref<1x4x324xf32, #tpu.memory_space<vmem>>, vector<1x4x324xf32>,
    %c0_51 = arith.constant 0 : index
    %c0_52 = arith.constant 0 : index
    %58 = vector.load %arg3[%c0_51, %c0_52] : memref<1x324xf32, #tpu.memory_space<vmem>>, vector<1x324xf32>
    %59 = vector.broadcast %58 : vector<1x324xf32> to vector<4x324xf32>
    %60 = arith.mulf %54, %59 : vector<4x324xf32>
    %c0_i32 = arith.constant 0 : i32
    %61 = arith.cmpi eq, %arg0, %c0_i32 : i32
    %62 = arith.extui %61 : i1 to i32
    %c0_i32_53 = arith.constant 0 : i32
    %63 = arith.cmpi ne, %62, %c0_i32_53 : i32
    scf.if %63 {
      %cst_64 = arith.constant 0.000000e+00 : f32
      %75 = vector.broadcast %cst_64 : f32 to vector<4x1xf32>
      %c0_65 = arith.constant 0 : index
      %c0_66 = arith.constant 0 : index
      %76 = vector.load %arg5[%c0_65, %c0_66] : memref<4x1xf32, #tpu.memory_space<vmem>>, vector<4x1xf32>
      tpu.vector_store %arg5[%c0_65, %c0_66], %75 {strides = array<i32>} : memref<4x1xf32, #tpu.memory_space<vmem>>, vector<4x1xf32>,
      %cst_67 = arith.constant 0.000000e+00 : f32
      %77 = vector.broadcast %cst_67 : f32 to vector<4x1xf32>
      %c0_68 = arith.constant 0 : index
      %c0_69 = arith.constant 0 : index
      %78 = vector.load %arg6[%c0_68, %c0_69] : memref<4x1xf32, #tpu.memory_space<vmem>>, vector<4x1xf32>
      tpu.vector_store %arg6[%c0_68, %c0_69], %77 {strides = array<i32>} : memref<4x1xf32, #tpu.memory_space<vmem>>, vector<4x1xf32>,
    } else {
    }
    %c0_54 = arith.constant 0 : index
    %c0_55 = arith.constant 0 : index
    %64 = vector.load %arg5[%c0_54, %c0_55] : memref<4x1xf32, #tpu.memory_space<vmem>>, vector<4x1xf32>
    %cst_56 = arith.constant dense<0.000000e+00> : vector<4xf32>
    %65 = vector.multi_reduction <add>, %60, %cst_56 [1] : vector<4x324xf32> to vector<4xf32>
    %66 = vector.shape_cast %65 : vector<4xf32> to vector<4x1xf32>
    %67 = arith.addf %64, %66 : vector<4x1xf32>
    %c0_57 = arith.constant 0 : index
    %c0_58 = arith.constant 0 : index
    %68 = vector.load %arg5[%c0_57, %c0_58] : memref<4x1xf32, #tpu.memory_space<vmem>>, vector<4x1xf32>
    tpu.vector_store %arg5[%c0_57, %c0_58], %67 {strides = array<i32>} : memref<4x1xf32, #tpu.memory_space<vmem>>, vector<4x1xf32>,
    %c0_59 = arith.constant 0 : index
    %c0_60 = arith.constant 0 : index
    %69 = vector.load %arg6[%c0_59, %c0_60] : memref<4x1xf32, #tpu.memory_space<vmem>>, vector<4x1xf32>
    %70 = arith.mulf %60, %54 : vector<4x324xf32>
    %cst_61 = arith.constant dense<0.000000e+00> : vector<4xf32>
    %71 = vector.multi_reduction <add>, %70, %cst_61 [1] : vector<4x324xf32> to vector<4xf32>
    %72 = vector.shape_cast %71 : vector<4xf32> to vector<4x1xf32>
    %73 = arith.addf %69, %72 : vector<4x1xf32>
    %c0_62 = arith.constant 0 : index
    %c0_63 = arith.constant 0 : index
    %74 = vector.load %arg6[%c0_62, %c0_63] : memref<4x1xf32, #tpu.memory_space<vmem>>, vector<4x1xf32>
    tpu.vector_store %arg6[%c0_62, %c0_63], %73 {strides = array<i32>} : memref<4x1xf32, #tpu.memory_space<vmem>>, vector<4x1xf32>,
    return
  }
  func.func @transform_0(%arg0: i32) -> (i32, i32, i32) {
    %c0_i32 = arith.constant 0 : i32
    %c0_i32_0 = arith.constant 0 : i32
    %c0_i32_1 = arith.constant 0 : i32
    return %arg0, %c0_i32, %c0_i32_0 : i32, i32, i32
  }
  func.func @transform_1(%arg0: i32) -> (i32, i32, i32) {
    %c0_i32 = arith.constant 0 : i32
    %c0_i32_0 = arith.constant 0 : i32
    %c0_i32_1 = arith.constant 0 : i32
    %c0_i32_2 = arith.constant 0 : i32
    return %c0_i32, %c0_i32_0, %c0_i32_1 : i32, i32, i32
  }
  func.func @transform_2(%arg0: i32) -> (i32, i32) {
    %c0_i32 = arith.constant 0 : i32
    %c0_i32_0 = arith.constant 0 : i32
    %c0_i32_1 = arith.constant 0 : i32
    return %c0_i32, %c0_i32_0 : i32, i32
  }
  func.func @transform_3(%arg0: i32) -> (i32, i32, i32) {
    %c0_i32 = arith.constant 0 : i32
    %c0_i32_0 = arith.constant 0 : i32
    %c0_i32_1 = arith.constant 0 : i32
    return %arg0, %c0_i32, %c0_i32_0 : i32, i32, i32
  }
  func.func @transform_4(%arg0: i32) -> (i32, i32) {
    %c0_i32 = arith.constant 0 : i32
    %c0_i32_0 = arith.constant 0 : i32
    %c0_i32_1 = arith.constant 0 : i32
    return %c0_i32, %c0_i32_0 : i32, i32
  }
  func.func @transform_5(%arg0: i32) -> (i32, i32) {
    %c0_i32 = arith.constant 0 : i32
    %c0_i32_0 = arith.constant 0 : i32
    %c0_i32_1 = arith.constant 0 : i32
    return %c0_i32, %c0_i32_0 : i32, i32
  }
}

module attributes {stable_mosaic.version = 11 : i64} {
  func.func @_bn_act_kernel(%arg0: i32, %arg1: memref<1x4x324xf32, #tpu.memory_space<vmem>>, %arg2: memref<4x1xf32, #tpu.memory_space<vmem>>, %arg3: memref<4x1xf32, #tpu.memory_space<vmem>>, %arg4: memref<1x324xf32, #tpu.memory_space<vmem>>, %arg5: memref<1x4x324xf32, #tpu.memory_space<vmem>>) attributes {dimension_semantics = [#tpu.dimension_semantics<parallel>], iteration_bounds = array<i64: 2>, scalar_prefetch = 0 : i64, scratch_operands = 0 : i64, tpu.core_type = #tpu.core_type<tc>, window_params = [{transform_indices = @transform_0, window_bounds = array<i64: 1, 4, 324>}, {pipeline_mode = #tpu.pipeline_mode<synchronous>, transform_indices = @transform_1, window_bounds = array<i64: 4, 1>}, {pipeline_mode = #tpu.pipeline_mode<synchronous>, transform_indices = @transform_2, window_bounds = array<i64: 4, 1>}, {pipeline_mode = #tpu.pipeline_mode<synchronous>, transform_indices = @transform_3, window_bounds = array<i64: 1, 324>}, {transform_indices = @transform_4, window_bounds = array<i64: 1, 4, 324>}]} {
    %c0 = arith.constant 0 : index
    %c0_0 = arith.constant 0 : index
    %c0_1 = arith.constant 0 : index
    %0 = vector.load %arg1[%c0, %c0_0, %c0_1] : memref<1x4x324xf32, #tpu.memory_space<vmem>>, vector<1x4x324xf32>
    %1 = vector.shape_cast %0 : vector<1x4x324xf32> to vector<4x324xf32>
    %c0_2 = arith.constant 0 : index
    %c0_3 = arith.constant 0 : index
    %2 = vector.load %arg2[%c0_2, %c0_3] : memref<4x1xf32, #tpu.memory_space<vmem>>, vector<4x1xf32>
    %3 = vector.broadcast %2 : vector<4x1xf32> to vector<4x324xf32>
    %4 = arith.mulf %1, %3 : vector<4x324xf32>
    %c0_4 = arith.constant 0 : index
    %c0_5 = arith.constant 0 : index
    %5 = vector.load %arg3[%c0_4, %c0_5] : memref<4x1xf32, #tpu.memory_space<vmem>>, vector<4x1xf32>
    %6 = vector.broadcast %5 : vector<4x1xf32> to vector<4x324xf32>
    %7 = arith.addf %4, %6 : vector<4x324xf32>
    %cst = arith.constant 0.000000e+00 : f32
    %8 = vector.broadcast %cst : f32 to vector<4x324xf32>
    %9 = arith.maximumf %7, %8 : vector<4x324xf32>
    %c0_6 = arith.constant 0 : index
    %c0_7 = arith.constant 0 : index
    %10 = vector.load %arg4[%c0_6, %c0_7] : memref<1x324xf32, #tpu.memory_space<vmem>>, vector<1x324xf32>
    %11 = vector.broadcast %10 : vector<1x324xf32> to vector<4x324xf32>
    %12 = arith.mulf %9, %11 : vector<4x324xf32>
    %c0_8 = arith.constant 0 : index
    %c0_9 = arith.constant 0 : index
    %c0_10 = arith.constant 0 : index
    %13 = vector.load %arg5[%c0_8, %c0_9, %c0_10] : memref<1x4x324xf32, #tpu.memory_space<vmem>>, vector<1x4x324xf32>
    %14 = vector.shape_cast %13 : vector<1x4x324xf32> to vector<4x324xf32>
    %15 = vector.shape_cast %12 : vector<4x324xf32> to vector<1x4x324xf32>
    tpu.vector_store %arg5[%c0_8, %c0_9, %c0_10], %15 {strides = array<i32>} : memref<1x4x324xf32, #tpu.memory_space<vmem>>, vector<1x4x324xf32>,
    return
  }
  func.func @transform_0(%arg0: i32) -> (i32, i32, i32) {
    %c0_i32 = arith.constant 0 : i32
    %c0_i32_0 = arith.constant 0 : i32
    %c0_i32_1 = arith.constant 0 : i32
    return %arg0, %c0_i32, %c0_i32_0 : i32, i32, i32
  }
  func.func @transform_1(%arg0: i32) -> (i32, i32) {
    %c0_i32 = arith.constant 0 : i32
    %c0_i32_0 = arith.constant 0 : i32
    %c0_i32_1 = arith.constant 0 : i32
    return %c0_i32, %c0_i32_0 : i32, i32
  }
  func.func @transform_2(%arg0: i32) -> (i32, i32) {
    %c0_i32 = arith.constant 0 : i32
    %c0_i32_0 = arith.constant 0 : i32
    %c0_i32_1 = arith.constant 0 : i32
    return %c0_i32, %c0_i32_0 : i32, i32
  }
  func.func @transform_3(%arg0: i32) -> (i32, i32) {
    %c0_i32 = arith.constant 0 : i32
    %c0_i32_0 = arith.constant 0 : i32
    %c0_i32_1 = arith.constant 0 : i32
    return %c0_i32, %c0_i32_0 : i32, i32
  }
  func.func @transform_4(%arg0: i32) -> (i32, i32, i32) {
    %c0_i32 = arith.constant 0 : i32
    %c0_i32_0 = arith.constant 0 : i32
    %c0_i32_1 = arith.constant 0 : i32
    return %arg0, %c0_i32, %c0_i32_0 : i32, i32, i32
  }
}

module attributes {stable_mosaic.version = 11 : i64} {
  func.func @_conv_pass1_kernel(%arg0: i32, %arg1: memref<1x4x362xf32, #tpu.memory_space<vmem>>, %arg2: memref<9x4x4xf32, #tpu.memory_space<vmem>>, %arg3: memref<1x324xf32, #tpu.memory_space<vmem>>, %arg4: memref<1x4x324xf32, #tpu.memory_space<vmem>>, %arg5: memref<4x1xf32, #tpu.memory_space<vmem>>, %arg6: memref<4x1xf32, #tpu.memory_space<vmem>>) attributes {dimension_semantics = [#tpu.dimension_semantics<arbitrary>], iteration_bounds = array<i64: 2>, scalar_prefetch = 0 : i64, scratch_operands = 0 : i64, tpu.core_type = #tpu.core_type<tc>, window_params = [{transform_indices = @transform_0, window_bounds = array<i64: 1, 4, 362>}, {pipeline_mode = #tpu.pipeline_mode<synchronous>, transform_indices = @transform_1, window_bounds = array<i64: 9, 4, 4>}, {pipeline_mode = #tpu.pipeline_mode<synchronous>, transform_indices = @transform_2, window_bounds = array<i64: 1, 324>}, {transform_indices = @transform_3, window_bounds = array<i64: 1, 4, 324>}, {pipeline_mode = #tpu.pipeline_mode<synchronous>, transform_indices = @transform_4, window_bounds = array<i64: 4, 1>}, {pipeline_mode = #tpu.pipeline_mode<synchronous>, transform_indices = @transform_5, window_bounds = array<i64: 4, 1>}]} {
    %cst = arith.constant 0.000000e+00 : f32
    %0 = vector.broadcast %cst : f32 to vector<4x324xf32>
    %c0 = arith.constant 0 : index
    %c0_0 = arith.constant 0 : index
    %c0_1 = arith.constant 0 : index
    %1 = vector.load %arg1[%c0, %c0_0, %c0_1] : memref<1x4x362xf32, #tpu.memory_space<vmem>>, vector<1x4x324xf32>
    %2 = vector.shape_cast %1 : vector<1x4x324xf32> to vector<4x324xf32>
    %c0_2 = arith.constant 0 : index
    %c0_3 = arith.constant 0 : index
    %c0_4 = arith.constant 0 : index
    %3 = vector.load %arg2[%c0_2, %c0_3, %c0_4] : memref<9x4x4xf32, #tpu.memory_space<vmem>>, vector<1x4x4xf32>
    %4 = vector.shape_cast %3 : vector<1x4x4xf32> to vector<4x4xf32>
    %cst_5 = arith.constant dense<0.000000e+00> : vector<4x324xf32>
    %5 = tpu.matmul %4, %2, %cst_5 {dimension_numbers = #tpu.dot_dimension_numbers<[1], [0], [0], [1], [0, 0, 1, 1], [], []>} : vector<4x4xf32>, vector<4x324xf32>, vector<4x324xf32> -> vector<4x324xf32>
    %6 = arith.addf %0, %5 : vector<4x324xf32>
    %c0_6 = arith.constant 0 : index
    %c0_7 = arith.constant 0 : index
    %c1 = arith.constant 1 : index
    %7 = vector.load %arg1[%c0_6, %c0_7, %c1] : memref<1x4x362xf32, #tpu.memory_space<vmem>>, vector<1x4x324xf32>
    %8 = vector.shape_cast %7 : vector<1x4x324xf32> to vector<4x324xf32>
    %c1_8 = arith.constant 1 : index
    %c0_9 = arith.constant 0 : index
    %c0_10 = arith.constant 0 : index
    %9 = vector.load %arg2[%c1_8, %c0_9, %c0_10] : memref<9x4x4xf32, #tpu.memory_space<vmem>>, vector<1x4x4xf32>
    %10 = vector.shape_cast %9 : vector<1x4x4xf32> to vector<4x4xf32>
    %cst_11 = arith.constant dense<0.000000e+00> : vector<4x324xf32>
    %11 = tpu.matmul %10, %8, %cst_11 {dimension_numbers = #tpu.dot_dimension_numbers<[1], [0], [0], [1], [0, 0, 1, 1], [], []>} : vector<4x4xf32>, vector<4x324xf32>, vector<4x324xf32> -> vector<4x324xf32>
    %12 = arith.addf %6, %11 : vector<4x324xf32>
    %c0_12 = arith.constant 0 : index
    %c0_13 = arith.constant 0 : index
    %c2 = arith.constant 2 : index
    %13 = vector.load %arg1[%c0_12, %c0_13, %c2] : memref<1x4x362xf32, #tpu.memory_space<vmem>>, vector<1x4x324xf32>
    %14 = vector.shape_cast %13 : vector<1x4x324xf32> to vector<4x324xf32>
    %c2_14 = arith.constant 2 : index
    %c0_15 = arith.constant 0 : index
    %c0_16 = arith.constant 0 : index
    %15 = vector.load %arg2[%c2_14, %c0_15, %c0_16] : memref<9x4x4xf32, #tpu.memory_space<vmem>>, vector<1x4x4xf32>
    %16 = vector.shape_cast %15 : vector<1x4x4xf32> to vector<4x4xf32>
    %cst_17 = arith.constant dense<0.000000e+00> : vector<4x324xf32>
    %17 = tpu.matmul %16, %14, %cst_17 {dimension_numbers = #tpu.dot_dimension_numbers<[1], [0], [0], [1], [0, 0, 1, 1], [], []>} : vector<4x4xf32>, vector<4x324xf32>, vector<4x324xf32> -> vector<4x324xf32>
    %18 = arith.addf %12, %17 : vector<4x324xf32>
    %c0_18 = arith.constant 0 : index
    %c0_19 = arith.constant 0 : index
    %c18 = arith.constant 18 : index
    %19 = vector.load %arg1[%c0_18, %c0_19, %c18] : memref<1x4x362xf32, #tpu.memory_space<vmem>>, vector<1x4x324xf32>
    %20 = vector.shape_cast %19 : vector<1x4x324xf32> to vector<4x324xf32>
    %c3 = arith.constant 3 : index
    %c0_20 = arith.constant 0 : index
    %c0_21 = arith.constant 0 : index
    %21 = vector.load %arg2[%c3, %c0_20, %c0_21] : memref<9x4x4xf32, #tpu.memory_space<vmem>>, vector<1x4x4xf32>
    %22 = vector.shape_cast %21 : vector<1x4x4xf32> to vector<4x4xf32>
    %cst_22 = arith.constant dense<0.000000e+00> : vector<4x324xf32>
    %23 = tpu.matmul %22, %20, %cst_22 {dimension_numbers = #tpu.dot_dimension_numbers<[1], [0], [0], [1], [0, 0, 1, 1], [], []>} : vector<4x4xf32>, vector<4x324xf32>, vector<4x324xf32> -> vector<4x324xf32>
    %24 = arith.addf %18, %23 : vector<4x324xf32>
    %c0_23 = arith.constant 0 : index
    %c0_24 = arith.constant 0 : index
    %c19 = arith.constant 19 : index
    %25 = vector.load %arg1[%c0_23, %c0_24, %c19] : memref<1x4x362xf32, #tpu.memory_space<vmem>>, vector<1x4x324xf32>
    %26 = vector.shape_cast %25 : vector<1x4x324xf32> to vector<4x324xf32>
    %c4 = arith.constant 4 : index
    %c0_25 = arith.constant 0 : index
    %c0_26 = arith.constant 0 : index
    %27 = vector.load %arg2[%c4, %c0_25, %c0_26] : memref<9x4x4xf32, #tpu.memory_space<vmem>>, vector<1x4x4xf32>
    %28 = vector.shape_cast %27 : vector<1x4x4xf32> to vector<4x4xf32>
    %cst_27 = arith.constant dense<0.000000e+00> : vector<4x324xf32>
    %29 = tpu.matmul %28, %26, %cst_27 {dimension_numbers = #tpu.dot_dimension_numbers<[1], [0], [0], [1], [0, 0, 1, 1], [], []>} : vector<4x4xf32>, vector<4x324xf32>, vector<4x324xf32> -> vector<4x324xf32>
    %30 = arith.addf %24, %29 : vector<4x324xf32>
    %c0_28 = arith.constant 0 : index
    %c0_29 = arith.constant 0 : index
    %c20 = arith.constant 20 : index
    %31 = vector.load %arg1[%c0_28, %c0_29, %c20] : memref<1x4x362xf32, #tpu.memory_space<vmem>>, vector<1x4x324xf32>
    %32 = vector.shape_cast %31 : vector<1x4x324xf32> to vector<4x324xf32>
    %c5 = arith.constant 5 : index
    %c0_30 = arith.constant 0 : index
    %c0_31 = arith.constant 0 : index
    %33 = vector.load %arg2[%c5, %c0_30, %c0_31] : memref<9x4x4xf32, #tpu.memory_space<vmem>>, vector<1x4x4xf32>
    %34 = vector.shape_cast %33 : vector<1x4x4xf32> to vector<4x4xf32>
    %cst_32 = arith.constant dense<0.000000e+00> : vector<4x324xf32>
    %35 = tpu.matmul %34, %32, %cst_32 {dimension_numbers = #tpu.dot_dimension_numbers<[1], [0], [0], [1], [0, 0, 1, 1], [], []>} : vector<4x4xf32>, vector<4x324xf32>, vector<4x324xf32> -> vector<4x324xf32>
    %36 = arith.addf %30, %35 : vector<4x324xf32>
    %c0_33 = arith.constant 0 : index
    %c0_34 = arith.constant 0 : index
    %c36 = arith.constant 36 : index
    %37 = vector.load %arg1[%c0_33, %c0_34, %c36] : memref<1x4x362xf32, #tpu.memory_space<vmem>>, vector<1x4x324xf32>
    %38 = vector.shape_cast %37 : vector<1x4x324xf32> to vector<4x324xf32>
    %c6 = arith.constant 6 : index
    %c0_35 = arith.constant 0 : index
    %c0_36 = arith.constant 0 : index
    %39 = vector.load %arg2[%c6, %c0_35, %c0_36] : memref<9x4x4xf32, #tpu.memory_space<vmem>>, vector<1x4x4xf32>
    %40 = vector.shape_cast %39 : vector<1x4x4xf32> to vector<4x4xf32>
    %cst_37 = arith.constant dense<0.000000e+00> : vector<4x324xf32>
    %41 = tpu.matmul %40, %38, %cst_37 {dimension_numbers = #tpu.dot_dimension_numbers<[1], [0], [0], [1], [0, 0, 1, 1], [], []>} : vector<4x4xf32>, vector<4x324xf32>, vector<4x324xf32> -> vector<4x324xf32>
    %42 = arith.addf %36, %41 : vector<4x324xf32>
    %c0_38 = arith.constant 0 : index
    %c0_39 = arith.constant 0 : index
    %c37 = arith.constant 37 : index
    %43 = vector.load %arg1[%c0_38, %c0_39, %c37] : memref<1x4x362xf32, #tpu.memory_space<vmem>>, vector<1x4x324xf32>
    %44 = vector.shape_cast %43 : vector<1x4x324xf32> to vector<4x324xf32>
    %c7 = arith.constant 7 : index
    %c0_40 = arith.constant 0 : index
    %c0_41 = arith.constant 0 : index
    %45 = vector.load %arg2[%c7, %c0_40, %c0_41] : memref<9x4x4xf32, #tpu.memory_space<vmem>>, vector<1x4x4xf32>
    %46 = vector.shape_cast %45 : vector<1x4x4xf32> to vector<4x4xf32>
    %cst_42 = arith.constant dense<0.000000e+00> : vector<4x324xf32>
    %47 = tpu.matmul %46, %44, %cst_42 {dimension_numbers = #tpu.dot_dimension_numbers<[1], [0], [0], [1], [0, 0, 1, 1], [], []>} : vector<4x4xf32>, vector<4x324xf32>, vector<4x324xf32> -> vector<4x324xf32>
    %48 = arith.addf %42, %47 : vector<4x324xf32>
    %c0_43 = arith.constant 0 : index
    %c0_44 = arith.constant 0 : index
    %c38 = arith.constant 38 : index
    %49 = vector.load %arg1[%c0_43, %c0_44, %c38] : memref<1x4x362xf32, #tpu.memory_space<vmem>>, vector<1x4x324xf32>
    %50 = vector.shape_cast %49 : vector<1x4x324xf32> to vector<4x324xf32>
    %c8 = arith.constant 8 : index
    %c0_45 = arith.constant 0 : index
    %c0_46 = arith.constant 0 : index
    %51 = vector.load %arg2[%c8, %c0_45, %c0_46] : memref<9x4x4xf32, #tpu.memory_space<vmem>>, vector<1x4x4xf32>
    %52 = vector.shape_cast %51 : vector<1x4x4xf32> to vector<4x4xf32>
    %cst_47 = arith.constant dense<0.000000e+00> : vector<4x324xf32>
    %53 = tpu.matmul %52, %50, %cst_47 {dimension_numbers = #tpu.dot_dimension_numbers<[1], [0], [0], [1], [0, 0, 1, 1], [], []>} : vector<4x4xf32>, vector<4x324xf32>, vector<4x324xf32> -> vector<4x324xf32>
    %54 = arith.addf %48, %53 : vector<4x324xf32>
    %c0_48 = arith.constant 0 : index
    %c0_49 = arith.constant 0 : index
    %c0_50 = arith.constant 0 : index
    %55 = vector.load %arg4[%c0_48, %c0_49, %c0_50] : memref<1x4x324xf32, #tpu.memory_space<vmem>>, vector<1x4x324xf32>
    %56 = vector.shape_cast %55 : vector<1x4x324xf32> to vector<4x324xf32>
    %57 = vector.shape_cast %54 : vector<4x324xf32> to vector<1x4x324xf32>
    tpu.vector_store %arg4[%c0_48, %c0_49, %c0_50], %57 {strides = array<i32>} : memref<1x4x324xf32, #tpu.memory_space<vmem>>, vector<1x4x324xf32>,
    %c0_51 = arith.constant 0 : index
    %c0_52 = arith.constant 0 : index
    %58 = vector.load %arg3[%c0_51, %c0_52] : memref<1x324xf32, #tpu.memory_space<vmem>>, vector<1x324xf32>
    %59 = vector.broadcast %58 : vector<1x324xf32> to vector<4x324xf32>
    %60 = arith.mulf %54, %59 : vector<4x324xf32>
    %c0_i32 = arith.constant 0 : i32
    %61 = arith.cmpi eq, %arg0, %c0_i32 : i32
    %62 = arith.extui %61 : i1 to i32
    %c0_i32_53 = arith.constant 0 : i32
    %63 = arith.cmpi ne, %62, %c0_i32_53 : i32
    scf.if %63 {
      %cst_64 = arith.constant 0.000000e+00 : f32
      %75 = vector.broadcast %cst_64 : f32 to vector<4x1xf32>
      %c0_65 = arith.constant 0 : index
      %c0_66 = arith.constant 0 : index
      %76 = vector.load %arg5[%c0_65, %c0_66] : memref<4x1xf32, #tpu.memory_space<vmem>>, vector<4x1xf32>
      tpu.vector_store %arg5[%c0_65, %c0_66], %75 {strides = array<i32>} : memref<4x1xf32, #tpu.memory_space<vmem>>, vector<4x1xf32>,
      %cst_67 = arith.constant 0.000000e+00 : f32
      %77 = vector.broadcast %cst_67 : f32 to vector<4x1xf32>
      %c0_68 = arith.constant 0 : index
      %c0_69 = arith.constant 0 : index
      %78 = vector.load %arg6[%c0_68, %c0_69] : memref<4x1xf32, #tpu.memory_space<vmem>>, vector<4x1xf32>
      tpu.vector_store %arg6[%c0_68, %c0_69], %77 {strides = array<i32>} : memref<4x1xf32, #tpu.memory_space<vmem>>, vector<4x1xf32>,
    } else {
    }
    %c0_54 = arith.constant 0 : index
    %c0_55 = arith.constant 0 : index
    %64 = vector.load %arg5[%c0_54, %c0_55] : memref<4x1xf32, #tpu.memory_space<vmem>>, vector<4x1xf32>
    %cst_56 = arith.constant dense<0.000000e+00> : vector<4xf32>
    %65 = vector.multi_reduction <add>, %60, %cst_56 [1] : vector<4x324xf32> to vector<4xf32>
    %66 = vector.shape_cast %65 : vector<4xf32> to vector<4x1xf32>
    %67 = arith.addf %64, %66 : vector<4x1xf32>
    %c0_57 = arith.constant 0 : index
    %c0_58 = arith.constant 0 : index
    %68 = vector.load %arg5[%c0_57, %c0_58] : memref<4x1xf32, #tpu.memory_space<vmem>>, vector<4x1xf32>
    tpu.vector_store %arg5[%c0_57, %c0_58], %67 {strides = array<i32>} : memref<4x1xf32, #tpu.memory_space<vmem>>, vector<4x1xf32>,
    %c0_59 = arith.constant 0 : index
    %c0_60 = arith.constant 0 : index
    %69 = vector.load %arg6[%c0_59, %c0_60] : memref<4x1xf32, #tpu.memory_space<vmem>>, vector<4x1xf32>
    %70 = arith.mulf %60, %54 : vector<4x324xf32>
    %cst_61 = arith.constant dense<0.000000e+00> : vector<4xf32>
    %71 = vector.multi_reduction <add>, %70, %cst_61 [1] : vector<4x324xf32> to vector<4xf32>
    %72 = vector.shape_cast %71 : vector<4xf32> to vector<4x1xf32>
    %73 = arith.addf %69, %72 : vector<4x1xf32>
    %c0_62 = arith.constant 0 : index
    %c0_63 = arith.constant 0 : index
    %74 = vector.load %arg6[%c0_62, %c0_63] : memref<4x1xf32, #tpu.memory_space<vmem>>, vector<4x1xf32>
    tpu.vector_store %arg6[%c0_62, %c0_63], %73 {strides = array<i32>} : memref<4x1xf32, #tpu.memory_space<vmem>>, vector<4x1xf32>,
    return
  }
  func.func @transform_0(%arg0: i32) -> (i32, i32, i32) {
    %c0_i32 = arith.constant 0 : i32
    %c0_i32_0 = arith.constant 0 : i32
    %c0_i32_1 = arith.constant 0 : i32
    return %arg0, %c0_i32, %c0_i32_0 : i32, i32, i32
  }
  func.func @transform_1(%arg0: i32) -> (i32, i32, i32) {
    %c0_i32 = arith.constant 0 : i32
    %c0_i32_0 = arith.constant 0 : i32
    %c0_i32_1 = arith.constant 0 : i32
    %c0_i32_2 = arith.constant 0 : i32
    return %c0_i32, %c0_i32_0, %c0_i32_1 : i32, i32, i32
  }
  func.func @transform_2(%arg0: i32) -> (i32, i32) {
    %c0_i32 = arith.constant 0 : i32
    %c0_i32_0 = arith.constant 0 : i32
    %c0_i32_1 = arith.constant 0 : i32
    return %c0_i32, %c0_i32_0 : i32, i32
  }
  func.func @transform_3(%arg0: i32) -> (i32, i32, i32) {
    %c0_i32 = arith.constant 0 : i32
    %c0_i32_0 = arith.constant 0 : i32
    %c0_i32_1 = arith.constant 0 : i32
    return %arg0, %c0_i32, %c0_i32_0 : i32, i32, i32
  }
  func.func @transform_4(%arg0: i32) -> (i32, i32) {
    %c0_i32 = arith.constant 0 : i32
    %c0_i32_0 = arith.constant 0 : i32
    %c0_i32_1 = arith.constant 0 : i32
    return %c0_i32, %c0_i32_0 : i32, i32
  }
  func.func @transform_5(%arg0: i32) -> (i32, i32) {
    %c0_i32 = arith.constant 0 : i32
    %c0_i32_0 = arith.constant 0 : i32
    %c0_i32_1 = arith.constant 0 : i32
    return %c0_i32, %c0_i32_0 : i32, i32
  }
}

module attributes {stable_mosaic.version = 11 : i64} {
  func.func @_bn_act_kernel(%arg0: i32, %arg1: memref<1x4x324xf32, #tpu.memory_space<vmem>>, %arg2: memref<4x1xf32, #tpu.memory_space<vmem>>, %arg3: memref<4x1xf32, #tpu.memory_space<vmem>>, %arg4: memref<1x324xf32, #tpu.memory_space<vmem>>, %arg5: memref<1x4x324xf32, #tpu.memory_space<vmem>>) attributes {dimension_semantics = [#tpu.dimension_semantics<parallel>], iteration_bounds = array<i64: 2>, scalar_prefetch = 0 : i64, scratch_operands = 0 : i64, tpu.core_type = #tpu.core_type<tc>, window_params = [{transform_indices = @transform_0, window_bounds = array<i64: 1, 4, 324>}, {pipeline_mode = #tpu.pipeline_mode<synchronous>, transform_indices = @transform_1, window_bounds = array<i64: 4, 1>}, {pipeline_mode = #tpu.pipeline_mode<synchronous>, transform_indices = @transform_2, window_bounds = array<i64: 4, 1>}, {pipeline_mode = #tpu.pipeline_mode<synchronous>, transform_indices = @transform_3, window_bounds = array<i64: 1, 324>}, {transform_indices = @transform_4, window_bounds = array<i64: 1, 4, 324>}]} {
    %c0 = arith.constant 0 : index
    %c0_0 = arith.constant 0 : index
    %c0_1 = arith.constant 0 : index
    %0 = vector.load %arg1[%c0, %c0_0, %c0_1] : memref<1x4x324xf32, #tpu.memory_space<vmem>>, vector<1x4x324xf32>
    %1 = vector.shape_cast %0 : vector<1x4x324xf32> to vector<4x324xf32>
    %c0_2 = arith.constant 0 : index
    %c0_3 = arith.constant 0 : index
    %2 = vector.load %arg2[%c0_2, %c0_3] : memref<4x1xf32, #tpu.memory_space<vmem>>, vector<4x1xf32>
    %3 = vector.broadcast %2 : vector<4x1xf32> to vector<4x324xf32>
    %4 = arith.mulf %1, %3 : vector<4x324xf32>
    %c0_4 = arith.constant 0 : index
    %c0_5 = arith.constant 0 : index
    %5 = vector.load %arg3[%c0_4, %c0_5] : memref<4x1xf32, #tpu.memory_space<vmem>>, vector<4x1xf32>
    %6 = vector.broadcast %5 : vector<4x1xf32> to vector<4x324xf32>
    %7 = arith.addf %4, %6 : vector<4x324xf32>
    %cst = arith.constant 0.000000e+00 : f32
    %8 = vector.broadcast %cst : f32 to vector<4x324xf32>
    %9 = arith.cmpf oge, %7, %8 : vector<4x324xf32>
    %cst_6 = arith.constant 1.000000e-01 : f32
    %10 = vector.broadcast %cst_6 : f32 to vector<4x324xf32>
    %11 = arith.mulf %10, %7 : vector<4x324xf32>
    %12 = arith.select %9, %7, %11 : vector<4x324xi1>, vector<4x324xf32>
    %c0_7 = arith.constant 0 : index
    %c0_8 = arith.constant 0 : index
    %13 = vector.load %arg4[%c0_7, %c0_8] : memref<1x324xf32, #tpu.memory_space<vmem>>, vector<1x324xf32>
    %14 = vector.broadcast %13 : vector<1x324xf32> to vector<4x324xf32>
    %15 = arith.mulf %12, %14 : vector<4x324xf32>
    %c0_9 = arith.constant 0 : index
    %c0_10 = arith.constant 0 : index
    %c0_11 = arith.constant 0 : index
    %16 = vector.load %arg5[%c0_9, %c0_10, %c0_11] : memref<1x4x324xf32, #tpu.memory_space<vmem>>, vector<1x4x324xf32>
    %17 = vector.shape_cast %16 : vector<1x4x324xf32> to vector<4x324xf32>
    %18 = vector.shape_cast %15 : vector<4x324xf32> to vector<1x4x324xf32>
    tpu.vector_store %arg5[%c0_9, %c0_10, %c0_11], %18 {strides = array<i32>} : memref<1x4x324xf32, #tpu.memory_space<vmem>>, vector<1x4x324xf32>,
    return
  }
  func.func @transform_0(%arg0: i32) -> (i32, i32, i32) {
    %c0_i32 = arith.constant 0 : i32
    %c0_i32_0 = arith.constant 0 : i32
    %c0_i32_1 = arith.constant 0 : i32
    return %arg0, %c0_i32, %c0_i32_0 : i32, i32, i32
  }
  func.func @transform_1(%arg0: i32) -> (i32, i32) {
    %c0_i32 = arith.constant 0 : i32
    %c0_i32_0 = arith.constant 0 : i32
    %c0_i32_1 = arith.constant 0 : i32
    return %c0_i32, %c0_i32_0 : i32, i32
  }
  func.func @transform_2(%arg0: i32) -> (i32, i32) {
    %c0_i32 = arith.constant 0 : i32
    %c0_i32_0 = arith.constant 0 : i32
    %c0_i32_1 = arith.constant 0 : i32
    return %c0_i32, %c0_i32_0 : i32, i32
  }
  func.func @transform_3(%arg0: i32) -> (i32, i32) {
    %c0_i32 = arith.constant 0 : i32
    %c0_i32_0 = arith.constant 0 : i32
    %c0_i32_1 = arith.constant 0 : i32
    return %c0_i32, %c0_i32_0 : i32, i32
  }
  func.func @transform_4(%arg0: i32) -> (i32, i32, i32) {
    %c0_i32 = arith.constant 0 : i32
    %c0_i32_0 = arith.constant 0 : i32
    %c0_i32_1 = arith.constant 0 : i32
    return %arg0, %c0_i32, %c0_i32_0 : i32, i32, i32
  }
}

</mosaic_0001>

<llo_original>
// kernel: tile.0
$region0: #{tile.0}
  %s0 = inlined_call_operand.vmem [shape: f32[4,4], index: 0, kind: input, shape index: {}]
  %s1 = inlined_call_operand.vmem [shape: f32[16,1], index: 1, kind: output, shape index: {}]
  $region1: #{tile.0} parent=0
    #allocation0 [shape = 'u8[4096]{0}', space=vmem, size = 0x1000, scoped, tag = 'scoped mem for input reshape']
    %s3 = sshllo.u32 0, 4
    %v4 = vld [vmem:[%s0] sm:%s3]
    %5 = vst [vmem:[#allocation0] sm:%s3] %v4
    %v6 = vld [vmem:[#allocation0] sm:$0xf]
    %vm7 = vcmask 7168
    %8 = vst.msk [vmem:[%s1] ss:$4 sm:$0xf] %vm7, %v6
    %v9 = vld [vmem:[#allocation0] sm:$0xf]
    %10 = vrot.lane.b32.xlu0 %v9, 127
    %v11 = vpop.permute.xlu0 %10
    %vm12 = vcmask 7168
    %s13 = scalar_lea.vmem %s1, 1
    %14 = vst.msk [vmem:[%s13] ss:$4 sm:$0xf] %vm12, %v11
    %v15 = vld [vmem:[#allocation0] sm:$0xf]
    %16 = vrot.lane.b32.xlu0 %v15, 126
    %v17 = vpop.permute.xlu0 %16
    %vm18 = vcmask 7168
    %s19 = scalar_lea.vmem %s1, 2
    %20 = vst.msk [vmem:[%s19] ss:$4 sm:$0xf] %vm18, %v17
    %v21 = vld [vmem:[#allocation0] sm:$0xf]
    %22 = vrot.lane.b32.xlu0 %v21, 125
    %v23 = vpop.permute.xlu0 %22
    %vm24 = vcmask 7168
    %s25 = scalar_lea.vmem %s1, 3
    %26 = vst.msk [vmem:[%s25] ss:$4 sm:$0xf] %vm24, %v23

// kernel: tile.6
$region0: #{tile.6}
  #allocation0 [shape = 's32[1]{0}', space=sflag, size = 0x4, scoped, tag = 'scoped memory for tile.6']
  %s0 = inlined_call_operand.vmem [shape: f32[4], index: 0, kind: input, shape index: {}]
  %s1 = inlined_call_operand.vmem [shape: f32[4,4], index: 1, kind: output, shape index: {}]
  // Predicated region
  $region2: #{tile.6} parent=0 // pred_check
    _
  $region3: #{tile.6} parent=0 // pred_check_branch
    %3 = sbr.rel (0) target = $region5
  $region4: #{tile.6} parent=0 // pred_region
    _
  $region5: #{tile.6} parent=0 // pred_fallthru
    _
  %v4 = vld [vmem:[%s0] ss:$0 sm:$0xff]
  %5 = vst [vmem:[%s1] sm:$0xf] %v4

// kernel: _lambda_.9
$region0: #{_lambda_.9}
  #allocation0 [shape = 'u32[]', space=smem, size = 0x4, offset = 0x4, fixed_abs, tag = 'smem constant byte address 0x4 - core index']
  #allocation1 [shape = 'u32[144,128]{1,0:T(1,128)}', space=vmem, size = 0x12000, scoped, tag = 'internal scratch']
  %s0 = inlined_call_operand.vmem [shape: f32[4,512], index: 0, kind: input, shape index: {}]
  %s1 = inlined_call_operand.vmem [shape: f32[16,4], index: 1, kind: input, shape index: {}]
  %s2 = inlined_call_operand.vmem [shape: f32[16,1], index: 2, kind: input, shape index: {}]
  %s3 = inlined_call_operand.vmem [shape: f32[16,512], index: 3, kind: output, shape index: {}]
  %s4 = sld [smem:[#allocation0]]
  $region22: #{_lambda_.9} parent=0
    _
  %s6 = ssub.s32 1, %s4
  %s7 = scalar_select 0, %s6, %s4
  // Predicated region
  $region2: #{_lambda_.9} parent=0 // pred_check
    _
  $region3: #{_lambda_.9} parent=0 // pred_check_branch
    %9 = sbr.rel (0) target = $region5
  $region4: #{_lambda_.9} parent=0 // pred_region
    _
  $region5: #{_lambda_.9} parent=0 // pred_fallthru
    _
  // Predicated region
  $region6: #{_lambda_.9} parent=0 // pred_check
    _
  $region7: #{_lambda_.9} parent=0 // pred_check_branch
    %11 = sbr.rel (0) target = $region9
  $region8: #{_lambda_.9} parent=0 // pred_region
    _
  $region9: #{_lambda_.9} parent=0 // pred_fallthru
    _
  // Predicated region
  $region10: #{_lambda_.9} parent=0 // pred_check
    _
  $region11: #{_lambda_.9} parent=0 // pred_check_branch
    %13 = sbr.rel (0) target = $region13
  $region12: #{_lambda_.9} parent=0 // pred_region
    _
  $region13: #{_lambda_.9} parent=0 // pred_fallthru
    _
  %v14 = vld [vmem:[%s1] sm:$0xff]
  %v15 = vld [vmem:[%s1 + $0x8] sm:$0xff]
  %v16 = vld [vmem:[%s0] sm:$0xff]
  %v17 = vld [vmem:[%s0 + $0x8] sm:$0xff]
  %v18 = vld [vmem:[%s2] sm:$0xff]
  %v19 = vld [vmem:[%s2 + $0x8] sm:$0xff]
  %21 = vset.pattern.permute.xlu0 0
  %22 = vperm.xlu0 %21, %v18
  %v23 = vpop.permute.xlu0 %22
  %26 = vset.pattern.permute.xlu0 0
  %27 = vperm.xlu0 %26, %v19
  %v28 = vpop.permute.xlu0 %27
  %v32 = vcombine.high %v16, %v16
  %v33 = vcombine.high %v17, %v17
  %vm34 = vcmask 31744
  %v36 = vsel %vm34, %v14, 0
  %v39 = vsel %vm34, %v15, 0
  %vm41 = vcmask 1043456
  %v42 = vsel %vm41, %v16, 0
  %v44 = vsel %vm41, %v32, 0
  %v46 = vsel %vm41, %v17, 0
  %v48 = vsel %vm41, %v33, 0
  %50 = vmatprep.subr.mxu0 %v44
  %51 = vmatpush1.msra.mxu0 %v42
  %52 = vmatprep.subr.mxu0 0.0
  %53 = vmatpush1.msra.mxu0 0.0
  %54 = vmatprep.subr.mxu0 0.0
  %55 = vmatpush1.msra.mxu0 0.0
  %56 = vmatprep.subr.mxu0 0.0
  %57 = vmatpush1.msra.mxu0 0.0
  %58 = vmatprep.subr.mxu0 0.0
  %59 = vmatpush1.msra.mxu0 0.0
  %60 = vmatprep.subr.mxu0 0.0
  %61 = vmatpush1.msra.mxu0 0.0
  %62 = vmatprep.subr.mxu0 0.0
  %63 = vmatpush1.msra.mxu0 0.0
  %64 = vmatprep.subr.mxu0 0.0
  %65 = vmatpush1.msra.mxu0 0.0
  %66 = vmatprep.subr.mxu0 0.0
  %67 = vmatpush1.msra.mxu0 0.0
  %68 = vmatprep.subr.mxu0 0.0
  %69 = vmatpush1.msra.mxu0 0.0
  %70 = vmatprep.subr.mxu0 0.0
  %71 = vmatpush1.msra.mxu0 0.0
  %72 = vmatprep.subr.mxu0 0.0
  %73 = vmatpush1.msra.mxu0 0.0
  %74 = vmatprep.subr.mxu0 0.0
  %75 = vmatpush1.msra.mxu0 0.0
  %76 = vmatprep.subr.mxu0 0.0
  %77 = vmatpush1.msra.mxu0 0.0
  %78 = vmatprep.subr.mxu0 0.0
  %79 = vmatpush1.msra.mxu0 0.0
  %80 = vmatprep.subr.mxu0 0.0
  %81 = vmatpush1.msra.mxu0 0.0
  %82 = vmatprep.subr.mxu0 0.0
  %83 = vmatpush1.msra.mxu0 0.0
  %84 = vmatprep.subr.mxu0 0.0
  %85 = vmatpush1.msra.mxu0 0.0
  %86 = vmatprep.subr.mxu0 0.0
  %87 = vmatpush1.msra.mxu0 0.0
  %88 = vmatprep.subr.mxu0 0.0
  %89 = vmatpush1.msra.mxu0 0.0
  %90 = vmatprep.subr.mxu0 0.0
  %91 = vmatpush1.msra.mxu0 0.0
  %92 = vmatprep.subr.mxu0 0.0
  %93 = vmatpush1.msra.mxu0 0.0
  %94 = vmatprep.subr.mxu0 0.0
  %95 = vmatpush1.msra.mxu0 0.0
  %96 = vmatprep.subr.mxu0 0.0
  %97 = vmatpush1.msra.mxu0 0.0
  %98 = vmatprep.subr.mxu0 0.0
  %99 = vmatpush1.msra.mxu0 0.0
  %100 = vmatprep.subr.mxu0 0.0
  %101 = vmatpush1.msra.mxu0 0.0
  %102 = vmatprep.subr.mxu0 0.0
  %103 = vmatpush1.msra.mxu0 0.0
  %104 = vmatprep.subr.mxu0 0.0
  %105 = vmatpush1.msra.mxu0 0.0
  %106 = vmatprep.subr.mxu0 0.0
  %107 = vmatpush1.msra.mxu0 0.0
  %108 = vmatprep.subr.mxu0 0.0
  %109 = vmatpush1.msra.mxu0 0.0
  %110 = vmatprep.subr.mxu0 0.0
  %111 = vmatpush1.msra.mxu0 0.0
  %112 = vmatprep.subr.mxu0 0.0
  %113 = vmatpush1.msra.mxu0 0.0
  %114 = vmatprep.mubr.f32.mxu0 0.0
  %115 = vmatmul.mubr.f32.gmra.mrb[0].mxu0 %v36
  %v116 = vpop.f32.mrb[0].mxu0
  %v117 = vadd.f32 %v23, %v116
  %v118 = vpop.f32.mrb[0].mxu0
  %v119 = vadd.f32 %v23, %v118
  %120 = vmatprep.mubr.f32.mxu0 0.0
  %121 = vmatmul.mubr.f32.gmra.mrb[0].mxu0 %v39
  %v122 = vpop.f32.mrb[0].mxu0
  %v123 = vadd.f32 %v28, %v122
  %v124 = vpop.f32.mrb[0].mxu0
  %v125 = vadd.f32 %v28, %v124
  %126 = vdwg.mxu0
  %127 = vmatprep.subr.mxu0 %v48
  %128 = vmatpush1.msra.mxu0 %v46
  %129 = vmatprep.subr.mxu0 0.0
  %130 = vmatpush1.msra.mxu0 0.0
  %131 = vmatprep.subr.mxu0 0.0
  %132 = vmatpush1.msra.mxu0 0.0
  %133 = vmatprep.subr.mxu0 0.0
  %134 = vmatpush1.msra.mxu0 0.0
  %135 = vmatprep.subr.mxu0 0.0
  %136 = vmatpush1.msra.mxu0 0.0
  %137 = vmatprep.subr.mxu0 0.0
  %138 = vmatpush1.msra.mxu0 0.0
  %139 = vmatprep.subr.mxu0 0.0
  %140 = vmatpush1.msra.mxu0 0.0
  %141 = vmatprep.subr.mxu0 0.0
  %142 = vmatpush1.msra.mxu0 0.0
  %143 = vmatprep.subr.mxu0 0.0
  %144 = vmatpush1.msra.mxu0 0.0
  %145 = vmatprep.subr.mxu0 0.0
  %146 = vmatpush1.msra.mxu0 0.0
  %147 = vmatprep.subr.mxu0 0.0
  %148 = vmatpush1.msra.mxu0 0.0
  %149 = vmatprep.subr.mxu0 0.0
  %150 = vmatpush1.msra.mxu0 0.0
  %151 = vmatprep.subr.mxu0 0.0
  %152 = vmatpush1.msra.mxu0 0.0
  %153 = vmatprep.subr.mxu0 0.0
  %154 = vmatpush1.msra.mxu0 0.0
  %155 = vmatprep.subr.mxu0 0.0
  %156 = vmatpush1.msra.mxu0 0.0
  %157 = vmatprep.subr.mxu0 0.0
  %158 = vmatpush1.msra.mxu0 0.0
  %159 = vmatprep.subr.mxu0 0.0
  %160 = vmatpush1.msra.mxu0 0.0
  %161 = vmatprep.subr.mxu0 0.0
  %162 = vmatpush1.msra.mxu0 0.0
  %163 = vmatprep.subr.mxu0 0.0
  %164 = vmatpush1.msra.mxu0 0.0
  %165 = vmatprep.subr.mxu0 0.0
  %166 = vmatpush1.msra.mxu0 0.0
  %167 = vmatprep.subr.mxu0 0.0
  %168 = vmatpush1.msra.mxu0 0.0
  %169 = vmatprep.subr.mxu0 0.0
  %170 = vmatpush1.msra.mxu0 0.0
  %171 = vmatprep.subr.mxu0 0.0
  %172 = vmatpush1.msra.mxu0 0.0
  %173 = vmatprep.subr.mxu0 0.0
  %174 = vmatpush1.msra.mxu0 0.0
  %175 = vmatprep.subr.mxu0 0.0
  %176 = vmatpush1.msra.mxu0 0.0
  %177 = vmatprep.subr.mxu0 0.0
  %178 = vmatpush1.msra.mxu0 0.0
  %179 = vmatprep.subr.mxu0 0.0
  %180 = vmatpush1.msra.mxu0 0.0
  %181 = vmatprep.subr.mxu0 0.0
  %182 = vmatpush1.msra.mxu0 0.0
  %183 = vmatprep.subr.mxu0 0.0
  %184 = vmatpush1.msra.mxu0 0.0
  %185 = vmatprep.subr.mxu0 0.0
  %186 = vmatpush1.msra.mxu0 0.0
  %187 = vmatprep.subr.mxu0 0.0
  %188 = vmatpush1.msra.mxu0 0.0
  %189 = vmatprep.subr.mxu0 0.0
  %190 = vmatpush1.msra.mxu0 0.0
  %191 = vmatprep.mubr.f32.mxu0 0.0
  %192 = vmatmul.mubr.f32.gmra.mrb[0].mxu0 %v36
  %v193 = vpop.f32.mrb[0].mxu0
  %v194 = vadd.f32 %v23, %v193
  %v195 = vpop.f32.mrb[0].mxu0
  %v196 = vadd.f32 %v23, %v195
  %197 = vmatprep.mubr.f32.mxu0 0.0
  %198 = vmatmul.mubr.f32.gmra.mrb[0].mxu0 %v39
  %v199 = vpop.f32.mrb[0].mxu0
  %v200 = vadd.f32 %v28, %v199
  %v201 = vpop.f32.mrb[0].mxu0
  %v202 = vadd.f32 %v28, %v201
  %203 = vdwg.mxu0
  %204 = vst [vmem:[%s3] sm:$0xff] %v117
  %205 = vst [vmem:[%s3 + $0x8] sm:$0xff] %v119
  %206 = vst [vmem:[%s3 + $0x10] sm:$0xff] %v194
  %207 = vst [vmem:[%s3 + $0x18] sm:$0xff] %v196
  %208 = vst [vmem:[%s3 + $0x20] sm:$0xff] %v123
  %209 = vst [vmem:[%s3 + $0x28] sm:$0xff] %v125
  %210 = vst [vmem:[%s3 + $0x30] sm:$0xff] %v200
  %211 = vst [vmem:[%s3 + $0x38] sm:$0xff] %v202
  // Predicated region
  $region14: #{_lambda_.9} parent=0 // pred_check
    _
  $region15: #{_lambda_.9} parent=0 // pred_check_branch
    %213 = sbr.rel (0) target = $region17
  $region16: #{_lambda_.9} parent=0 // pred_region
    _
  $region17: #{_lambda_.9} parent=0 // pred_fallthru
    _
  // Predicated region
  $region18: #{_lambda_.9} parent=0 // pred_check
    _
  $region19: #{_lambda_.9} parent=0 // pred_check_branch
    %215 = sbr.rel (0) target = $region21
  $region20: #{_lambda_.9} parent=0 // pred_region
    _
  $region21: #{_lambda_.9} parent=0 // pred_fallthru
    _

// kernel: _lambda_.11
$region0: #{_lambda_.11}
  #allocation0 [shape = 'u32[]', space=smem, size = 0x4, offset = 0x4, fixed_abs, tag = 'smem constant byte address 0x4 - core index']
  #allocation1 [shape = 'u32[144,128]{1,0:T(1,128)}', space=vmem, size = 0x12000, scoped, tag = 'internal scratch']
  %s0 = inlined_call_operand.vmem [shape: f32[2,4,324], index: 0, kind: input, shape index: {}]
  %s1 = inlined_call_operand.vmem [shape: f32[4,1], index: 1, kind: input, shape index: {}]
  %s2 = inlined_call_operand.vmem [shape: f32[4,1], index: 2, kind: input, shape index: {}]
  %s3 = inlined_call_operand.vmem [shape: f32[1,324], index: 3, kind: input, shape index: {}]
  %s4 = inlined_call_operand.vmem [shape: f32[2,4,324], index: 4, kind: output, shape index: {}]
  %s5 = sld [smem:[#allocation0]]
  $region49: #{_lambda_.11} parent=0
    _
  %s7 = ssub.s32 1, %s5
  %s8 = scalar_select 0, %s7, %s5
  loop: start=0, step=1, limit=4
  $region2: #{_lambda_.11} parent=0 // loop_pre_header
    _
  $region3: #{_lambda_.11} parent=0 // loop_header
    %s10 = sphi 0, %s14
    %p11 = scmp.ge.s32.totalorder %s10, 4
    %s20 = sphi 0, %s22
    %s23 = sphi 0, %s20
    %s24 = sphi 0, %s23
    %s40 = sphi 0, %s24
    %s44 = sphi 0, %s44
    %s46 = sphi 0, %s44
    %s47 = sphi 0, %s46
    %s61 = sphi 0, %s47
    %s65 = sphi 0, %s65
    %s67 = sphi 0, %s65
    %s68 = sphi 0, %s67
    %s82 = sphi 0, %s68
    %s86 = sphi 0, %s86
    %s88 = sphi 0, %s86
    %s89 = sphi 0, %s88
    %s103 = sphi 0, %s89
    %s109 = sphi 0, %s111
    %s112 = sphi 0, %s109
    %s113 = sphi 0, %s112
    %s129 = sphi 0, %s113
  $region4: #{_lambda_.11} parent=0 // loop_header_branch
    %13 = sbr.rel (%p11) target = $region8
  $region5: #{_lambda_.11} parent=0 // loop_body
    %s15 = ssub.s32 %s10, 1
    %s16 = ssub.s32 %s10, 2
    %s17 = sadd.s32 %s10, 1
    %s18 = ssub.s32 %s10, %s17
    %p19 = scmp.eq.s32.totalorder %s18, 0
    %s21 = sadd.s32 %s20, 1
    %s22 = scalar_select %p19, %s20, %s21
    %p25 = pneg %p19
    %p26 = scmp.eq.s32.totalorder %s10, 1
    %p27 = por %p25, %p26
    %p28 = scmp.ne.s32.totalorder %s20, %s23
    %p29 = scmp.eq.s32.totalorder %s10, 0
    %p30 = por %p28, %p29
    %p31 = scmp.ne.s32.totalorder %s20, %s23
    %p32 = scmp.eq.s32.totalorder %s15, 1
    %p33 = por %p31, %p32
    %p34 = scmp.ne.s32.totalorder %s23, %s24
    %p35 = scmp.eq.s32.totalorder %s15, 0
    %p36 = por %p34, %p35
    %p37 = scmp.ne.s32.totalorder %s23, %s24
    %p38 = scmp.eq.s32.totalorder %s16, 1
    %p39 = por %p37, %p38
    %p41 = scmp.ne.s32.totalorder %s24, %s40
    %p42 = scmp.eq.s32.totalorder %s16, 0
    %p43 = por %p41, %p42
    %s45 = sadd.s32 %s44, 1
    %p48 = scmp.eq.s32.totalorder %s10, 1
    %p49 = scmp.ne.s32.totalorder %s44, %s46
    %p50 = scmp.eq.s32.totalorder %s10, 0
    %p51 = por %p49, %p50
    %p52 = scmp.ne.s32.totalorder %s44, %s46
    %p53 = scmp.eq.s32.totalorder %s15, 1
    %p54 = por %p52, %p53
    %p55 = scmp.ne.s32.totalorder %s46, %s47
    %p56 = scmp.eq.s32.totalorder %s15, 0
    %p57 = por %p55, %p56
    %p58 = scmp.ne.s32.totalorder %s46, %s47
    %p59 = scmp.eq.s32.totalorder %s16, 1
    %p60 = por %p58, %p59
    %p62 = scmp.ne.s32.totalorder %s47, %s61
    %p63 = scmp.eq.s32.totalorder %s16, 0
    %p64 = por %p62, %p63
    %s66 = sadd.s32 %s65, 1
    %p69 = scmp.eq.s32.totalorder %s10, 1
    %p70 = scmp.ne.s32.totalorder %s65, %s67
    %p71 = scmp.eq.s32.totalorder %s10, 0
    %p72 = por %p70, %p71
    %p73 = scmp.ne.s32.totalorder %s65, %s67
    %p74 = scmp.eq.s32.totalorder %s15, 1
    %p75 = por %p73, %p74
    %p76 = scmp.ne.s32.totalorder %s67, %s68
    %p77 = scmp.eq.s32.totalorder %s15, 0
    %p78 = por %p76, %p77
    %p79 = scmp.ne.s32.totalorder %s67, %s68
    %p80 = scmp.eq.s32.totalorder %s16, 1
    %p81 = por %p79, %p80
    %p83 = scmp.ne.s32.totalorder %s68, %s82
    %p84 = scmp.eq.s32.totalorder %s16, 0
    %p85 = por %p83, %p84
    %s87 = sadd.s32 %s86, 1
    %p90 = scmp.eq.s32.totalorder %s10, 1
    %p91 = scmp.ne.s32.totalorder %s86, %s88
    %p92 = scmp.eq.s32.totalorder %s10, 0
    %p93 = por %p91, %p92
    %p94 = scmp.ne.s32.totalorder %s86, %s88
    %p95 = scmp.eq.s32.totalorder %s15, 1
    %p96 = por %p94, %p95
    %p97 = scmp.ne.s32.totalorder %s88, %s89
    %p98 = scmp.eq.s32.totalorder %s15, 0
    %p99 = por %p97, %p98
    %p100 = scmp.ne.s32.totalorder %s88, %s89
    %p101 = scmp.eq.s32.totalorder %s16, 1
    %p102 = por %p100, %p101
    %p104 = scmp.ne.s32.totalorder %s89, %s103
    %p105 = scmp.eq.s32.totalorder %s16, 0
    %p106 = por %p104, %p105
    %s107 = ssub.s32 %s10, %s17
    %p108 = scmp.eq.s32.totalorder %s107, 0
    %s110 = sadd.s32 %s109, 1
    %s111 = scalar_select %p108, %s109, %s110
    %p114 = pneg %p108
    %p115 = scmp.eq.s32.totalorder %s10, 1
    %p116 = por %p114, %p115
    %p117 = scmp.ne.s32.totalorder %s109, %s112
    %p118 = scmp.eq.s32.totalorder %s10, 0
    %p119 = por %p117, %p118
    %p120 = scmp.ne.s32.totalorder %s109, %s112
    %p121 = scmp.eq.s32.totalorder %s15, 1
    %p122 = por %p120, %p121
    %p123 = scmp.ne.s32.totalorder %s112, %s113
    %p124 = scmp.eq.s32.totalorder %s15, 0
    %p125 = por %p123, %p124
    %p126 = scmp.ne.s32.totalorder %s112, %s113
    %p127 = scmp.eq.s32.totalorder %s16, 1
    %p128 = por %p126, %p127
    %p130 = scmp.ne.s32.totalorder %s113, %s129
    %p131 = scmp.eq.s32.totalorder %s16, 0
    %p132 = por %p130, %p131
    %p133 = scmp.le.s32.totalorder 1, %s10
    %p134 = scmp.lt.s32.totalorder %s10, 3
    %p135 = pnand %p133, %p134
    %p136 = pneg %p135
    // Predicated region
    $region9: #{_lambda_.11} parent=5 // pred_check
      _
    $region10: #{_lambda_.11} parent=5 // pred_check_branch
      %138 = sbr.rel (%p135) target = $region12
    $region11: #{_lambda_.11} parent=5 // pred_region
      %s139 = ssub.s32 %s10, 1
      // Predicated region
      $region13: #{_lambda_.11} parent=11 // pred_check
        %p140 = pneg %p57
      $region14: #{_lambda_.11} parent=11 // pred_check_branch
        %142 = sbr.rel (%p140) target = $region16
      $region15: #{_lambda_.11} parent=11 // pred_region
        _
      $region16: #{_lambda_.11} parent=11 // pred_fallthru
        _
      // Predicated region
      $region17: #{_lambda_.11} parent=11 // pred_check
        %p143 = pneg %p78
      $region18: #{_lambda_.11} parent=11 // pred_check_branch
        %145 = sbr.rel (%p143) target = $region20
      $region19: #{_lambda_.11} parent=11 // pred_region
        _
      $region20: #{_lambda_.11} parent=11 // pred_fallthru
        _
      // Predicated region
      $region21: #{_lambda_.11} parent=11 // pred_check
        %p146 = pneg %p99
      $region22: #{_lambda_.11} parent=11 // pred_check_branch
        %148 = sbr.rel (%p146) target = $region24
      $region23: #{_lambda_.11} parent=11 // pred_region
        _
      $region24: #{_lambda_.11} parent=11 // pred_fallthru
        _
    $region12: #{_lambda_.11} parent=5 // pred_fallthru
      _
    %p149 = scmp.lt.s32.totalorder %s10, 2
    // Predicated region
    $region25: #{_lambda_.11} parent=5 // pred_check
      %p150 = pneg %p149
    $region26: #{_lambda_.11} parent=5 // pred_check_branch
      %152 = sbr.rel (%p150) target = $region28
    $region27: #{_lambda_.11} parent=5 // pred_region
      // Predicated region
      $region29: #{_lambda_.11} parent=27 // pred_check
        %p153 = pneg %p30
      $region30: #{_lambda_.11} parent=27 // pred_check_branch
        %155 = sbr.rel (%p153) target = $region32
      $region31: #{_lambda_.11} parent=27 // pred_region
        %p156 = scmp.lt.s32.totalorder %s10, 1
        %s157 = scalar_select %p156, %s10, 1
        %s158 = smul.addr %s157, 3
        %s159 = smul.addr %s158, 4
        %s160 = scalar_lea.vmem %s0, %s159
      $region32: #{_lambda_.11} parent=27 // pred_fallthru
        _
    $region28: #{_lambda_.11} parent=5 // pred_fallthru
      _
    %p161 = scmp.le.s32.totalorder 1, %s10
    %p162 = scmp.lt.s32.totalorder %s10, 3
    %p163 = pnand %p161, %p162
    %p164 = pneg %p163
    // Predicated region
    $region33: #{_lambda_.11} parent=5 // pred_check
      _
    $region34: #{_lambda_.11} parent=5 // pred_check_branch
      %166 = sbr.rel (%p163) target = $region36
    $region35: #{_lambda_.11} parent=5 // pred_region
      %s167 = ssub.s32 %s10, 1
      %p168 = scmp.lt.s32.totalorder %s15, 1
      %s169 = scalar_select %p168, %s15, 1
      %s170 = smul.addr %s169, 3
      %s171 = smul.addr %s170, 4
      %s172 = scalar_lea.vmem %s0, %s171
      %p173 = pneg %p36
      %p174 = pneg %p33
      %p175 = pneg %p57
      %p176 = pneg %p54
      %p177 = pneg %p78
      %p178 = pneg %p75
      %p179 = pneg %p99
      %p180 = pneg %p96
      %p181 = pneg %p125
      %p182 = pneg %p122
      %p183 = scmp.lt.s32.totalorder %s15, 1
      %s184 = scalar_select %p183, %s15, 1
      %s185 = smul.addr %s184, 3
      %s186 = smul.addr %s185, 4
      %s187 = scalar_lea.vmem %s4, %s186
      %p188 = scmp.lt.s32.totalorder %s15, 1
      %s189 = scalar_select %p188, %s15, 1
      %s190 = smul.addr %s189, 3
      %s191 = smul.addr %s190, 4
      %s192 = scalar_lea.vmem %s0, %s191
      %p193 = scmp.lt.s32.totalorder %s15, 1
      %s194 = scalar_select %p193, %s15, 1
      %s195 = smul.addr %s194, 3
      %s196 = smul.addr %s195, 4
      %s197 = scalar_lea.vmem %s4, %s196
      %v198 = vld [vmem:[%s192] sm:$0xff]
      %v199 = vld [vmem:[%s192 + $0x8] sm:$0xf]
      %v200 = vld [vmem:[%s1] sm:$0xf]
      %202 = vset.pattern.permute.xlu0 0
      %203 = vperm.xlu0 %202, %v200
      %v204 = vpop.permute.xlu0 %203
      %v206 = vunpack.c.l.s4 839922192
      %v207 = vunpack.c.0.s8 %v206
      %v208 = vlaneseq
      %v209 = vshrl.u32 %v208, 7
      %v210 = vsub.s32 %v207, %v209
      %v211 = vrot.slane %v204, %v210
      %v213 = vmul.f32 %v198, %v211
      %v214 = vmul.f32 %v199, %v211
      %v215 = vld [vmem:[%s2] sm:$0xf]
      %217 = vset.pattern.permute.xlu0 0
      %218 = vperm.xlu0 %217, %v215
      %v219 = vpop.permute.xlu0 %218
      %v221 = vunpack.c.l.s4 839922192
      %v222 = vunpack.c.0.s8 %v221
      %v223 = vlaneseq
      %v224 = vshrl.u32 %v223, 7
      %v225 = vsub.s32 %v222, %v224
      %v226 = vrot.slane %v219, %v225
      %v228 = vadd.f32 %v213, %v226
      %v229 = vadd.f32 %v214, %v226
      %v230 = vmax.f32 %v228, 0.0
      %v231 = vmax.f32 %v229, 0.0
      %v232 = vld [vmem:[%s3] sm:$0x7]
      %v234 = vlaneseq
      %v235 = vshrl.u32 %v234, 7
      %v236 = vsub.s32 0, %v235
      %v237 = vrot.slane %v232, %v236
      %v238 = vlaneseq
      %v239 = vshrl.u32 %v238, 7
      %v240 = vsub.s32 1, %v239
      %v241 = vrot.slane %v232, %v240
      %v242 = vlaneseq
      %v243 = vshrl.u32 %v242, 7
      %v244 = vsub.s32 2, %v243
      %v245 = vrot.slane %v232, %v244
      %v247 = vcombine.low %v237, %v241
      %v249 = vmul.f32 %v230, %v247
      %v250 = vmul.f32 %v231, %v245
      %251 = vst [vmem:[%s197] sm:$0xff] %v249
      %vm252 = vcmask 551936
      %253 = vst.msk [vmem:[%s197 + $0x8] sm:$0xf] %vm252, %v250
      %p254 = scmp.lt.s32.totalorder %s15, 1
      %s255 = scalar_select %p254, %s15, 1
      %s256 = smul.addr %s255, 3
      %s257 = smul.addr %s256, 4
      %s258 = scalar_lea.vmem %s4, %s257
      // Predicated region
      $region37: #{_lambda_.11} parent=35 // pred_check
        %p259 = pneg %p122
      $region38: #{_lambda_.11} parent=35 // pred_check_branch
        %261 = sbr.rel (%p259) target = $region40
      $region39: #{_lambda_.11} parent=35 // pred_region
        _
      $region40: #{_lambda_.11} parent=35 // pred_fallthru
        _
    $region36: #{_lambda_.11} parent=5 // pred_fallthru
      _
    %p262 = scmp.le.s32.totalorder 2, %s10
    // Predicated region
    $region41: #{_lambda_.11} parent=5 // pred_check
      %p263 = pneg %p262
    $region42: #{_lambda_.11} parent=5 // pred_check_branch
      %265 = sbr.rel (%p263) target = $region44
    $region43: #{_lambda_.11} parent=5 // pred_region
      %s266 = ssub.s32 %s10, 2
      // Predicated region
      $region45: #{_lambda_.11} parent=43 // pred_check
        %p267 = pneg %p128
      $region46: #{_lambda_.11} parent=43 // pred_check_branch
        %269 = sbr.rel (%p267) target = $region48
      $region47: #{_lambda_.11} parent=43 // pred_region
        %p270 = scmp.lt.s32.totalorder %s16, 1
        %s271 = scalar_select %p270, %s16, 1
        %s272 = smul.addr %s271, 3
        %s273 = smul.addr %s272, 4
        %s274 = scalar_lea.vmem %s4, %s273
      $region48: #{_lambda_.11} parent=43 // pred_fallthru
        _
    $region44: #{_lambda_.11} parent=5 // pred_fallthru
      _
  $region6: #{_lambda_.11} parent=0 // loop_footer
    %s14 = sadd.s32 1, %s10
  $region7: #{_lambda_.11} parent=0 // loop_footer_branch
    %9 = sbr.rel target = $region3
  $region8: #{_lambda_.11} parent=0 // loop_exit
    _

// kernel: _lambda_.10
$region0: #{_lambda_.10}
  #allocation0 [shape = 'u32[]', space=smem, size = 0x4, offset = 0x4, fixed_abs, tag = 'smem constant byte address 0x4 - core index']
  #allocation1 [shape = 'u32[144,128]{1,0:T(1,128)}', space=vmem, size = 0x12000, scoped, tag = 'internal scratch']
  %s0 = inlined_call_operand.vmem [shape: f32[2,8,362], index: 0, kind: input, shape index: {}]
  %s1 = inlined_call_operand.vmem [shape: f32[9,4,8], index: 1, kind: input, shape index: {}]
  %s2 = inlined_call_operand.vmem [shape: f32[1,324], index: 2, kind: input, shape index: {}]
  %s3 = inlined_call_operand.vmem [shape: f32[2,4,324], index: 3, kind: output, shape index: {0}]
  %s4 = inlined_call_operand.vmem [shape: f32[4,1], index: 4, kind: output, shape index: {1}]
  %s5 = inlined_call_operand.vmem [shape: f32[4,1], index: 5, kind: output, shape index: {2}]
  %6 = xla_tuple %s3, %s4, %s5
  %s7 = sld [smem:[#allocation0]]
  $region65: #{_lambda_.10} parent=0
    _
  %s9 = ssub.s32 1, %s7
  %s10 = scalar_select 0, %s9, %s7
  loop: start=0, step=1, limit=4
  $region2: #{_lambda_.10} parent=0 // loop_pre_header
    _
  $region3: #{_lambda_.10} parent=0 // loop_header
    %s12 = sphi 0, %s16
    %p13 = scmp.ge.s32.totalorder %s12, 4
    %s22 = sphi 0, %s24
    %s25 = sphi 0, %s22
    %s26 = sphi 0, %s25
    %s42 = sphi 0, %s26
    %s46 = sphi 0, %s46
    %s48 = sphi 0, %s46
    %s49 = sphi 0, %s48
    %s63 = sphi 0, %s49
    %s67 = sphi 0, %s67
    %s69 = sphi 0, %s67
    %s70 = sphi 0, %s69
    %s84 = sphi 0, %s70
    %s90 = sphi 0, %s92
    %s93 = sphi 0, %s90
    %s94 = sphi 0, %s93
    %s110 = sphi 0, %s94
    %s114 = sphi 0, %s114
    %s116 = sphi 0, %s114
    %s117 = sphi 0, %s116
    %s131 = sphi 0, %s117
    %s135 = sphi 0, %s135
    %s137 = sphi 0, %s135
    %s138 = sphi 0, %s137
    %s152 = sphi 0, %s138
  $region4: #{_lambda_.10} parent=0 // loop_header_branch
    %15 = sbr.rel (%p13) target = $region8
  $region5: #{_lambda_.10} parent=0 // loop_body
    %s17 = ssub.s32 %s12, 1
    %s18 = ssub.s32 %s12, 2
    %s19 = sadd.s32 %s12, 1
    %s20 = ssub.s32 %s12, %s19
    %p21 = scmp.eq.s32.totalorder %s20, 0
    %s23 = sadd.s32 %s22, 1
    %s24 = scalar_select %p21, %s22, %s23
    %p27 = pneg %p21
    %p28 = scmp.eq.s32.totalorder %s12, 1
    %p29 = por %p27, %p28
    %p30 = scmp.ne.s32.totalorder %s22, %s25
    %p31 = scmp.eq.s32.totalorder %s12, 0
    %p32 = por %p30, %p31
    %p33 = scmp.ne.s32.totalorder %s22, %s25
    %p34 = scmp.eq.s32.totalorder %s17, 1
    %p35 = por %p33, %p34
    %p36 = scmp.ne.s32.totalorder %s25, %s26
    %p37 = scmp.eq.s32.totalorder %s17, 0
    %p38 = por %p36, %p37
    %p39 = scmp.ne.s32.totalorder %s25, %s26
    %p40 = scmp.eq.s32.totalorder %s18, 1
    %p41 = por %p39, %p40
    %p43 = scmp.ne.s32.totalorder %s26, %s42
    %p44 = scmp.eq.s32.totalorder %s18, 0
    %p45 = por %p43, %p44
    %s47 = sadd.s32 %s46, 1
    %p50 = scmp.eq.s32.totalorder %s12, 1
    %p51 = scmp.ne.s32.totalorder %s46, %s48
    %p52 = scmp.eq.s32.totalorder %s12, 0
    %p53 = por %p51, %p52
    %p54 = scmp.ne.s32.totalorder %s46, %s48
    %p55 = scmp.eq.s32.totalorder %s17, 1
    %p56 = por %p54, %p55
    %p57 = scmp.ne.s32.totalorder %s48, %s49
    %p58 = scmp.eq.s32.totalorder %s17, 0
    %p59 = por %p57, %p58
    %p60 = scmp.ne.s32.totalorder %s48, %s49
    %p61 = scmp.eq.s32.totalorder %s18, 1
    %p62 = por %p60, %p61
    %p64 = scmp.ne.s32.totalorder %s49, %s63
    %p65 = scmp.eq.s32.totalorder %s18, 0
    %p66 = por %p64, %p65
    %s68 = sadd.s32 %s67, 1
    %p71 = scmp.eq.s32.totalorder %s12, 1
    %p72 = scmp.ne.s32.totalorder %s67, %s69
    %p73 = scmp.eq.s32.totalorder %s12, 0
    %p74 = por %p72, %p73
    %p75 = scmp.ne.s32.totalorder %s67, %s69
    %p76 = scmp.eq.s32.totalorder %s17, 1
    %p77 = por %p75, %p76
    %p78 = scmp.ne.s32.totalorder %s69, %s70
    %p79 = scmp.eq.s32.totalorder %s17, 0
    %p80 = por %p78, %p79
    %p81 = scmp.ne.s32.totalorder %s69, %s70
    %p82 = scmp.eq.s32.totalorder %s18, 1
    %p83 = por %p81, %p82
    %p85 = scmp.ne.s32.totalorder %s70, %s84
    %p86 = scmp.eq.s32.totalorder %s18, 0
    %p87 = por %p85, %p86
    %s88 = ssub.s32 %s12, %s19
    %p89 = scmp.eq.s32.totalorder %s88, 0
    %s91 = sadd.s32 %s90, 1
    %s92 = scalar_select %p89, %s90, %s91
    %p95 = pneg %p89
    %p96 = scmp.eq.s32.totalorder %s12, 1
    %p97 = por %p95, %p96
    %p98 = scmp.ne.s32.totalorder %s90, %s93
    %p99 = scmp.eq.s32.totalorder %s12, 0
    %p100 = por %p98, %p99
    %p101 = scmp.ne.s32.totalorder %s90, %s93
    %p102 = scmp.eq.s32.totalorder %s17, 1
    %p103 = por %p101, %p102
    %p104 = scmp.ne.s32.totalorder %s93, %s94
    %p105 = scmp.eq.s32.totalorder %s17, 0
    %p106 = por %p104, %p105
    %p107 = scmp.ne.s32.totalorder %s93, %s94
    %p108 = scmp.eq.s32.totalorder %s18, 1
    %p109 = por %p107, %p108
    %p111 = scmp.ne.s32.totalorder %s94, %s110
    %p112 = scmp.eq.s32.totalorder %s18, 0
    %p113 = por %p111, %p112
    %s115 = sadd.s32 %s114, 1
    %p118 = scmp.eq.s32.totalorder %s12, 1
    %p119 = scmp.ne.s32.totalorder %s114, %s116
    %p120 = scmp.eq.s32.totalorder %s12, 0
    %p121 = por %p119, %p120
    %p122 = scmp.ne.s32.totalorder %s114, %s116
    %p123 = scmp.eq.s32.totalorder %s17, 1
    %p124 = por %p122, %p123
    %p125 = scmp.ne.s32.totalorder %s116, %s117
    %p126 = scmp.eq.s32.totalorder %s17, 0
    %p127 = por %p125, %p126
    %p128 = scmp.ne.s32.totalorder %s116, %s117
    %p129 = scmp.eq.s32.totalorder %s18, 1
    %p130 = por %p128, %p129
    %p132 = scmp.ne.s32.totalorder %s117, %s131
    %p133 = scmp.eq.s32.totalorder %s18, 0
    %p134 = por %p132, %p133
    %s136 = sadd.s32 %s135, 1
    %p139 = scmp.eq.s32.totalorder %s12, 1
    %p140 = scmp.ne.s32.totalorder %s135, %s137
    %p141 = scmp.eq.s32.totalorder %s12, 0
    %p142 = por %p140, %p141
    %p143 = scmp.ne.s32.totalorder %s135, %s137
    %p144 = scmp.eq.s32.totalorder %s17, 1
    %p145 = por %p143, %p144
    %p146 = scmp.ne.s32.totalorder %s137, %s138
    %p147 = scmp.eq.s32.totalorder %s17, 0
    %p148 = por %p146, %p147
    %p149 = scmp.ne.s32.totalorder %s137, %s138
    %p150 = scmp.eq.s32.totalorder %s18, 1
    %p151 = por %p149, %p150
    %p153 = scmp.ne.s32.totalorder %s138, %s152
    %p154 = scmp.eq.s32.totalorder %s18, 0
    %p155 = por %p153, %p154
    %p156 = scmp.le.s32.totalorder 1, %s12
    %p157 = scmp.lt.s32.totalorder %s12, 3
    %p158 = pnand %p156, %p157
    %p159 = pneg %p158
    // Predicated region
    $region9: #{_lambda_.10} parent=5 // pred_check
      _
    $region10: #{_lambda_.10} parent=5 // pred_check_branch
      %161 = sbr.rel (%p158) target = $region12
    $region11: #{_lambda_.10} parent=5 // pred_region
      %s162 = ssub.s32 %s12, 1
      // Predicated region
      $region13: #{_lambda_.10} parent=11 // pred_check
        %p163 = pneg %p59
      $region14: #{_lambda_.10} parent=11 // pred_check_branch
        %165 = sbr.rel (%p163) target = $region16
      $region15: #{_lambda_.10} parent=11 // pred_region
        _
      $region16: #{_lambda_.10} parent=11 // pred_fallthru
        _
      // Predicated region
      $region17: #{_lambda_.10} parent=11 // pred_check
        %p166 = pneg %p80
      $region18: #{_lambda_.10} parent=11 // pred_check_branch
        %168 = sbr.rel (%p166) target = $region20
      $region19: #{_lambda_.10} parent=11 // pred_region
        _
      $region20: #{_lambda_.10} parent=11 // pred_fallthru
        _
    $region12: #{_lambda_.10} parent=5 // pred_fallthru
      _
    %p169 = scmp.lt.s32.totalorder %s12, 2
    // Predicated region
    $region21: #{_lambda_.10} parent=5 // pred_check
      %p170 = pneg %p169
    $region22: #{_lambda_.10} parent=5 // pred_check_branch
      %172 = sbr.rel (%p170) target = $region24
    $region23: #{_lambda_.10} parent=5 // pred_region
      // Predicated region
      $region25: #{_lambda_.10} parent=23 // pred_check
        %p173 = pneg %p32
      $region26: #{_lambda_.10} parent=23 // pred_check_branch
        %175 = sbr.rel (%p173) target = $region28
      $region27: #{_lambda_.10} parent=23 // pred_region
        %p176 = scmp.lt.s32.totalorder %s12, 1
        %s177 = scalar_select %p176, %s12, 1
        %s178 = smul.addr %s177, 3
        %s179 = smul.addr %s178, 8
        %s180 = scalar_lea.vmem %s0, %s179
      $region28: #{_lambda_.10} parent=23 // pred_fallthru
        _
    $region24: #{_lambda_.10} parent=5 // pred_fallthru
      _
    %p181 = scmp.le.s32.totalorder 1, %s12
    %p182 = scmp.lt.s32.totalorder %s12, 3
    %p183 = pnand %p181, %p182
    %p184 = pneg %p183
    // Predicated region
    $region29: #{_lambda_.10} parent=5 // pred_check
      _
    $region30: #{_lambda_.10} parent=5 // pred_check_branch
      %186 = sbr.rel (%p183) target = $region32
    $region31: #{_lambda_.10} parent=5 // pred_region
      %s187 = ssub.s32 %s12, 1
      %p188 = scmp.lt.s32.totalorder %s17, 1
      %s189 = scalar_select %p188, %s17, 1
      %s190 = smul.addr %s189, 3
      %s191 = smul.addr %s190, 8
      %s192 = scalar_lea.vmem %s0, %s191
      %p193 = pneg %p38
      %p194 = pneg %p35
      %p195 = pneg %p59
      %p196 = pneg %p56
      %p197 = pneg %p80
      %p198 = pneg %p77
      %p199 = pneg %p106
      %p200 = pneg %p103
      %p201 = scmp.lt.s32.totalorder %s17, 1
      %s202 = scalar_select %p201, %s17, 1
      %s203 = smul.addr %s202, 3
      %s204 = smul.addr %s203, 4
      %s205 = scalar_lea.vmem %s3, %s204
      %p206 = pneg %p127
      %p207 = pneg %p124
      %p208 = pneg %p148
      %p209 = pneg %p145
      %p210 = scmp.lt.s32.totalorder %s17, 1
      %s211 = scalar_select %p210, %s17, 1
      %s212 = smul.addr %s211, 3
      %s213 = smul.addr %s212, 8
      %s214 = scalar_lea.vmem %s0, %s213
      %p215 = scmp.lt.s32.totalorder %s17, 1
      %s216 = scalar_select %p215, %s17, 1
      %s217 = smul.addr %s216, 3
      %s218 = smul.addr %s217, 4
      %s219 = scalar_lea.vmem %s3, %s218
      %v220 = vld [vmem:[%s214] sm:$0xff]
      %v221 = vld [vmem:[%s214 + $0x8] sm:$0xff]
      %v222 = vld [vmem:[%s214 + $0x10] sm:$0xff]
      %v223 = vld [vmem:[%s1] sm:$0xf]
      %s224 = scalar_lea.vmem %s1, 4
      %v225 = vld [vmem:[%s224] sm:$0xf]
      %229 = vrot.lane.b32.xlu0 %v220, 127
      %v230 = vpop.permute.xlu0 %229
      %231 = vrot.lane.b32.xlu0 %v221, 127
      %v232 = vpop.permute.xlu0 %231
      %233 = vrot.lane.b32.xlu0 %v222, 127
      %v234 = vpop.permute.xlu0 %233
      %vm235 = vcmask 1039360
      %v236 = vsel %vm235, %v230, %v232
      %v237 = vsel %vm235, %v232, %v234
      %vm241 = vcmask 64512
      %v243 = vsel %vm241, %v225, 0
      %245 = vmatprep.subr.mxu0 %v237
      %246 = vmatpush1.msra.mxu0 %v236
      %247 = vmatprep.subr.mxu0 0.0
      %248 = vmatpush1.msra.mxu0 0.0
      %249 = vmatprep.subr.mxu0 0.0
      %250 = vmatpush1.msra.mxu0 0.0
      %251 = vmatprep.subr.mxu0 0.0
      %252 = vmatpush1.msra.mxu0 0.0
      %253 = vmatprep.subr.mxu0 0.0
      %254 = vmatpush1.msra.mxu0 0.0
      %255 = vmatprep.subr.mxu0 0.0
      %256 = vmatpush1.msra.mxu0 0.0
      %257 = vmatprep.subr.mxu0 0.0
      %258 = vmatpush1.msra.mxu0 0.0
      %259 = vmatprep.subr.mxu0 0.0
      %260 = vmatpush1.msra.mxu0 0.0
      %261 = vmatprep.subr.mxu0 0.0
      %262 = vmatpush1.msra.mxu0 0.0
      %263 = vmatprep.subr.mxu0 0.0
      %264 = vmatpush1.msra.mxu0 0.0
      %265 = vmatprep.subr.mxu0 0.0
      %266 = vmatpush1.msra.mxu0 0.0
      %267 = vmatprep.subr.mxu0 0.0
      %268 = vmatpush1.msra.mxu0 0.0
      %269 = vmatprep.subr.mxu0 0.0
      %270 = vmatpush1.msra.mxu0 0.0
      %271 = vmatprep.subr.mxu0 0.0
      %272 = vmatpush1.msra.mxu0 0.0
      %273 = vmatprep.subr.mxu0 0.0
      %274 = vmatpush1.msra.mxu0 0.0
      %275 = vmatprep.subr.mxu0 0.0
      %276 = vmatpush1.msra.mxu0 0.0
      %277 = vmatprep.subr.mxu0 0.0
      %278 = vmatpush1.msra.mxu0 0.0
      %279 = vmatprep.subr.mxu0 0.0
      %280 = vmatpush1.msra.mxu0 0.0
      %281 = vmatprep.subr.mxu0 0.0
      %282 = vmatpush1.msra.mxu0 0.0
      %283 = vmatprep.subr.mxu0 0.0
      %284 = vmatpush1.msra.mxu0 0.0
      %285 = vmatprep.subr.mxu0 0.0
      %286 = vmatpush1.msra.mxu0 0.0
      %287 = vmatprep.subr.mxu0 0.0
      %288 = vmatpush1.msra.mxu0 0.0
      %289 = vmatprep.subr.mxu0 0.0
      %290 = vmatpush1.msra.mxu0 0.0
      %291 = vmatprep.subr.mxu0 0.0
      %292 = vmatpush1.msra.mxu0 0.0
      %293 = vmatprep.subr.mxu0 0.0
      %294 = vmatpush1.msra.mxu0 0.0
      %295 = vmatprep.subr.mxu0 0.0
      %296 = vmatpush1.msra.mxu0 0.0
      %297 = vmatprep.subr.mxu0 0.0
      %298 = vmatpush1.msra.mxu0 0.0
      %299 = vmatprep.subr.mxu0 0.0
      %300 = vmatpush1.msra.mxu0 0.0
      %301 = vmatprep.subr.mxu0 0.0
      %302 = vmatpush1.msra.mxu0 0.0
      %303 = vmatprep.subr.mxu0 0.0
      %304 = vmatpush1.msra.mxu0 0.0
      %305 = vmatprep.subr.mxu0 0.0
      %306 = vmatpush1.msra.mxu0 0.0
      %307 = vmatprep.subr.mxu0 0.0
      %308 = vmatpush1.msra.mxu0 0.0
      %309 = vmatprep.mubr.f32.mxu0 0.0
      %310 = vmatmul.mubr.f32.gmra.mrb[0].mxu0 %v243
      %v311 = vpop.f32.mrb[0].mxu0
      %v312 = vadd.f32 0.0, %v311
      %v313 = vpop.f32.mrb[0].mxu0
      %v314 = vadd.f32 0.0, %v313
      %315 = vdwg.mxu0
      %316 = vmatprep.subr.mxu0 0.0
      %317 = vmatpush1.msra.mxu0 %v234
      %318 = vmatprep.subr.mxu0 0.0
      %319 = vmatpush1.msra.mxu0 0.0
      %320 = vmatprep.subr.mxu0 0.0
      %321 = vmatpush1.msra.mxu0 0.0
      %322 = vmatprep.subr.mxu0 0.0
      %323 = vmatpush1.msra.mxu0 0.0
      %324 = vmatprep.subr.mxu0 0.0
      %325 = vmatpush1.msra.mxu0 0.0
      %326 = vmatprep.subr.mxu0 0.0
      %327 = vmatpush1.msra.mxu0 0.0
      %328 = vmatprep.subr.mxu0 0.0
      %329 = vmatpush1.msra.mxu0 0.0
      %330 = vmatprep.subr.mxu0 0.0
      %331 = vmatpush1.msra.mxu0 0.0
      %332 = vmatprep.subr.mxu0 0.0
      %333 = vmatpush1.msra.mxu0 0.0
      %334 = vmatprep.subr.mxu0 0.0
      %335 = vmatpush1.msra.mxu0 0.0
      %336 = vmatprep.subr.mxu0 0.0
      %337 = vmatpush1.msra.mxu0 0.0
      %338 = vmatprep.subr.mxu0 0.0
      %339 = vmatpush1.msra.mxu0 0.0
      %340 = vmatprep.subr.mxu0 0.0
      %341 = vmatpush1.msra.mxu0 0.0
      %342 = vmatprep.subr.mxu0 0.0
      %343 = vmatpush1.msra.mxu0 0.0
      %344 = vmatprep.subr.mxu0 0.0
      %345 = vmatpush1.msra.mxu0 0.0
      %346 = vmatprep.subr.mxu0 0.0
      %347 = vmatpush1.msra.mxu0 0.0
      %348 = vmatprep.subr.mxu0 0.0
      %349 = vmatpush1.msra.mxu0 0.0
      %350 = vmatprep.subr.mxu0 0.0
      %351 = vmatpush1.msra.mxu0 0.0
      %352 = vmatprep.subr.mxu0 0.0
      %353 = vmatpush1.msra.mxu0 0.0
      %354 = vmatprep.subr.mxu0 0.0
      %355 = vmatpush1.msra.mxu0 0.0
      %356 = vmatprep.subr.mxu0 0.0
      %357 = vmatpush1.msra.mxu0 0.0
      %358 = vmatprep.subr.mxu0 0.0
      %359 = vmatpush1.msra.mxu0 0.0
      %360 = vmatprep.subr.mxu0 0.0
      %361 = vmatpush1.msra.mxu0 0.0
      %362 = vmatprep.subr.mxu0 0.0
      %363 = vmatpush1.msra.mxu0 0.0
      %364 = vmatprep.subr.mxu0 0.0
      %365 = vmatpush1.msra.mxu0 0.0
      %366 = vmatprep.subr.mxu0 0.0
      %367 = vmatpush1.msra.mxu0 0.0
      %368 = vmatprep.subr.mxu0 0.0
      %369 = vmatpush1.msra.mxu0 0.0
      %370 = vmatprep.subr.mxu0 0.0
      %371 = vmatpush1.msra.mxu0 0.0
      %372 = vmatprep.subr.mxu0 0.0
      %373 = vmatpush1.msra.mxu0 0.0
      %374 = vmatprep.subr.mxu0 0.0
      %375 = vmatpush1.msra.mxu0 0.0
      %376 = vmatprep.subr.mxu0 0.0
      %377 = vmatpush1.msra.mxu0 0.0
      %378 = vmatprep.subr.mxu0 0.0
      %379 = vmatpush1.msra.mxu0 0.0
      %380 = vmatprep.mubr.f32.mxu0 0.0
      %381 = vmatmul.mubr.f32.gmra.mrb[0].mxu0 %v243
      %v382 = vpop.f32.mrb[0].mxu0
      %v383 = vadd.f32 0.0, %v382
      %v384 = vpop.f32.mrb[0].mxu0
      %385 = vdwg.mxu0
      %v387 = vsel %vm241, %v223, 0
      %389 = vmatprep.subr.mxu0 %v221
      %390 = vmatpush1.msra.mxu0 %v220
      %391 = vmatprep.subr.mxu0 0.0
      %392 = vmatpush1.msra.mxu0 0.0
      %393 = vmatprep.subr.mxu0 0.0
      %394 = vmatpush1.msra.mxu0 0.0
      %395 = vmatprep.subr.mxu0 0.0
      %396 = vmatpush1.msra.mxu0 0.0
      %397 = vmatprep.subr.mxu0 0.0
      %398 = vmatpush1.msra.mxu0 0.0
      %399 = vmatprep.subr.mxu0 0.0
      %400 = vmatpush1.msra.mxu0 0.0
      %401 = vmatprep.subr.mxu0 0.0
      %402 = vmatpush1.msra.mxu0 0.0
      %403 = vmatprep.subr.mxu0 0.0
      %404 = vmatpush1.msra.mxu0 0.0
      %405 = vmatprep.subr.mxu0 0.0
      %406 = vmatpush1.msra.mxu0 0.0
      %407 = vmatprep.subr.mxu0 0.0
      %408 = vmatpush1.msra.mxu0 0.0
      %409 = vmatprep.subr.mxu0 0.0
      %410 = vmatpush1.msra.mxu0 0.0
      %411 = vmatprep.subr.mxu0 0.0
      %412 = vmatpush1.msra.mxu0 0.0
      %413 = vmatprep.subr.mxu0 0.0
      %414 = vmatpush1.msra.mxu0 0.0
      %415 = vmatprep.subr.mxu0 0.0
      %416 = vmatpush1.msra.mxu0 0.0
      %417 = vmatprep.subr.mxu0 0.0
      %418 = vmatpush1.msra.mxu0 0.0
      %419 = vmatprep.subr.mxu0 0.0
      %420 = vmatpush1.msra.mxu0 0.0
      %421 = vmatprep.subr.mxu0 0.0
      %422 = vmatpush1.msra.mxu0 0.0
      %423 = vmatprep.subr.mxu0 0.0
      %424 = vmatpush1.msra.mxu0 0.0
      %425 = vmatprep.subr.mxu0 0.0
      %426 = vmatpush1.msra.mxu0 0.0
      %427 = vmatprep.subr.mxu0 0.0
      %428 = vmatpush1.msra.mxu0 0.0
      %429 = vmatprep.subr.mxu0 0.0
      %430 = vmatpush1.msra.mxu0 0.0
      %431 = vmatprep.subr.mxu0 0.0
      %432 = vmatpush1.msra.mxu0 0.0
      %433 = vmatprep.subr.mxu0 0.0
      %434 = vmatpush1.msra.mxu0 0.0
      %435 = vmatprep.subr.mxu0 0.0
      %436 = vmatpush1.msra.mxu0 0.0
      %437 = vmatprep.subr.mxu0 0.0
      %438 = vmatpush1.msra.mxu0 0.0
      %439 = vmatprep.subr.mxu0 0.0
      %440 = vmatpush1.msra.mxu0 0.0
      %441 = vmatprep.subr.mxu0 0.0
      %442 = vmatpush1.msra.mxu0 0.0
      %443 = vmatprep.subr.mxu0 0.0
      %444 = vmatpush1.msra.mxu0 0.0
      %445 = vmatprep.subr.mxu0 0.0
      %446 = vmatpush1.msra.mxu0 0.0
      %447 = vmatprep.subr.mxu0 0.0
      %448 = vmatpush1.msra.mxu0 0.0
      %449 = vmatprep.subr.mxu0 0.0
      %450 = vmatpush1.msra.mxu0 0.0
      %451 = vmatprep.subr.mxu0 0.0
      %452 = vmatpush1.msra.mxu0 0.0
      %453 = vmatprep.mubr.f32.mxu0 0.0
      %454 = vmatmul.mubr.f32.gmra.mrb[0].mxu0 %v387
      %v455 = vpop.f32.mrb[0].mxu0
      %v456 = vadd.f32 %v312, %v455
      %v457 = vpop.f32.mrb[0].mxu0
      %v458 = vadd.f32 %v314, %v457
      %459 = vdwg.mxu0
      %460 = vmatprep.subr.mxu0 0.0
      %461 = vmatpush1.msra.mxu0 %v222
      %462 = vmatprep.subr.mxu0 0.0
      %463 = vmatpush1.msra.mxu0 0.0
      %464 = vmatprep.subr.mxu0 0.0
      %465 = vmatpush1.msra.mxu0 0.0
      %466 = vmatprep.subr.mxu0 0.0
      %467 = vmatpush1.msra.mxu0 0.0
      %468 = vmatprep.subr.mxu0 0.0
      %469 = vmatpush1.msra.mxu0 0.0
      %470 = vmatprep.subr.mxu0 0.0
      %471 = vmatpush1.msra.mxu0 0.0
      %472 = vmatprep.subr.mxu0 0.0
      %473 = vmatpush1.msra.mxu0 0.0
      %474 = vmatprep.subr.mxu0 0.0
      %475 = vmatpush1.msra.mxu0 0.0
      %476 = vmatprep.subr.mxu0 0.0
      %477 = vmatpush1.msra.mxu0 0.0
      %478 = vmatprep.subr.mxu0 0.0
      %479 = vmatpush1.msra.mxu0 0.0
      %480 = vmatprep.subr.mxu0 0.0
      %481 = vmatpush1.msra.mxu0 0.0
      %482 = vmatprep.subr.mxu0 0.0
      %483 = vmatpush1.msra.mxu0 0.0
      %484 = vmatprep.subr.mxu0 0.0
      %485 = vmatpush1.msra.mxu0 0.0
      %486 = vmatprep.subr.mxu0 0.0
      %487 = vmatpush1.msra.mxu0 0.0
      %488 = vmatprep.subr.mxu0 0.0
      %489 = vmatpush1.msra.mxu0 0.0
      %490 = vmatprep.subr.mxu0 0.0
      %491 = vmatpush1.msra.mxu0 0.0
      %492 = vmatprep.subr.mxu0 0.0
      %493 = vmatpush1.msra.mxu0 0.0
      %494 = vmatprep.subr.mxu0 0.0
      %495 = vmatpush1.msra.mxu0 0.0
      %496 = vmatprep.subr.mxu0 0.0
      %497 = vmatpush1.msra.mxu0 0.0
      %498 = vmatprep.subr.mxu0 0.0
      %499 = vmatpush1.msra.mxu0 0.0
      %500 = vmatprep.subr.mxu0 0.0
      %501 = vmatpush1.msra.mxu0 0.0
      %502 = vmatprep.subr.mxu0 0.0
      %503 = vmatpush1.msra.mxu0 0.0
      %504 = vmatprep.subr.mxu0 0.0
      %505 = vmatpush1.msra.mxu0 0.0
      %506 = vmatprep.subr.mxu0 0.0
      %507 = vmatpush1.msra.mxu0 0.0
      %508 = vmatprep.subr.mxu0 0.0
      %509 = vmatpush1.msra.mxu0 0.0
      %510 = vmatprep.subr.mxu0 0.0
      %511 = vmatpush1.msra.mxu0 0.0
      %512 = vmatprep.subr.mxu0 0.0
      %513 = vmatpush1.msra.mxu0 0.0
      %514 = vmatprep.subr.mxu0 0.0
      %515 = vmatpush1.msra.mxu0 0.0
      %516 = vmatprep.subr.mxu0 0.0
      %517 = vmatpush1.msra.mxu0 0.0
      %518 = vmatprep.subr.mxu0 0.0
      %519 = vmatpush1.msra.mxu0 0.0
      %520 = vmatprep.subr.mxu0 0.0
      %521 = vmatpush1.msra.mxu0 0.0
      %522 = vmatprep.subr.mxu0 0.0
      %523 = vmatpush1.msra.mxu0 0.0
      %524 = vmatprep.mubr.f32.mxu0 0.0
      %525 = vmatmul.mubr.f32.gmra.mrb[0].mxu0 %v387
      %v526 = vpop.f32.mrb[0].mxu0
      %v527 = vadd.f32 %v383, %v526
      %v528 = vpop.f32.mrb[0].mxu0
      %529 = vdwg.mxu0
      %s530 = scalar_lea.vmem %s1, 8
      %v531 = vld [vmem:[%s530] sm:$0xf]
      %532 = vrot.lane.b32.xlu0 %v220, 126
      %v533 = vpop.permute.xlu0 %532
      %534 = vrot.lane.b32.xlu0 %v221, 126
      %v535 = vpop.permute.xlu0 %534
      %536 = vrot.lane.b32.xlu0 %v222, 126
      %v537 = vpop.permute.xlu0 %536
      %vm538 = vcmask 1031168
      %v539 = vsel %vm538, %v533, %v535
      %v540 = vsel %vm538, %v535, %v537
      %v545 = vsel %vm241, %v531, 0
      %547 = vmatprep.subr.mxu0 %v540
      %548 = vmatpush1.msra.mxu0 %v539
      %549 = vmatprep.subr.mxu0 0.0
      %550 = vmatpush1.msra.mxu0 0.0
      %551 = vmatprep.subr.mxu0 0.0
      %552 = vmatpush1.msra.mxu0 0.0
      %553 = vmatprep.subr.mxu0 0.0
      %554 = vmatpush1.msra.mxu0 0.0
      %555 = vmatprep.subr.mxu0 0.0
      %556 = vmatpush1.msra.mxu0 0.0
      %557 = vmatprep.subr.mxu0 0.0
      %558 = vmatpush1.msra.mxu0 0.0
      %559 = vmatprep.subr.mxu0 0.0
      %560 = vmatpush1.msra.mxu0 0.0
      %561 = vmatprep.subr.mxu0 0.0
      %562 = vmatpush1.msra.mxu0 0.0
      %563 = vmatprep.subr.mxu0 0.0
      %564 = vmatpush1.msra.mxu0 0.0
      %565 = vmatprep.subr.mxu0 0.0
      %566 = vmatpush1.msra.mxu0 0.0
      %567 = vmatprep.subr.mxu0 0.0
      %568 = vmatpush1.msra.mxu0 0.0
      %569 = vmatprep.subr.mxu0 0.0
      %570 = vmatpush1.msra.mxu0 0.0
      %571 = vmatprep.subr.mxu0 0.0
      %572 = vmatpush1.msra.mxu0 0.0
      %573 = vmatprep.subr.mxu0 0.0
      %574 = vmatpush1.msra.mxu0 0.0
      %575 = vmatprep.subr.mxu0 0.0
      %576 = vmatpush1.msra.mxu0 0.0
      %577 = vmatprep.subr.mxu0 0.0
      %578 = vmatpush1.msra.mxu0 0.0
      %579 = vmatprep.subr.mxu0 0.0
      %580 = vmatpush1.msra.mxu0 0.0
      %581 = vmatprep.subr.mxu0 0.0
      %582 = vmatpush1.msra.mxu0 0.0
      %583 = vmatprep.subr.mxu0 0.0
      %584 = vmatpush1.msra.mxu0 0.0
      %585 = vmatprep.subr.mxu0 0.0
      %586 = vmatpush1.msra.mxu0 0.0
      %587 = vmatprep.subr.mxu0 0.0
      %588 = vmatpush1.msra.mxu0 0.0
      %589 = vmatprep.subr.mxu0 0.0
      %590 = vmatpush1.msra.mxu0 0.0
      %591 = vmatprep.subr.mxu0 0.0
      %592 = vmatpush1.msra.mxu0 0.0
      %593 = vmatprep.subr.mxu0 0.0
      %594 = vmatpush1.msra.mxu0 0.0
      %595 = vmatprep.subr.mxu0 0.0
      %596 = vmatpush1.msra.mxu0 0.0
      %597 = vmatprep.subr.mxu0 0.0
      %598 = vmatpush1.msra.mxu0 0.0
      %599 = vmatprep.subr.mxu0 0.0
      %600 = vmatpush1.msra.mxu0 0.0
      %601 = vmatprep.subr.mxu0 0.0
      %602 = vmatpush1.msra.mxu0 0.0
      %603 = vmatprep.subr.mxu0 0.0
      %604 = vmatpush1.msra.mxu0 0.0
      %605 = vmatprep.subr.mxu0 0.0
      %606 = vmatpush1.msra.mxu0 0.0
      %607 = vmatprep.subr.mxu0 0.0
      %608 = vmatpush1.msra.mxu0 0.0
      %609 = vmatprep.subr.mxu0 0.0
      %610 = vmatpush1.msra.mxu0 0.0
      %611 = vmatprep.mubr.f32.mxu0 0.0
      %612 = vmatmul.mubr.f32.gmra.mrb[0].mxu0 %v545
      %v613 = vpop.f32.mrb[0].mxu0
      %v614 = vadd.f32 0.0, %v613
      %v615 = vpop.f32.mrb[0].mxu0
      %v616 = vadd.f32 0.0, %v615
      %617 = vdwg.mxu0
      %618 = vmatprep.subr.mxu0 0.0
      %619 = vmatpush1.msra.mxu0 %v537
      %620 = vmatprep.subr.mxu0 0.0
      %621 = vmatpush1.msra.mxu0 0.0
      %622 = vmatprep.subr.mxu0 0.0
      %623 = vmatpush1.msra.mxu0 0.0
      %624 = vmatprep.subr.mxu0 0.0
      %625 = vmatpush1.msra.mxu0 0.0
      %626 = vmatprep.subr.mxu0 0.0
      %627 = vmatpush1.msra.mxu0 0.0
      %628 = vmatprep.subr.mxu0 0.0
      %629 = vmatpush1.msra.mxu0 0.0
      %630 = vmatprep.subr.mxu0 0.0
      %631 = vmatpush1.msra.mxu0 0.0
      %632 = vmatprep.subr.mxu0 0.0
      %633 = vmatpush1.msra.mxu0 0.0
      %634 = vmatprep.subr.mxu0 0.0
      %635 = vmatpush1.msra.mxu0 0.0
      %636 = vmatprep.subr.mxu0 0.0
      %637 = vmatpush1.msra.mxu0 0.0
      %638 = vmatprep.subr.mxu0 0.0
      %639 = vmatpush1.msra.mxu0 0.0
      %640 = vmatprep.subr.mxu0 0.0
      %641 = vmatpush1.msra.mxu0 0.0
      %642 = vmatprep.subr.mxu0 0.0
      %643 = vmatpush1.msra.mxu0 0.0
      %644 = vmatprep.subr.mxu0 0.0
      %645 = vmatpush1.msra.mxu0 0.0
      %646 = vmatprep.subr.mxu0 0.0
      %647 = vmatpush1.msra.mxu0 0.0
      %648 = vmatprep.subr.mxu0 0.0
      %649 = vmatpush1.msra.mxu0 0.0
      %650 = vmatprep.subr.mxu0 0.0
      %651 = vmatpush1.msra.mxu0 0.0
      %652 = vmatprep.subr.mxu0 0.0
      %653 = vmatpush1.msra.mxu0 0.0
      %654 = vmatprep.subr.mxu0 0.0
      %655 = vmatpush1.msra.mxu0 0.0
      %656 = vmatprep.subr.mxu0 0.0
      %657 = vmatpush1.msra.mxu0 0.0
      %658 = vmatprep.subr.mxu0 0.0
      %659 = vmatpush1.msra.mxu0 0.0
      %660 = vmatprep.subr.mxu0 0.0
      %661 = vmatpush1.msra.mxu0 0.0
      %662 = vmatprep.subr.mxu0 0.0
      %663 = vmatpush1.msra.mxu0 0.0
      %664 = vmatprep.subr.mxu0 0.0
      %665 = vmatpush1.msra.mxu0 0.0
      %666 = vmatprep.subr.mxu0 0.0
      %667 = vmatpush1.msra.mxu0 0.0
      %668 = vmatprep.subr.mxu0 0.0
      %669 = vmatpush1.msra.mxu0 0.0
      %670 = vmatprep.subr.mxu0 0.0
      %671 = vmatpush1.msra.mxu0 0.0
      %672 = vmatprep.subr.mxu0 0.0
      %673 = vmatpush1.msra.mxu0 0.0
      %674 = vmatprep.subr.mxu0 0.0
      %675 = vmatpush1.msra.mxu0 0.0
      %676 = vmatprep.subr.mxu0 0.0
      %677 = vmatpush1.msra.mxu0 0.0
      %678 = vmatprep.subr.mxu0 0.0
      %679 = vmatpush1.msra.mxu0 0.0
      %680 = vmatprep.subr.mxu0 0.0
      %681 = vmatpush1.msra.mxu0 0.0
      %682 = vmatprep.mubr.f32.mxu0 0.0
      %683 = vmatmul.mubr.f32.gmra.mrb[0].mxu0 %v545
      %v684 = vpop.f32.mrb[0].mxu0
      %v685 = vadd.f32 0.0, %v684
      %v686 = vpop.f32.mrb[0].mxu0
      %687 = vdwg.mxu0
      %v688 = vadd.f32 %v456, %v614
      %v689 = vadd.f32 %v458, %v616
      %v690 = vadd.f32 %v527, %v685
      %s691 = scalar_lea.vmem %s1, 12
      %v692 = vld [vmem:[%s691] sm:$0xf]
      %693 = vrot.lane.b32.xlu0 %v220, 110
      %v694 = vpop.permute.xlu0 %693
      %695 = vrot.lane.b32.xlu0 %v221, 110
      %v696 = vpop.permute.xlu0 %695
      %697 = vrot.lane.b32.xlu0 %v222, 110
      %v698 = vpop.permute.xlu0 %697
      %vm699 = vcmask 900096
      %v700 = vsel %vm699, %v694, %v696
      %v701 = vsel %vm699, %v696, %v698
      %v706 = vsel %vm241, %v692, 0
      %708 = vmatprep.subr.mxu0 %v701
      %709 = vmatpush1.msra.mxu0 %v700
      %710 = vmatprep.subr.mxu0 0.0
      %711 = vmatpush1.msra.mxu0 0.0
      %712 = vmatprep.subr.mxu0 0.0
      %713 = vmatpush1.msra.mxu0 0.0
      %714 = vmatprep.subr.mxu0 0.0
      %715 = vmatpush1.msra.mxu0 0.0
      %716 = vmatprep.subr.mxu0 0.0
      %717 = vmatpush1.msra.mxu0 0.0
      %718 = vmatprep.subr.mxu0 0.0
      %719 = vmatpush1.msra.mxu0 0.0
      %720 = vmatprep.subr.mxu0 0.0
      %721 = vmatpush1.msra.mxu0 0.0
      %722 = vmatprep.subr.mxu0 0.0
      %723 = vmatpush1.msra.mxu0 0.0
      %724 = vmatprep.subr.mxu0 0.0
      %725 = vmatpush1.msra.mxu0 0.0
      %726 = vmatprep.subr.mxu0 0.0
      %727 = vmatpush1.msra.mxu0 0.0
      %728 = vmatprep.subr.mxu0 0.0
      %729 = vmatpush1.msra.mxu0 0.0
      %730 = vmatprep.subr.mxu0 0.0
      %731 = vmatpush1.msra.mxu0 0.0
      %732 = vmatprep.subr.mxu0 0.0
      %733 = vmatpush1.msra.mxu0 0.0
      %734 = vmatprep.subr.mxu0 0.0
      %735 = vmatpush1.msra.mxu0 0.0
      %736 = vmatprep.subr.mxu0 0.0
      %737 = vmatpush1.msra.mxu0 0.0
      %738 = vmatprep.subr.mxu0 0.0
      %739 = vmatpush1.msra.mxu0 0.0
      %740 = vmatprep.subr.mxu0 0.0
      %741 = vmatpush1.msra.mxu0 0.0
      %742 = vmatprep.subr.mxu0 0.0
      %743 = vmatpush1.msra.mxu0 0.0
      %744 = vmatprep.subr.mxu0 0.0
      %745 = vmatpush1.msra.mxu0 0.0
      %746 = vmatprep.subr.mxu0 0.0
      %747 = vmatpush1.msra.mxu0 0.0
      %748 = vmatprep.subr.mxu0 0.0
      %749 = vmatpush1.msra.mxu0 0.0
      %750 = vmatprep.subr.mxu0 0.0
      %751 = vmatpush1.msra.mxu0 0.0
      %752 = vmatprep.subr.mxu0 0.0
      %753 = vmatpush1.msra.mxu0 0.0
      %754 = vmatprep.subr.mxu0 0.0
      %755 = vmatpush1.msra.mxu0 0.0
      %756 = vmatprep.subr.mxu0 0.0
      %757 = vmatpush1.msra.mxu0 0.0
      %758 = vmatprep.subr.mxu0 0.0
      %759 = vmatpush1.msra.mxu0 0.0
      %760 = vmatprep.subr.mxu0 0.0
      %761 = vmatpush1.msra.mxu0 0.0
      %762 = vmatprep.subr.mxu0 0.0
      %763 = vmatpush1.msra.mxu0 0.0
      %764 = vmatprep.subr.mxu0 0.0
      %765 = vmatpush1.msra.mxu0 0.0
      %766 = vmatprep.subr.mxu0 0.0
      %767 = vmatpush1.msra.mxu0 0.0
      %768 = vmatprep.subr.mxu0 0.0
      %769 = vmatpush1.msra.mxu0 0.0
      %770 = vmatprep.subr.mxu0 0.0
      %771 = vmatpush1.msra.mxu0 0.0
      %772 = vmatprep.mubr.f32.mxu0 0.0
      %773 = vmatmul.mubr.f32.gmra.mrb[0].mxu0 %v706
      %v774 = vpop.f32.mrb[0].mxu0
      %v775 = vadd.f32 0.0, %v774
      %v776 = vpop.f32.mrb[0].mxu0
      %v777 = vadd.f32 0.0, %v776
      %778 = vdwg.mxu0
      %779 = vmatprep.subr.mxu0 0.0
      %780 = vmatpush1.msra.mxu0 %v698
      %781 = vmatprep.subr.mxu0 0.0
      %782 = vmatpush1.msra.mxu0 0.0
      %783 = vmatprep.subr.mxu0 0.0
      %784 = vmatpush1.msra.mxu0 0.0
      %785 = vmatprep.subr.mxu0 0.0
      %786 = vmatpush1.msra.mxu0 0.0
      %787 = vmatprep.subr.mxu0 0.0
      %788 = vmatpush1.msra.mxu0 0.0
      %789 = vmatprep.subr.mxu0 0.0
      %790 = vmatpush1.msra.mxu0 0.0
      %791 = vmatprep.subr.mxu0 0.0
      %792 = vmatpush1.msra.mxu0 0.0
      %793 = vmatprep.subr.mxu0 0.0
      %794 = vmatpush1.msra.mxu0 0.0
      %795 = vmatprep.subr.mxu0 0.0
      %796 = vmatpush1.msra.mxu0 0.0
      %797 = vmatprep.subr.mxu0 0.0
      %798 = vmatpush1.msra.mxu0 0.0
      %799 = vmatprep.subr.mxu0 0.0
      %800 = vmatpush1.msra.mxu0 0.0
      %801 = vmatprep.subr.mxu0 0.0
      %802 = vmatpush1.msra.mxu0 0.0
      %803 = vmatprep.subr.mxu0 0.0
      %804 = vmatpush1.msra.mxu0 0.0
      %805 = vmatprep.subr.mxu0 0.0
      %806 = vmatpush1.msra.mxu0 0.0
      %807 = vmatprep.subr.mxu0 0.0
      %808 = vmatpush1.msra.mxu0 0.0
      %809 = vmatprep.subr.mxu0 0.0
      %810 = vmatpush1.msra.mxu0 0.0
      %811 = vmatprep.subr.mxu0 0.0
      %812 = vmatpush1.msra.mxu0 0.0
      %813 = vmatprep.subr.mxu0 0.0
      %814 = vmatpush1.msra.mxu0 0.0
      %815 = vmatprep.subr.mxu0 0.0
      %816 = vmatpush1.msra.mxu0 0.0
      %817 = vmatprep.subr.mxu0 0.0
      %818 = vmatpush1.msra.mxu0 0.0
      %819 = vmatprep.subr.mxu0 0.0
      %820 = vmatpush1.msra.mxu0 0.0
      %821 = vmatprep.subr.mxu0 0.0
      %822 = vmatpush1.msra.mxu0 0.0
      %823 = vmatprep.subr.mxu0 0.0
      %824 = vmatpush1.msra.mxu0 0.0
      %825 = vmatprep.subr.mxu0 0.0
      %826 = vmatpush1.msra.mxu0 0.0
      %827 = vmatprep.subr.mxu0 0.0
      %828 = vmatpush1.msra.mxu0 0.0
      %829 = vmatprep.subr.mxu0 0.0
      %830 = vmatpush1.msra.mxu0 0.0
      %831 = vmatprep.subr.mxu0 0.0
      %832 = vmatpush1.msra.mxu0 0.0
      %833 = vmatprep.subr.mxu0 0.0
      %834 = vmatpush1.msra.mxu0 0.0
      %835 = vmatprep.subr.mxu0 0.0
      %836 = vmatpush1.msra.mxu0 0.0
      %837 = vmatprep.subr.mxu0 0.0
      %838 = vmatpush1.msra.mxu0 0.0
      %839 = vmatprep.subr.mxu0 0.0
      %840 = vmatpush1.msra.mxu0 0.0
      %841 = vmatprep.subr.mxu0 0.0
      %842 = vmatpush1.msra.mxu0 0.0
      %843 = vmatprep.mubr.f32.mxu0 0.0
      %844 = vmatmul.mubr.f32.gmra.mrb[0].mxu0 %v706
      %v845 = vpop.f32.mrb[0].mxu0
      %v846 = vadd.f32 0.0, %v845
      %v847 = vpop.f32.mrb[0].mxu0
      %848 = vdwg.mxu0
      %v849 = vadd.f32 %v688, %v775
      %v850 = vadd.f32 %v689, %v777
      %v851 = vadd.f32 %v690, %v846
      %s852 = scalar_lea.vmem %s1, 16
      %v853 = vld [vmem:[%s852] sm:$0xf]
      %854 = vrot.lane.b32.xlu0 %v220, 109
      %v855 = vpop.permute.xlu0 %854
      %856 = vrot.lane.b32.xlu0 %v221, 109
      %v857 = vpop.permute.xlu0 %856
      %858 = vrot.lane.b32.xlu0 %v222, 109
      %v859 = vpop.permute.xlu0 %858
      %vm860 = vcmask 891904
      %v861 = vsel %vm860, %v855, %v857
      %v862 = vsel %vm860, %v857, %v859
      %v867 = vsel %vm241, %v853, 0
      %869 = vmatprep.subr.mxu0 %v862
      %870 = vmatpush1.msra.mxu0 %v861
      %871 = vmatprep.subr.mxu0 0.0
      %872 = vmatpush1.msra.mxu0 0.0
      %873 = vmatprep.subr.mxu0 0.0
      %874 = vmatpush1.msra.mxu0 0.0
      %875 = vmatprep.subr.mxu0 0.0
      %876 = vmatpush1.msra.mxu0 0.0
      %877 = vmatprep.subr.mxu0 0.0
      %878 = vmatpush1.msra.mxu0 0.0
      %879 = vmatprep.subr.mxu0 0.0
      %880 = vmatpush1.msra.mxu0 0.0
      %881 = vmatprep.subr.mxu0 0.0
      %882 = vmatpush1.msra.mxu0 0.0
      %883 = vmatprep.subr.mxu0 0.0
      %884 = vmatpush1.msra.mxu0 0.0
      %885 = vmatprep.subr.mxu0 0.0
      %886 = vmatpush1.msra.mxu0 0.0
      %887 = vmatprep.subr.mxu0 0.0
      %888 = vmatpush1.msra.mxu0 0.0
      %889 = vmatprep.subr.mxu0 0.0
      %890 = vmatpush1.msra.mxu0 0.0
      %891 = vmatprep.subr.mxu0 0.0
      %892 = vmatpush1.msra.mxu0 0.0
      %893 = vmatprep.subr.mxu0 0.0
      %894 = vmatpush1.msra.mxu0 0.0
      %895 = vmatprep.subr.mxu0 0.0
      %896 = vmatpush1.msra.mxu0 0.0
      %897 = vmatprep.subr.mxu0 0.0
      %898 = vmatpush1.msra.mxu0 0.0
      %899 = vmatprep.subr.mxu0 0.0
      %900 = vmatpush1.msra.mxu0 0.0
      %901 = vmatprep.subr.mxu0 0.0
      %902 = vmatpush1.msra.mxu0 0.0
      %903 = vmatprep.subr.mxu0 0.0
      %904 = vmatpush1.msra.mxu0 0.0
      %905 = vmatprep.subr.mxu0 0.0
      %906 = vmatpush1.msra.mxu0 0.0
      %907 = vmatprep.subr.mxu0 0.0
      %908 = vmatpush1.msra.mxu0 0.0
      %909 = vmatprep.subr.mxu0 0.0
      %910 = vmatpush1.msra.mxu0 0.0
      %911 = vmatprep.subr.mxu0 0.0
      %912 = vmatpush1.msra.mxu0 0.0
      %913 = vmatprep.subr.mxu0 0.0
      %914 = vmatpush1.msra.mxu0 0.0
      %915 = vmatprep.subr.mxu0 0.0
      %916 = vmatpush1.msra.mxu0 0.0
      %917 = vmatprep.subr.mxu0 0.0
      %918 = vmatpush1.msra.mxu0 0.0
      %919 = vmatprep.subr.mxu0 0.0
      %920 = vmatpush1.msra.mxu0 0.0
      %921 = vmatprep.subr.mxu0 0.0
      %922 = vmatpush1.msra.mxu0 0.0
      %923 = vmatprep.subr.mxu0 0.0
      %924 = vmatpush1.msra.mxu0 0.0
      %925 = vmatprep.subr.mxu0 0.0
      %926 = vmatpush1.msra.mxu0 0.0
      %927 = vmatprep.subr.mxu0 0.0
      %928 = vmatpush1.msra.mxu0 0.0
      %929 = vmatprep.subr.mxu0 0.0
      %930 = vmatpush1.msra.mxu0 0.0
      %931 = vmatprep.subr.mxu0 0.0
      %932 = vmatpush1.msra.mxu0 0.0
      %933 = vmatprep.mubr.f32.mxu0 0.0
      %934 = vmatmul.mubr.f32.gmra.mrb[0].mxu0 %v867
      %v935 = vpop.f32.mrb[0].mxu0
      %v936 = vadd.f32 0.0, %v935
      %v937 = vpop.f32.mrb[0].mxu0
      %v938 = vadd.f32 0.0, %v937
      %939 = vdwg.mxu0
      %940 = vmatprep.subr.mxu0 0.0
      %941 = vmatpush1.msra.mxu0 %v859
      %942 = vmatprep.subr.mxu0 0.0
      %943 = vmatpush1.msra.mxu0 0.0
      %944 = vmatprep.subr.mxu0 0.0
      %945 = vmatpush1.msra.mxu0 0.0
      %946 = vmatprep.subr.mxu0 0.0
      %947 = vmatpush1.msra.mxu0 0.0
      %948 = vmatprep.subr.mxu0 0.0
      %949 = vmatpush1.msra.mxu0 0.0
      %950 = vmatprep.subr.mxu0 0.0
      %951 = vmatpush1.msra.mxu0 0.0
      %952 = vmatprep.subr.mxu0 0.0
      %953 = vmatpush1.msra.mxu0 0.0
      %954 = vmatprep.subr.mxu0 0.0
      %955 = vmatpush1.msra.mxu0 0.0
      %956 = vmatprep.subr.mxu0 0.0
      %957 = vmatpush1.msra.mxu0 0.0
      %958 = vmatprep.subr.mxu0 0.0
      %959 = vmatpush1.msra.mxu0 0.0
      %960 = vmatprep.subr.mxu0 0.0
      %961 = vmatpush1.msra.mxu0 0.0
      %962 = vmatprep.subr.mxu0 0.0
      %963 = vmatpush1.msra.mxu0 0.0
      %964 = vmatprep.subr.mxu0 0.0
      %965 = vmatpush1.msra.mxu0 0.0
      %966 = vmatprep.subr.mxu0 0.0
      %967 = vmatpush1.msra.mxu0 0.0
      %968 = vmatprep.subr.mxu0 0.0
      %969 = vmatpush1.msra.mxu0 0.0
      %970 = vmatprep.subr.mxu0 0.0
      %971 = vmatpush1.msra.mxu0 0.0
      %972 = vmatprep.subr.mxu0 0.0
      %973 = vmatpush1.msra.mxu0 0.0
      %974 = vmatprep.subr.mxu0 0.0
      %975 = vmatpush1.msra.mxu0 0.0
      %976 = vmatprep.subr.mxu0 0.0
      %977 = vmatpush1.msra.mxu0 0.0
      %978 = vmatprep.subr.mxu0 0.0
      %979 = vmatpush1.msra.mxu0 0.0
      %980 = vmatprep.subr.mxu0 0.0
      %981 = vmatpush1.msra.mxu0 0.0
      %982 = vmatprep.subr.mxu0 0.0
      %983 = vmatpush1.msra.mxu0 0.0
      %984 = vmatprep.subr.mxu0 0.0
      %985 = vmatpush1.msra.mxu0 0.0
      %986 = vmatprep.subr.mxu0 0.0
      %987 = vmatpush1.msra.mxu0 0.0
      %988 = vmatprep.subr.mxu0 0.0
      %989 = vmatpush1.msra.mxu0 0.0
      %990 = vmatprep.subr.mxu0 0.0
      %991 = vmatpush1.msra.mxu0 0.0
      %992 = vmatprep.subr.mxu0 0.0
      %993 = vmatpush1.msra.mxu0 0.0
      %994 = vmatprep.subr.mxu0 0.0
      %995 = vmatpush1.msra.mxu0 0.0
      %996 = vmatprep.subr.mxu0 0.0
      %997 = vmatpush1.msra.mxu0 0.0
      %998 = vmatprep.subr.mxu0 0.0
      %999 = vmatpush1.msra.mxu0 0.0
      %1000 = vmatprep.subr.mxu0 0.0
      %1001 = vmatpush1.msra.mxu0 0.0
      %1002 = vmatprep.subr.mxu0 0.0
      %1003 = vmatpush1.msra.mxu0 0.0
      %1004 = vmatprep.mubr.f32.mxu0 0.0
      %1005 = vmatmul.mubr.f32.gmra.mrb[0].mxu0 %v867
      %v1006 = vpop.f32.mrb[0].mxu0
      %v1007 = vadd.f32 0.0, %v1006
      %v1008 = vpop.f32.mrb[0].mxu0
      %1009 = vdwg.mxu0
      %v1010 = vadd.f32 %v849, %v936
      %v1011 = vadd.f32 %v850, %v938
      %v1012 = vadd.f32 %v851, %v1007
      %s1013 = scalar_lea.vmem %s1, 20
      %v1014 = vld [vmem:[%s1013] sm:$0xf]
      %1015 = vrot.lane.b32.xlu0 %v220, 108
      %v1016 = vpop.permute.xlu0 %1015
      %1017 = vrot.lane.b32.xlu0 %v221, 108
      %v1018 = vpop.permute.xlu0 %1017
      %1019 = vrot.lane.b32.xlu0 %v222, 108
      %v1020 = vpop.permute.xlu0 %1019
      %vm1021 = vcmask 883712
      %v1022 = vsel %vm1021, %v1016, %v1018
      %v1023 = vsel %vm1021, %v1018, %v1020
      %v1028 = vsel %vm241, %v1014, 0
      %1030 = vmatprep.subr.mxu0 %v1023
      %1031 = vmatpush1.msra.mxu0 %v1022
      %1032 = vmatprep.subr.mxu0 0.0
      %1033 = vmatpush1.msra.mxu0 0.0
      %1034 = vmatprep.subr.mxu0 0.0
      %1035 = vmatpush1.msra.mxu0 0.0
      %1036 = vmatprep.subr.mxu0 0.0
      %1037 = vmatpush1.msra.mxu0 0.0
      %1038 = vmatprep.subr.mxu0 0.0
      %1039 = vmatpush1.msra.mxu0 0.0
      %1040 = vmatprep.subr.mxu0 0.0
      %1041 = vmatpush1.msra.mxu0 0.0
      %1042 = vmatprep.subr.mxu0 0.0
      %1043 = vmatpush1.msra.mxu0 0.0
      %1044 = vmatprep.subr.mxu0 0.0
      %1045 = vmatpush1.msra.mxu0 0.0
      %1046 = vmatprep.subr.mxu0 0.0
      %1047 = vmatpush1.msra.mxu0 0.0
      %1048 = vmatprep.subr.mxu0 0.0
      %1049 = vmatpush1.msra.mxu0 0.0
      %1050 = vmatprep.subr.mxu0 0.0
      %1051 = vmatpush1.msra.mxu0 0.0
      %1052 = vmatprep.subr.mxu0 0.0
      %1053 = vmatpush1.msra.mxu0 0.0
      %1054 = vmatprep.subr.mxu0 0.0
      %1055 = vmatpush1.msra.mxu0 0.0
      %1056 = vmatprep.subr.mxu0 0.0
      %1057 = vmatpush1.msra.mxu0 0.0
      %1058 = vmatprep.subr.mxu0 0.0
      %1059 = vmatpush1.msra.mxu0 0.0
      %1060 = vmatprep.subr.mxu0 0.0
      %1061 = vmatpush1.msra.mxu0 0.0
      %1062 = vmatprep.subr.mxu0 0.0
      %1063 = vmatpush1.msra.mxu0 0.0
      %1064 = vmatprep.subr.mxu0 0.0
      %1065 = vmatpush1.msra.mxu0 0.0
      %1066 = vmatprep.subr.mxu0 0.0
      %1067 = vmatpush1.msra.mxu0 0.0
      %1068 = vmatprep.subr.mxu0 0.0
      %1069 = vmatpush1.msra.mxu0 0.0
      %1070 = vmatprep.subr.mxu0 0.0
      %1071 = vmatpush1.msra.mxu0 0.0
      %1072 = vmatprep.subr.mxu0 0.0
      %1073 = vmatpush1.msra.mxu0 0.0
      %1074 = vmatprep.subr.mxu0 0.0
      %1075 = vmatpush1.msra.mxu0 0.0
      %1076 = vmatprep.subr.mxu0 0.0
      %1077 = vmatpush1.msra.mxu0 0.0
      %1078 = vmatprep.subr.mxu0 0.0
      %1079 = vmatpush1.msra.mxu0 0.0
      %1080 = vmatprep.subr.mxu0 0.0
      %1081 = vmatpush1.msra.mxu0 0.0
      %1082 = vmatprep.subr.mxu0 0.0
      %1083 = vmatpush1.msra.mxu0 0.0
      %1084 = vmatprep.subr.mxu0 0.0
      %1085 = vmatpush1.msra.mxu0 0.0
      %1086 = vmatprep.subr.mxu0 0.0
      %1087 = vmatpush1.msra.mxu0 0.0
      %1088 = vmatprep.subr.mxu0 0.0
      %1089 = vmatpush1.msra.mxu0 0.0
      %1090 = vmatprep.subr.mxu0 0.0
      %1091 = vmatpush1.msra.mxu0 0.0
      %1092 = vmatprep.subr.mxu0 0.0
      %1093 = vmatpush1.msra.mxu0 0.0
      %1094 = vmatprep.mubr.f32.mxu0 0.0
      %1095 = vmatmul.mubr.f32.gmra.mrb[0].mxu0 %v1028
      %v1096 = vpop.f32.mrb[0].mxu0
      %v1097 = vadd.f32 0.0, %v1096
      %v1098 = vpop.f32.mrb[0].mxu0
      %v1099 = vadd.f32 0.0, %v1098
      %1100 = vdwg.mxu0
      %1101 = vmatprep.subr.mxu0 0.0
      %1102 = vmatpush1.msra.mxu0 %v1020
      %1103 = vmatprep.subr.mxu0 0.0
      %1104 = vmatpush1.msra.mxu0 0.0
      %1105 = vmatprep.subr.mxu0 0.0
      %1106 = vmatpush1.msra.mxu0 0.0
      %1107 = vmatprep.subr.mxu0 0.0
      %1108 = vmatpush1.msra.mxu0 0.0
      %1109 = vmatprep.subr.mxu0 0.0
      %1110 = vmatpush1.msra.mxu0 0.0
      %1111 = vmatprep.subr.mxu0 0.0
      %1112 = vmatpush1.msra.mxu0 0.0
      %1113 = vmatprep.subr.mxu0 0.0
      %1114 = vmatpush1.msra.mxu0 0.0
      %1115 = vmatprep.subr.mxu0 0.0
      %1116 = vmatpush1.msra.mxu0 0.0
      %1117 = vmatprep.subr.mxu0 0.0
      %1118 = vmatpush1.msra.mxu0 0.0
      %1119 = vmatprep.subr.mxu0 0.0
      %1120 = vmatpush1.msra.mxu0 0.0
      %1121 = vmatprep.subr.mxu0 0.0
      %1122 = vmatpush1.msra.mxu0 0.0
      %1123 = vmatprep.subr.mxu0 0.0
      %1124 = vmatpush1.msra.mxu0 0.0
      %1125 = vmatprep.subr.mxu0 0.0
      %1126 = vmatpush1.msra.mxu0 0.0
      %1127 = vmatprep.subr.mxu0 0.0
      %1128 = vmatpush1.msra.mxu0 0.0
      %1129 = vmatprep.subr.mxu0 0.0
      %1130 = vmatpush1.msra.mxu0 0.0
      %1131 = vmatprep.subr.mxu0 0.0
      %1132 = vmatpush1.msra.mxu0 0.0
      %1133 = vmatprep.subr.mxu0 0.0
      %1134 = vmatpush1.msra.mxu0 0.0
      %1135 = vmatprep.subr.mxu0 0.0
      %1136 = vmatpush1.msra.mxu0 0.0
      %1137 = vmatprep.subr.mxu0 0.0
      %1138 = vmatpush1.msra.mxu0 0.0
      %1139 = vmatprep.subr.mxu0 0.0
      %1140 = vmatpush1.msra.mxu0 0.0
      %1141 = vmatprep.subr.mxu0 0.0
      %1142 = vmatpush1.msra.mxu0 0.0
      %1143 = vmatprep.subr.mxu0 0.0
      %1144 = vmatpush1.msra.mxu0 0.0
      %1145 = vmatprep.subr.mxu0 0.0
      %1146 = vmatpush1.msra.mxu0 0.0
      %1147 = vmatprep.subr.mxu0 0.0
      %1148 = vmatpush1.msra.mxu0 0.0
      %1149 = vmatprep.subr.mxu0 0.0
      %1150 = vmatpush1.msra.mxu0 0.0
      %1151 = vmatprep.subr.mxu0 0.0
      %1152 = vmatpush1.msra.mxu0 0.0
      %1153 = vmatprep.subr.mxu0 0.0
      %1154 = vmatpush1.msra.mxu0 0.0
      %1155 = vmatprep.subr.mxu0 0.0
      %1156 = vmatpush1.msra.mxu0 0.0
      %1157 = vmatprep.subr.mxu0 0.0
      %1158 = vmatpush1.msra.mxu0 0.0
      %1159 = vmatprep.subr.mxu0 0.0
      %1160 = vmatpush1.msra.mxu0 0.0
      %1161 = vmatprep.subr.mxu0 0.0
      %1162 = vmatpush1.msra.mxu0 0.0
      %1163 = vmatprep.subr.mxu0 0.0
      %1164 = vmatpush1.msra.mxu0 0.0
      %1165 = vmatprep.mubr.f32.mxu0 0.0
      %1166 = vmatmul.mubr.f32.gmra.mrb[0].mxu0 %v1028
      %v1167 = vpop.f32.mrb[0].mxu0
      %v1168 = vadd.f32 0.0, %v1167
      %v1169 = vpop.f32.mrb[0].mxu0
      %1170 = vdwg.mxu0
      %v1171 = vadd.f32 %v1010, %v1097
      %v1172 = vadd.f32 %v1011, %v1099
      %v1173 = vadd.f32 %v1012, %v1168
      %s1174 = scalar_lea.vmem %s1, 24
      %v1175 = vld [vmem:[%s1174] sm:$0xf]
      %1176 = vrot.lane.b32.xlu0 %v220, 92
      %v1177 = vpop.permute.xlu0 %1176
      %1178 = vrot.lane.b32.xlu0 %v221, 92
      %v1179 = vpop.permute.xlu0 %1178
      %1180 = vrot.lane.b32.xlu0 %v222, 92
      %v1181 = vpop.permute.xlu0 %1180
      %vm1182 = vcmask 752640
      %v1183 = vsel %vm1182, %v1177, %v1179
      %v1184 = vsel %vm1182, %v1179, %v1181
      %v1189 = vsel %vm241, %v1175, 0
      %1191 = vmatprep.subr.mxu0 %v1184
      %1192 = vmatpush1.msra.mxu0 %v1183
      %1193 = vmatprep.subr.mxu0 0.0
      %1194 = vmatpush1.msra.mxu0 0.0
      %1195 = vmatprep.subr.mxu0 0.0
      %1196 = vmatpush1.msra.mxu0 0.0
      %1197 = vmatprep.subr.mxu0 0.0
      %1198 = vmatpush1.msra.mxu0 0.0
      %1199 = vmatprep.subr.mxu0 0.0
      %1200 = vmatpush1.msra.mxu0 0.0
      %1201 = vmatprep.subr.mxu0 0.0
      %1202 = vmatpush1.msra.mxu0 0.0
      %1203 = vmatprep.subr.mxu0 0.0
      %1204 = vmatpush1.msra.mxu0 0.0
      %1205 = vmatprep.subr.mxu0 0.0
      %1206 = vmatpush1.msra.mxu0 0.0
      %1207 = vmatprep.subr.mxu0 0.0
      %1208 = vmatpush1.msra.mxu0 0.0
      %1209 = vmatprep.subr.mxu0 0.0
      %1210 = vmatpush1.msra.mxu0 0.0
      %1211 = vmatprep.subr.mxu0 0.0
      %1212 = vmatpush1.msra.mxu0 0.0
      %1213 = vmatprep.subr.mxu0 0.0
      %1214 = vmatpush1.msra.mxu0 0.0
      %1215 = vmatprep.subr.mxu0 0.0
      %1216 = vmatpush1.msra.mxu0 0.0
      %1217 = vmatprep.subr.mxu0 0.0
      %1218 = vmatpush1.msra.mxu0 0.0
      %1219 = vmatprep.subr.mxu0 0.0
      %1220 = vmatpush1.msra.mxu0 0.0
      %1221 = vmatprep.subr.mxu0 0.0
      %1222 = vmatpush1.msra.mxu0 0.0
      %1223 = vmatprep.subr.mxu0 0.0
      %1224 = vmatpush1.msra.mxu0 0.0
      %1225 = vmatprep.subr.mxu0 0.0
      %1226 = vmatpush1.msra.mxu0 0.0
      %1227 = vmatprep.subr.mxu0 0.0
      %1228 = vmatpush1.msra.mxu0 0.0
      %1229 = vmatprep.subr.mxu0 0.0
      %1230 = vmatpush1.msra.mxu0 0.0
      %1231 = vmatprep.subr.mxu0 0.0
      %1232 = vmatpush1.msra.mxu0 0.0
      %1233 = vmatprep.subr.mxu0 0.0
      %1234 = vmatpush1.msra.mxu0 0.0
      %1235 = vmatprep.subr.mxu0 0.0
      %1236 = vmatpush1.msra.mxu0 0.0
      %1237 = vmatprep.subr.mxu0 0.0
      %1238 = vmatpush1.msra.mxu0 0.0
      %1239 = vmatprep.subr.mxu0 0.0
      %1240 = vmatpush1.msra.mxu0 0.0
      %1241 = vmatprep.subr.mxu0 0.0
      %1242 = vmatpush1.msra.mxu0 0.0
      %1243 = vmatprep.subr.mxu0 0.0
      %1244 = vmatpush1.msra.mxu0 0.0
      %1245 = vmatprep.subr.mxu0 0.0
      %1246 = vmatpush1.msra.mxu0 0.0
      %1247 = vmatprep.subr.mxu0 0.0
      %1248 = vmatpush1.msra.mxu0 0.0
      %1249 = vmatprep.subr.mxu0 0.0
      %1250 = vmatpush1.msra.mxu0 0.0
      %1251 = vmatprep.subr.mxu0 0.0
      %1252 = vmatpush1.msra.mxu0 0.0
      %1253 = vmatprep.subr.mxu0 0.0
      %1254 = vmatpush1.msra.mxu0 0.0
      %1255 = vmatprep.mubr.f32.mxu0 0.0
      %1256 = vmatmul.mubr.f32.gmra.mrb[0].mxu0 %v1189
      %v1257 = vpop.f32.mrb[0].mxu0
      %v1258 = vadd.f32 0.0, %v1257
      %v1259 = vpop.f32.mrb[0].mxu0
      %v1260 = vadd.f32 0.0, %v1259
      %1261 = vdwg.mxu0
      %1262 = vmatprep.subr.mxu0 0.0
      %1263 = vmatpush1.msra.mxu0 %v1181
      %1264 = vmatprep.subr.mxu0 0.0
      %1265 = vmatpush1.msra.mxu0 0.0
      %1266 = vmatprep.subr.mxu0 0.0
      %1267 = vmatpush1.msra.mxu0 0.0
      %1268 = vmatprep.subr.mxu0 0.0
      %1269 = vmatpush1.msra.mxu0 0.0
      %1270 = vmatprep.subr.mxu0 0.0
      %1271 = vmatpush1.msra.mxu0 0.0
      %1272 = vmatprep.subr.mxu0 0.0
      %1273 = vmatpush1.msra.mxu0 0.0
      %1274 = vmatprep.subr.mxu0 0.0
      %1275 = vmatpush1.msra.mxu0 0.0
      %1276 = vmatprep.subr.mxu0 0.0
      %1277 = vmatpush1.msra.mxu0 0.0
      %1278 = vmatprep.subr.mxu0 0.0
      %1279 = vmatpush1.msra.mxu0 0.0
      %1280 = vmatprep.subr.mxu0 0.0
      %1281 = vmatpush1.msra.mxu0 0.0
      %1282 = vmatprep.subr.mxu0 0.0
      %1283 = vmatpush1.msra.mxu0 0.0
      %1284 = vmatprep.subr.mxu0 0.0
      %1285 = vmatpush1.msra.mxu0 0.0
      %1286 = vmatprep.subr.mxu0 0.0
      %1287 = vmatpush1.msra.mxu0 0.0
      %1288 = vmatprep.subr.mxu0 0.0
      %1289 = vmatpush1.msra.mxu0 0.0
      %1290 = vmatprep.subr.mxu0 0.0
      %1291 = vmatpush1.msra.mxu0 0.0
      %1292 = vmatprep.subr.mxu0 0.0
      %1293 = vmatpush1.msra.mxu0 0.0
      %1294 = vmatprep.subr.mxu0 0.0
      %1295 = vmatpush1.msra.mxu0 0.0
      %1296 = vmatprep.subr.mxu0 0.0
      %1297 = vmatpush1.msra.mxu0 0.0
      %1298 = vmatprep.subr.mxu0 0.0
      %1299 = vmatpush1.msra.mxu0 0.0
      %1300 = vmatprep.subr.mxu0 0.0
      %1301 = vmatpush1.msra.mxu0 0.0
      %1302 = vmatprep.subr.mxu0 0.0
      %1303 = vmatpush1.msra.mxu0 0.0
      %1304 = vmatprep.subr.mxu0 0.0
      %1305 = vmatpush1.msra.mxu0 0.0
      %1306 = vmatprep.subr.mxu0 0.0
      %1307 = vmatpush1.msra.mxu0 0.0
      %1308 = vmatprep.subr.mxu0 0.0
      %1309 = vmatpush1.msra.mxu0 0.0
      %1310 = vmatprep.subr.mxu0 0.0
      %1311 = vmatpush1.msra.mxu0 0.0
      %1312 = vmatprep.subr.mxu0 0.0
      %1313 = vmatpush1.msra.mxu0 0.0
      %1314 = vmatprep.subr.mxu0 0.0
      %1315 = vmatpush1.msra.mxu0 0.0
      %1316 = vmatprep.subr.mxu0 0.0
      %1317 = vmatpush1.msra.mxu0 0.0
      %1318 = vmatprep.subr.mxu0 0.0
      %1319 = vmatpush1.msra.mxu0 0.0
      %1320 = vmatprep.subr.mxu0 0.0
      %1321 = vmatpush1.msra.mxu0 0.0
      %1322 = vmatprep.subr.mxu0 0.0
      %1323 = vmatpush1.msra.mxu0 0.0
      %1324 = vmatprep.subr.mxu0 0.0
      %1325 = vmatpush1.msra.mxu0 0.0
      %1326 = vmatprep.mubr.f32.mxu0 0.0
      %1327 = vmatmul.mubr.f32.gmra.mrb[0].mxu0 %v1189
      %v1328 = vpop.f32.mrb[0].mxu0
      %v1329 = vadd.f32 0.0, %v1328
      %v1330 = vpop.f32.mrb[0].mxu0
      %1331 = vdwg.mxu0
      %v1332 = vadd.f32 %v1171, %v1258
      %v1333 = vadd.f32 %v1172, %v1260
      %v1334 = vadd.f32 %v1173, %v1329
      %s1335 = scalar_lea.vmem %s1, 28
      %v1336 = vld [vmem:[%s1335] sm:$0xf]
      %1337 = vrot.lane.b32.xlu0 %v220, 91
      %v1338 = vpop.permute.xlu0 %1337
      %1339 = vrot.lane.b32.xlu0 %v221, 91
      %v1340 = vpop.permute.xlu0 %1339
      %1341 = vrot.lane.b32.xlu0 %v222, 91
      %v1342 = vpop.permute.xlu0 %1341
      %vm1343 = vcmask 744448
      %v1344 = vsel %vm1343, %v1338, %v1340
      %v1345 = vsel %vm1343, %v1340, %v1342
      %v1350 = vsel %vm241, %v1336, 0
      %1352 = vmatprep.subr.mxu0 %v1345
      %1353 = vmatpush1.msra.mxu0 %v1344
      %1354 = vmatprep.subr.mxu0 0.0
      %1355 = vmatpush1.msra.mxu0 0.0
      %1356 = vmatprep.subr.mxu0 0.0
      %1357 = vmatpush1.msra.mxu0 0.0
      %1358 = vmatprep.subr.mxu0 0.0
      %1359 = vmatpush1.msra.mxu0 0.0
      %1360 = vmatprep.subr.mxu0 0.0
      %1361 = vmatpush1.msra.mxu0 0.0
      %1362 = vmatprep.subr.mxu0 0.0
      %1363 = vmatpush1.msra.mxu0 0.0
      %1364 = vmatprep.subr.mxu0 0.0
      %1365 = vmatpush1.msra.mxu0 0.0
      %1366 = vmatprep.subr.mxu0 0.0
      %1367 = vmatpush1.msra.mxu0 0.0
      %1368 = vmatprep.subr.mxu0 0.0
      %1369 = vmatpush1.msra.mxu0 0.0
      %1370 = vmatprep.subr.mxu0 0.0
      %1371 = vmatpush1.msra.mxu0 0.0
      %1372 = vmatprep.subr.mxu0 0.0
      %1373 = vmatpush1.msra.mxu0 0.0
      %1374 = vmatprep.subr.mxu0 0.0
      %1375 = vmatpush1.msra.mxu0 0.0
      %1376 = vmatprep.subr.mxu0 0.0
      %1377 = vmatpush1.msra.mxu0 0.0
      %1378 = vmatprep.subr.mxu0 0.0
      %1379 = vmatpush1.msra.mxu0 0.0
      %1380 = vmatprep.subr.mxu0 0.0
      %1381 = vmatpush1.msra.mxu0 0.0
      %1382 = vmatprep.subr.mxu0 0.0
      %1383 = vmatpush1.msra.mxu0 0.0
      %1384 = vmatprep.subr.mxu0 0.0
      %1385 = vmatpush1.msra.mxu0 0.0
      %1386 = vmatprep.subr.mxu0 0.0
      %1387 = vmatpush1.msra.mxu0 0.0
      %1388 = vmatprep.subr.mxu0 0.0
      %1389 = vmatpush1.msra.mxu0 0.0
      %1390 = vmatprep.subr.mxu0 0.0
      %1391 = vmatpush1.msra.mxu0 0.0
      %1392 = vmatprep.subr.mxu0 0.0
      %1393 = vmatpush1.msra.mxu0 0.0
      %1394 = vmatprep.subr.mxu0 0.0
      %1395 = vmatpush1.msra.mxu0 0.0
      %1396 = vmatprep.subr.mxu0 0.0
      %1397 = vmatpush1.msra.mxu0 0.0
      %1398 = vmatprep.subr.mxu0 0.0
      %1399 = vmatpush1.msra.mxu0 0.0
      %1400 = vmatprep.subr.mxu0 0.0
      %1401 = vmatpush1.msra.mxu0 0.0
      %1402 = vmatprep.subr.mxu0 0.0
      %1403 = vmatpush1.msra.mxu0 0.0
      %1404 = vmatprep.subr.mxu0 0.0
      %1405 = vmatpush1.msra.mxu0 0.0
      %1406 = vmatprep.subr.mxu0 0.0
      %1407 = vmatpush1.msra.mxu0 0.0
      %1408 = vmatprep.subr.mxu0 0.0
      %1409 = vmatpush1.msra.mxu0 0.0
      %1410 = vmatprep.subr.mxu0 0.0
      %1411 = vmatpush1.msra.mxu0 0.0
      %1412 = vmatprep.subr.mxu0 0.0
      %1413 = vmatpush1.msra.mxu0 0.0
      %1414 = vmatprep.subr.mxu0 0.0
      %1415 = vmatpush1.msra.mxu0 0.0
      %1416 = vmatprep.mubr.f32.mxu0 0.0
      %1417 = vmatmul.mubr.f32.gmra.mrb[0].mxu0 %v1350
      %v1418 = vpop.f32.mrb[0].mxu0
      %v1419 = vadd.f32 0.0, %v1418
      %v1420 = vpop.f32.mrb[0].mxu0
      %v1421 = vadd.f32 0.0, %v1420
      %1422 = vdwg.mxu0
      %1423 = vmatprep.subr.mxu0 0.0
      %1424 = vmatpush1.msra.mxu0 %v1342
      %1425 = vmatprep.subr.mxu0 0.0
      %1426 = vmatpush1.msra.mxu0 0.0
      %1427 = vmatprep.subr.mxu0 0.0
      %1428 = vmatpush1.msra.mxu0 0.0
      %1429 = vmatprep.subr.mxu0 0.0
      %1430 = vmatpush1.msra.mxu0 0.0
      %1431 = vmatprep.subr.mxu0 0.0
      %1432 = vmatpush1.msra.mxu0 0.0
      %1433 = vmatprep.subr.mxu0 0.0
      %1434 = vmatpush1.msra.mxu0 0.0
      %1435 = vmatprep.subr.mxu0 0.0
      %1436 = vmatpush1.msra.mxu0 0.0
      %1437 = vmatprep.subr.mxu0 0.0
      %1438 = vmatpush1.msra.mxu0 0.0
      %1439 = vmatprep.subr.mxu0 0.0
      %1440 = vmatpush1.msra.mxu0 0.0
      %1441 = vmatprep.subr.mxu0 0.0
      %1442 = vmatpush1.msra.mxu0 0.0
      %1443 = vmatprep.subr.mxu0 0.0
      %1444 = vmatpush1.msra.mxu0 0.0
      %1445 = vmatprep.subr.mxu0 0.0
      %1446 = vmatpush1.msra.mxu0 0.0
      %1447 = vmatprep.subr.mxu0 0.0
      %1448 = vmatpush1.msra.mxu0 0.0
      %1449 = vmatprep.subr.mxu0 0.0
      %1450 = vmatpush1.msra.mxu0 0.0
      %1451 = vmatprep.subr.mxu0 0.0
      %1452 = vmatpush1.msra.mxu0 0.0
      %1453 = vmatprep.subr.mxu0 0.0
      %1454 = vmatpush1.msra.mxu0 0.0
      %1455 = vmatprep.subr.mxu0 0.0
      %1456 = vmatpush1.msra.mxu0 0.0
      %1457 = vmatprep.subr.mxu0 0.0
      %1458 = vmatpush1.msra.mxu0 0.0
      %1459 = vmatprep.subr.mxu0 0.0
      %1460 = vmatpush1.msra.mxu0 0.0
      %1461 = vmatprep.subr.mxu0 0.0
      %1462 = vmatpush1.msra.mxu0 0.0
      %1463 = vmatprep.subr.mxu0 0.0
      %1464 = vmatpush1.msra.mxu0 0.0
      %1465 = vmatprep.subr.mxu0 0.0
      %1466 = vmatpush1.msra.mxu0 0.0
      %1467 = vmatprep.subr.mxu0 0.0
      %1468 = vmatpush1.msra.mxu0 0.0
      %1469 = vmatprep.subr.mxu0 0.0
      %1470 = vmatpush1.msra.mxu0 0.0
      %1471 = vmatprep.subr.mxu0 0.0
      %1472 = vmatpush1.msra.mxu0 0.0
      %1473 = vmatprep.subr.mxu0 0.0
      %1474 = vmatpush1.msra.mxu0 0.0
      %1475 = vmatprep.subr.mxu0 0.0
      %1476 = vmatpush1.msra.mxu0 0.0
      %1477 = vmatprep.subr.mxu0 0.0
      %1478 = vmatpush1.msra.mxu0 0.0
      %1479 = vmatprep.subr.mxu0 0.0
      %1480 = vmatpush1.msra.mxu0 0.0
      %1481 = vmatprep.subr.mxu0 0.0
      %1482 = vmatpush1.msra.mxu0 0.0
      %1483 = vmatprep.subr.mxu0 0.0
      %1484 = vmatpush1.msra.mxu0 0.0
      %1485 = vmatprep.subr.mxu0 0.0
      %1486 = vmatpush1.msra.mxu0 0.0
      %1487 = vmatprep.mubr.f32.mxu0 0.0
      %1488 = vmatmul.mubr.f32.gmra.mrb[0].mxu0 %v1350
      %v1489 = vpop.f32.mrb[0].mxu0
      %v1490 = vadd.f32 0.0, %v1489
      %v1491 = vpop.f32.mrb[0].mxu0
      %1492 = vdwg.mxu0
      %v1493 = vadd.f32 %v1332, %v1419
      %v1494 = vadd.f32 %v1333, %v1421
      %v1495 = vadd.f32 %v1334, %v1490
      %s1496 = scalar_lea.vmem %s1, 32
      %v1497 = vld [vmem:[%s1496] sm:$0xf]
      %1498 = vrot.lane.b32.xlu0 %v220, 90
      %v1499 = vpop.permute.xlu0 %1498
      %1500 = vrot.lane.b32.xlu0 %v221, 90
      %v1501 = vpop.permute.xlu0 %1500
      %1502 = vrot.lane.b32.xlu0 %v222, 90
      %v1503 = vpop.permute.xlu0 %1502
      %vm1504 = vcmask 736256
      %v1505 = vsel %vm1504, %v1499, %v1501
      %v1506 = vsel %vm1504, %v1501, %v1503
      %v1511 = vsel %vm241, %v1497, 0
      %1513 = vmatprep.subr.mxu0 %v1506
      %1514 = vmatpush1.msra.mxu0 %v1505
      %1515 = vmatprep.subr.mxu0 0.0
      %1516 = vmatpush1.msra.mxu0 0.0
      %1517 = vmatprep.subr.mxu0 0.0
      %1518 = vmatpush1.msra.mxu0 0.0
      %1519 = vmatprep.subr.mxu0 0.0
      %1520 = vmatpush1.msra.mxu0 0.0
      %1521 = vmatprep.subr.mxu0 0.0
      %1522 = vmatpush1.msra.mxu0 0.0
      %1523 = vmatprep.subr.mxu0 0.0
      %1524 = vmatpush1.msra.mxu0 0.0
      %1525 = vmatprep.subr.mxu0 0.0
      %1526 = vmatpush1.msra.mxu0 0.0
      %1527 = vmatprep.subr.mxu0 0.0
      %1528 = vmatpush1.msra.mxu0 0.0
      %1529 = vmatprep.subr.mxu0 0.0
      %1530 = vmatpush1.msra.mxu0 0.0
      %1531 = vmatprep.subr.mxu0 0.0
      %1532 = vmatpush1.msra.mxu0 0.0
      %1533 = vmatprep.subr.mxu0 0.0
      %1534 = vmatpush1.msra.mxu0 0.0
      %1535 = vmatprep.subr.mxu0 0.0
      %1536 = vmatpush1.msra.mxu0 0.0
      %1537 = vmatprep.subr.mxu0 0.0
      %1538 = vmatpush1.msra.mxu0 0.0
      %1539 = vmatprep.subr.mxu0 0.0
      %1540 = vmatpush1.msra.mxu0 0.0
      %1541 = vmatprep.subr.mxu0 0.0
      %1542 = vmatpush1.msra.mxu0 0.0
      %1543 = vmatprep.subr.mxu0 0.0
      %1544 = vmatpush1.msra.mxu0 0.0
      %1545 = vmatprep.subr.mxu0 0.0
      %1546 = vmatpush1.msra.mxu0 0.0
      %1547 = vmatprep.subr.mxu0 0.0
      %1548 = vmatpush1.msra.mxu0 0.0
      %1549 = vmatprep.subr.mxu0 0.0
      %1550 = vmatpush1.msra.mxu0 0.0
      %1551 = vmatprep.subr.mxu0 0.0
      %1552 = vmatpush1.msra.mxu0 0.0
      %1553 = vmatprep.subr.mxu0 0.0
      %1554 = vmatpush1.msra.mxu0 0.0
      %1555 = vmatprep.subr.mxu0 0.0
      %1556 = vmatpush1.msra.mxu0 0.0
      %1557 = vmatprep.subr.mxu0 0.0
      %1558 = vmatpush1.msra.mxu0 0.0
      %1559 = vmatprep.subr.mxu0 0.0
      %1560 = vmatpush1.msra.mxu0 0.0
      %1561 = vmatprep.subr.mxu0 0.0
      %1562 = vmatpush1.msra.mxu0 0.0
      %1563 = vmatprep.subr.mxu0 0.0
      %1564 = vmatpush1.msra.mxu0 0.0
      %1565 = vmatprep.subr.mxu0 0.0
      %1566 = vmatpush1.msra.mxu0 0.0
      %1567 = vmatprep.subr.mxu0 0.0
      %1568 = vmatpush1.msra.mxu0 0.0
      %1569 = vmatprep.subr.mxu0 0.0
      %1570 = vmatpush1.msra.mxu0 0.0
      %1571 = vmatprep.subr.mxu0 0.0
      %1572 = vmatpush1.msra.mxu0 0.0
      %1573 = vmatprep.subr.mxu0 0.0
      %1574 = vmatpush1.msra.mxu0 0.0
      %1575 = vmatprep.subr.mxu0 0.0
      %1576 = vmatpush1.msra.mxu0 0.0
      %1577 = vmatprep.mubr.f32.mxu0 0.0
      %1578 = vmatmul.mubr.f32.gmra.mrb[0].mxu0 %v1511
      %v1579 = vpop.f32.mrb[0].mxu0
      %v1580 = vadd.f32 0.0, %v1579
      %v1581 = vpop.f32.mrb[0].mxu0
      %v1582 = vadd.f32 0.0, %v1581
      %1583 = vdwg.mxu0
      %1584 = vmatprep.subr.mxu0 0.0
      %1585 = vmatpush1.msra.mxu0 %v1503
      %1586 = vmatprep.subr.mxu0 0.0
      %1587 = vmatpush1.msra.mxu0 0.0
      %1588 = vmatprep.subr.mxu0 0.0
      %1589 = vmatpush1.msra.mxu0 0.0
      %1590 = vmatprep.subr.mxu0 0.0
      %1591 = vmatpush1.msra.mxu0 0.0
      %1592 = vmatprep.subr.mxu0 0.0
      %1593 = vmatpush1.msra.mxu0 0.0
      %1594 = vmatprep.subr.mxu0 0.0
      %1595 = vmatpush1.msra.mxu0 0.0
      %1596 = vmatprep.subr.mxu0 0.0
      %1597 = vmatpush1.msra.mxu0 0.0
      %1598 = vmatprep.subr.mxu0 0.0
      %1599 = vmatpush1.msra.mxu0 0.0
      %1600 = vmatprep.subr.mxu0 0.0
      %1601 = vmatpush1.msra.mxu0 0.0
      %1602 = vmatprep.subr.mxu0 0.0
      %1603 = vmatpush1.msra.mxu0 0.0
      %1604 = vmatprep.subr.mxu0 0.0
      %1605 = vmatpush1.msra.mxu0 0.0
      %1606 = vmatprep.subr.mxu0 0.0
      %1607 = vmatpush1.msra.mxu0 0.0
      %1608 = vmatprep.subr.mxu0 0.0
      %1609 = vmatpush1.msra.mxu0 0.0
      %1610 = vmatprep.subr.mxu0 0.0
      %1611 = vmatpush1.msra.mxu0 0.0
      %1612 = vmatprep.subr.mxu0 0.0
      %1613 = vmatpush1.msra.mxu0 0.0
      %1614 = vmatprep.subr.mxu0 0.0
      %1615 = vmatpush1.msra.mxu0 0.0
      %1616 = vmatprep.subr.mxu0 0.0
      %1617 = vmatpush1.msra.mxu0 0.0
      %1618 = vmatprep.subr.mxu0 0.0
      %1619 = vmatpush1.msra.mxu0 0.0
      %1620 = vmatprep.subr.mxu0 0.0
      %1621 = vmatpush1.msra.mxu0 0.0
      %1622 = vmatprep.subr.mxu0 0.0
      %1623 = vmatpush1.msra.mxu0 0.0
      %1624 = vmatprep.subr.mxu0 0.0
      %1625 = vmatpush1.msra.mxu0 0.0
      %1626 = vmatprep.subr.mxu0 0.0
      %1627 = vmatpush1.msra.mxu0 0.0
      %1628 = vmatprep.subr.mxu0 0.0
      %1629 = vmatpush1.msra.mxu0 0.0
      %1630 = vmatprep.subr.mxu0 0.0
      %1631 = vmatpush1.msra.mxu0 0.0
      %1632 = vmatprep.subr.mxu0 0.0
      %1633 = vmatpush1.msra.mxu0 0.0
      %1634 = vmatprep.subr.mxu0 0.0
      %1635 = vmatpush1.msra.mxu0 0.0
      %1636 = vmatprep.subr.mxu0 0.0
      %1637 = vmatpush1.msra.mxu0 0.0
      %1638 = vmatprep.subr.mxu0 0.0
      %1639 = vmatpush1.msra.mxu0 0.0
      %1640 = vmatprep.subr.mxu0 0.0
      %1641 = vmatpush1.msra.mxu0 0.0
      %1642 = vmatprep.subr.mxu0 0.0
      %1643 = vmatpush1.msra.mxu0 0.0
      %1644 = vmatprep.subr.mxu0 0.0
      %1645 = vmatpush1.msra.mxu0 0.0
      %1646 = vmatprep.subr.mxu0 0.0
      %1647 = vmatpush1.msra.mxu0 0.0
      %1648 = vmatprep.mubr.f32.mxu0 0.0
      %1649 = vmatmul.mubr.f32.gmra.mrb[0].mxu0 %v1511
      %v1650 = vpop.f32.mrb[0].mxu0
      %v1651 = vadd.f32 0.0, %v1650
      %v1652 = vpop.f32.mrb[0].mxu0
      %1653 = vdwg.mxu0
      %v1654 = vadd.f32 %v1493, %v1580
      %v1655 = vadd.f32 %v1494, %v1582
      %v1656 = vadd.f32 %v1495, %v1651
      %v1659 = vcombine.low %v1654, %v1655
      %1661 = vst [vmem:[%s219] sm:$0xff] %v1659
      %vm1662 = vcmask 551936
      %1663 = vst.msk [vmem:[%s219 + $0x8] sm:$0xf] %vm1662, %v1656
      %v1664 = vld [vmem:[%s2] sm:$0x7]
      %v1666 = vlaneseq
      %v1667 = vshrl.u32 %v1666, 7
      %v1668 = vsub.s32 0, %v1667
      %v1669 = vrot.slane %v1664, %v1668
      %v1670 = vlaneseq
      %v1671 = vshrl.u32 %v1670, 7
      %v1672 = vsub.s32 1, %v1671
      %v1673 = vrot.slane %v1664, %v1672
      %v1674 = vlaneseq
      %v1675 = vshrl.u32 %v1674, 7
      %v1676 = vsub.s32 2, %v1675
      %v1677 = vrot.slane %v1664, %v1676
      %v1681 = vmul.f32 %v1654, %v1669
      %v1682 = vmul.f32 %v1655, %v1673
      %v1683 = vmul.f32 %v1656, %v1677
      %p1684 = scmp.eq.s32.totalorder %s17, 0
      // Predicated region
      $region33: #{_lambda_.10} parent=31 // pred_check
        %p1685 = pneg %p1684
      $region34: #{_lambda_.10} parent=31 // pred_check_branch
        %1687 = sbr.rel (%p1685) target = $region36
      $region35: #{_lambda_.10} parent=31 // pred_region
        %vm1688 = vcmask 3072
        %1689 = vst.msk [vmem:[%s4] sm:$0xf] %vm1688, 0.0
        %1690 = vst.msk [vmem:[%s5] sm:$0xf] %vm1688, 0.0
      $region36: #{_lambda_.10} parent=31 // pred_fallthru
        _
      %v1691 = vld [vmem:[%s4] sm:$0xf]
      %vm1692 = vcmask 1043456
      %v1693 = vsel %vm1692, %v1681, 0.0
      %v1694 = vsel %vm1692, %v1682, 0.0
      %v1695 = vadd.f32 %v1693, %v1694
      %v1696 = vsel %vm1662, %v1683, 0.0
      %v1697 = vadd.f32 %v1695, %v1696
      %1698 = vadd.xlane.f32.xlu0 %v1697
      %v1699 = vpop.xlane.xlu0 %1698
      %v1700 = vadd.f32 %v1691, %v1699
      %vm1701 = vcmask 3072
      %1702 = vst.msk [vmem:[%s4] sm:$0xf] %vm1701, %v1700
      %v1703 = vld [vmem:[%s5] sm:$0xf]
      %v1704 = vmul.f32 %v1681, %v1654
      %v1705 = vmul.f32 %v1682, %v1655
      %v1706 = vmul.f32 %v1683, %v1656
      %v1707 = vsel %vm1692, %v1704, 0.0
      %v1708 = vsel %vm1692, %v1705, 0.0
      %v1709 = vadd.f32 %v1707, %v1708
      %v1710 = vsel %vm1662, %v1706, 0.0
      %v1711 = vadd.f32 %v1709, %v1710
      %1712 = vadd.xlane.f32.xlu0 %v1711
      %v1713 = vpop.xlane.xlu0 %1712
      %v1714 = vadd.f32 %v1703, %v1713
      %1715 = vst.msk [vmem:[%s5] sm:$0xf] %vm1701, %v1714
      %p1716 = scmp.lt.s32.totalorder %s17, 1
      %s1717 = scalar_select %p1716, %s17, 1
      %s1718 = smul.addr %s1717, 3
      %s1719 = smul.addr %s1718, 4
      %s1720 = scalar_lea.vmem %s3, %s1719
      // Predicated region
      $region37: #{_lambda_.10} parent=31 // pred_check
        %p1721 = pneg %p103
      $region38: #{_lambda_.10} parent=31 // pred_check_branch
        %1723 = sbr.rel (%p1721) target = $region40
      $region39: #{_lambda_.10} parent=31 // pred_region
        _
      $region40: #{_lambda_.10} parent=31 // pred_fallthru
        _
      // Predicated region
      $region41: #{_lambda_.10} parent=31 // pred_check
        %p1724 = pneg %p124
      $region42: #{_lambda_.10} parent=31 // pred_check_branch
        %1726 = sbr.rel (%p1724) target = $region44
      $region43: #{_lambda_.10} parent=31 // pred_region
        _
      $region44: #{_lambda_.10} parent=31 // pred_fallthru
        _
      // Predicated region
      $region45: #{_lambda_.10} parent=31 // pred_check
        %p1727 = pneg %p145
      $region46: #{_lambda_.10} parent=31 // pred_check_branch
        %1729 = sbr.rel (%p1727) target = $region48
      $region47: #{_lambda_.10} parent=31 // pred_region
        _
      $region48: #{_lambda_.10} parent=31 // pred_fallthru
        _
      // Predicated region
      $region49: #{_lambda_.10} parent=31 // pred_check
        %p1730 = pneg %p124
      $region50: #{_lambda_.10} parent=31 // pred_check_branch
        %1732 = sbr.rel (%p1730) target = $region52
      $region51: #{_lambda_.10} parent=31 // pred_region
        _
      $region52: #{_lambda_.10} parent=31 // pred_fallthru
        _
      // Predicated region
      $region53: #{_lambda_.10} parent=31 // pred_check
        %p1733 = pneg %p145
      $region54: #{_lambda_.10} parent=31 // pred_check_branch
        %1735 = sbr.rel (%p1733) target = $region56
      $region55: #{_lambda_.10} parent=31 // pred_region
        _
      $region56: #{_lambda_.10} parent=31 // pred_fallthru
        _
    $region32: #{_lambda_.10} parent=5 // pred_fallthru
      _
    %p1736 = scmp.le.s32.totalorder 2, %s12
    // Predicated region
    $region57: #{_lambda_.10} parent=5 // pred_check
      %p1737 = pneg %p1736
    $region58: #{_lambda_.10} parent=5 // pred_check_branch
      %1739 = sbr.rel (%p1737) target = $region60
    $region59: #{_lambda_.10} parent=5 // pred_region
      %s1740 = ssub.s32 %s12, 2
      // Predicated region
      $region61: #{_lambda_.10} parent=59 // pred_check
        %p1741 = pneg %p109
      $region62: #{_lambda_.10} parent=59 // pred_check_branch
        %1743 = sbr.rel (%p1741) target = $region64
      $region63: #{_lambda_.10} parent=59 // pred_region
        %p1744 = scmp.lt.s32.totalorder %s18, 1
        %s1745 = scalar_select %p1744, %s18, 1
        %s1746 = smul.addr %s1745, 3
        %s1747 = smul.addr %s1746, 4
        %s1748 = scalar_lea.vmem %s3, %s1747
      $region64: #{_lambda_.10} parent=59 // pred_fallthru
        _
    $region60: #{_lambda_.10} parent=5 // pred_fallthru
      _
  $region6: #{_lambda_.10} parent=0 // loop_footer
    %s16 = sadd.s32 1, %s12
  $region7: #{_lambda_.10} parent=0 // loop_footer_branch
    %11 = sbr.rel target = $region3
  $region8: #{_lambda_.10} parent=0 // loop_exit
    _

// kernel: _lambda_.13
$region0: #{_lambda_.13}
  #allocation0 [shape = 'u32[]', space=smem, size = 0x4, offset = 0x4, fixed_abs, tag = 'smem constant byte address 0x4 - core index']
  #allocation1 [shape = 'u32[144,128]{1,0:T(1,128)}', space=vmem, size = 0x12000, scoped, tag = 'internal scratch']
  %s0 = inlined_call_operand.vmem [shape: f32[2,4,324], index: 0, kind: input, shape index: {}]
  %s1 = inlined_call_operand.vmem [shape: f32[4,1], index: 1, kind: input, shape index: {}]
  %s2 = inlined_call_operand.vmem [shape: f32[4,1], index: 2, kind: input, shape index: {}]
  %s3 = inlined_call_operand.vmem [shape: f32[1,324], index: 3, kind: input, shape index: {}]
  %s4 = inlined_call_operand.vmem [shape: f32[2,4,324], index: 4, kind: output, shape index: {}]
  %s5 = sld [smem:[#allocation0]]
  $region49: #{_lambda_.13} parent=0
    _
  %s7 = ssub.s32 1, %s5
  %s8 = scalar_select 0, %s7, %s5
  loop: start=0, step=1, limit=4
  $region2: #{_lambda_.13} parent=0 // loop_pre_header
    _
  $region3: #{_lambda_.13} parent=0 // loop_header
    %s10 = sphi 0, %s14
    %p11 = scmp.ge.s32.totalorder %s10, 4
    %s20 = sphi 0, %s22
    %s23 = sphi 0, %s20
    %s24 = sphi 0, %s23
    %s40 = sphi 0, %s24
    %s44 = sphi 0, %s44
    %s46 = sphi 0, %s44
    %s47 = sphi 0, %s46
    %s61 = sphi 0, %s47
    %s65 = sphi 0, %s65
    %s67 = sphi 0, %s65
    %s68 = sphi 0, %s67
    %s82 = sphi 0, %s68
    %s86 = sphi 0, %s86
    %s88 = sphi 0, %s86
    %s89 = sphi 0, %s88
    %s103 = sphi 0, %s89
    %s109 = sphi 0, %s111
    %s112 = sphi 0, %s109
    %s113 = sphi 0, %s112
    %s129 = sphi 0, %s113
  $region4: #{_lambda_.13} parent=0 // loop_header_branch
    %13 = sbr.rel (%p11) target = $region8
  $region5: #{_lambda_.13} parent=0 // loop_body
    %s15 = ssub.s32 %s10, 1
    %s16 = ssub.s32 %s10, 2
    %s17 = sadd.s32 %s10, 1
    %s18 = ssub.s32 %s10, %s17
    %p19 = scmp.eq.s32.totalorder %s18, 0
    %s21 = sadd.s32 %s20, 1
    %s22 = scalar_select %p19, %s20, %s21
    %p25 = pneg %p19
    %p26 = scmp.eq.s32.totalorder %s10, 1
    %p27 = por %p25, %p26
    %p28 = scmp.ne.s32.totalorder %s20, %s23
    %p29 = scmp.eq.s32.totalorder %s10, 0
    %p30 = por %p28, %p29
    %p31 = scmp.ne.s32.totalorder %s20, %s23
    %p32 = scmp.eq.s32.totalorder %s15, 1
    %p33 = por %p31, %p32
    %p34 = scmp.ne.s32.totalorder %s23, %s24
    %p35 = scmp.eq.s32.totalorder %s15, 0
    %p36 = por %p34, %p35
    %p37 = scmp.ne.s32.totalorder %s23, %s24
    %p38 = scmp.eq.s32.totalorder %s16, 1
    %p39 = por %p37, %p38
    %p41 = scmp.ne.s32.totalorder %s24, %s40
    %p42 = scmp.eq.s32.totalorder %s16, 0
    %p43 = por %p41, %p42
    %s45 = sadd.s32 %s44, 1
    %p48 = scmp.eq.s32.totalorder %s10, 1
    %p49 = scmp.ne.s32.totalorder %s44, %s46
    %p50 = scmp.eq.s32.totalorder %s10, 0
    %p51 = por %p49, %p50
    %p52 = scmp.ne.s32.totalorder %s44, %s46
    %p53 = scmp.eq.s32.totalorder %s15, 1
    %p54 = por %p52, %p53
    %p55 = scmp.ne.s32.totalorder %s46, %s47
    %p56 = scmp.eq.s32.totalorder %s15, 0
    %p57 = por %p55, %p56
    %p58 = scmp.ne.s32.totalorder %s46, %s47
    %p59 = scmp.eq.s32.totalorder %s16, 1
    %p60 = por %p58, %p59
    %p62 = scmp.ne.s32.totalorder %s47, %s61
    %p63 = scmp.eq.s32.totalorder %s16, 0
    %p64 = por %p62, %p63
    %s66 = sadd.s32 %s65, 1
    %p69 = scmp.eq.s32.totalorder %s10, 1
    %p70 = scmp.ne.s32.totalorder %s65, %s67
    %p71 = scmp.eq.s32.totalorder %s10, 0
    %p72 = por %p70, %p71
    %p73 = scmp.ne.s32.totalorder %s65, %s67
    %p74 = scmp.eq.s32.totalorder %s15, 1
    %p75 = por %p73, %p74
    %p76 = scmp.ne.s32.totalorder %s67, %s68
    %p77 = scmp.eq.s32.totalorder %s15, 0
    %p78 = por %p76, %p77
    %p79 = scmp.ne.s32.totalorder %s67, %s68
    %p80 = scmp.eq.s32.totalorder %s16, 1
    %p81 = por %p79, %p80
    %p83 = scmp.ne.s32.totalorder %s68, %s82
    %p84 = scmp.eq.s32.totalorder %s16, 0
    %p85 = por %p83, %p84
    %s87 = sadd.s32 %s86, 1
    %p90 = scmp.eq.s32.totalorder %s10, 1
    %p91 = scmp.ne.s32.totalorder %s86, %s88
    %p92 = scmp.eq.s32.totalorder %s10, 0
    %p93 = por %p91, %p92
    %p94 = scmp.ne.s32.totalorder %s86, %s88
    %p95 = scmp.eq.s32.totalorder %s15, 1
    %p96 = por %p94, %p95
    %p97 = scmp.ne.s32.totalorder %s88, %s89
    %p98 = scmp.eq.s32.totalorder %s15, 0
    %p99 = por %p97, %p98
    %p100 = scmp.ne.s32.totalorder %s88, %s89
    %p101 = scmp.eq.s32.totalorder %s16, 1
    %p102 = por %p100, %p101
    %p104 = scmp.ne.s32.totalorder %s89, %s103
    %p105 = scmp.eq.s32.totalorder %s16, 0
    %p106 = por %p104, %p105
    %s107 = ssub.s32 %s10, %s17
    %p108 = scmp.eq.s32.totalorder %s107, 0
    %s110 = sadd.s32 %s109, 1
    %s111 = scalar_select %p108, %s109, %s110
    %p114 = pneg %p108
    %p115 = scmp.eq.s32.totalorder %s10, 1
    %p116 = por %p114, %p115
    %p117 = scmp.ne.s32.totalorder %s109, %s112
    %p118 = scmp.eq.s32.totalorder %s10, 0
    %p119 = por %p117, %p118
    %p120 = scmp.ne.s32.totalorder %s109, %s112
    %p121 = scmp.eq.s32.totalorder %s15, 1
    %p122 = por %p120, %p121
    %p123 = scmp.ne.s32.totalorder %s112, %s113
    %p124 = scmp.eq.s32.totalorder %s15, 0
    %p125 = por %p123, %p124
    %p126 = scmp.ne.s32.totalorder %s112, %s113
    %p127 = scmp.eq.s32.totalorder %s16, 1
    %p128 = por %p126, %p127
    %p130 = scmp.ne.s32.totalorder %s113, %s129
    %p131 = scmp.eq.s32.totalorder %s16, 0
    %p132 = por %p130, %p131
    %p133 = scmp.le.s32.totalorder 1, %s10
    %p134 = scmp.lt.s32.totalorder %s10, 3
    %p135 = pnand %p133, %p134
    %p136 = pneg %p135
    // Predicated region
    $region9: #{_lambda_.13} parent=5 // pred_check
      _
    $region10: #{_lambda_.13} parent=5 // pred_check_branch
      %138 = sbr.rel (%p135) target = $region12
    $region11: #{_lambda_.13} parent=5 // pred_region
      %s139 = ssub.s32 %s10, 1
      // Predicated region
      $region13: #{_lambda_.13} parent=11 // pred_check
        %p140 = pneg %p57
      $region14: #{_lambda_.13} parent=11 // pred_check_branch
        %142 = sbr.rel (%p140) target = $region16
      $region15: #{_lambda_.13} parent=11 // pred_region
        _
      $region16: #{_lambda_.13} parent=11 // pred_fallthru
        _
      // Predicated region
      $region17: #{_lambda_.13} parent=11 // pred_check
        %p143 = pneg %p78
      $region18: #{_lambda_.13} parent=11 // pred_check_branch
        %145 = sbr.rel (%p143) target = $region20
      $region19: #{_lambda_.13} parent=11 // pred_region
        _
      $region20: #{_lambda_.13} parent=11 // pred_fallthru
        _
      // Predicated region
      $region21: #{_lambda_.13} parent=11 // pred_check
        %p146 = pneg %p99
      $region22: #{_lambda_.13} parent=11 // pred_check_branch
        %148 = sbr.rel (%p146) target = $region24
      $region23: #{_lambda_.13} parent=11 // pred_region
        _
      $region24: #{_lambda_.13} parent=11 // pred_fallthru
        _
    $region12: #{_lambda_.13} parent=5 // pred_fallthru
      _
    %p149 = scmp.lt.s32.totalorder %s10, 2
    // Predicated region
    $region25: #{_lambda_.13} parent=5 // pred_check
      %p150 = pneg %p149
    $region26: #{_lambda_.13} parent=5 // pred_check_branch
      %152 = sbr.rel (%p150) target = $region28
    $region27: #{_lambda_.13} parent=5 // pred_region
      // Predicated region
      $region29: #{_lambda_.13} parent=27 // pred_check
        %p153 = pneg %p30
      $region30: #{_lambda_.13} parent=27 // pred_check_branch
        %155 = sbr.rel (%p153) target = $region32
      $region31: #{_lambda_.13} parent=27 // pred_region
        %p156 = scmp.lt.s32.totalorder %s10, 1
        %s157 = scalar_select %p156, %s10, 1
        %s158 = smul.addr %s157, 3
        %s159 = smul.addr %s158, 4
        %s160 = scalar_lea.vmem %s0, %s159
      $region32: #{_lambda_.13} parent=27 // pred_fallthru
        _
    $region28: #{_lambda_.13} parent=5 // pred_fallthru
      _
    %p161 = scmp.le.s32.totalorder 1, %s10
    %p162 = scmp.lt.s32.totalorder %s10, 3
    %p163 = pnand %p161, %p162
    %p164 = pneg %p163
    // Predicated region
    $region33: #{_lambda_.13} parent=5 // pred_check
      _
    $region34: #{_lambda_.13} parent=5 // pred_check_branch
      %166 = sbr.rel (%p163) target = $region36
    $region35: #{_lambda_.13} parent=5 // pred_region
      %s167 = ssub.s32 %s10, 1
      %p168 = scmp.lt.s32.totalorder %s15, 1
      %s169 = scalar_select %p168, %s15, 1
      %s170 = smul.addr %s169, 3
      %s171 = smul.addr %s170, 4
      %s172 = scalar_lea.vmem %s0, %s171
      %p173 = pneg %p36
      %p174 = pneg %p33
      %p175 = pneg %p57
      %p176 = pneg %p54
      %p177 = pneg %p78
      %p178 = pneg %p75
      %p179 = pneg %p99
      %p180 = pneg %p96
      %p181 = pneg %p125
      %p182 = pneg %p122
      %p183 = scmp.lt.s32.totalorder %s15, 1
      %s184 = scalar_select %p183, %s15, 1
      %s185 = smul.addr %s184, 3
      %s186 = smul.addr %s185, 4
      %s187 = scalar_lea.vmem %s4, %s186
      %p188 = scmp.lt.s32.totalorder %s15, 1
      %s189 = scalar_select %p188, %s15, 1
      %s190 = smul.addr %s189, 3
      %s191 = smul.addr %s190, 4
      %s192 = scalar_lea.vmem %s0, %s191
      %p193 = scmp.lt.s32.totalorder %s15, 1
      %s194 = scalar_select %p193, %s15, 1
      %s195 = smul.addr %s194, 3
      %s196 = smul.addr %s195, 4
      %s197 = scalar_lea.vmem %s4, %s196
      %v198 = vld [vmem:[%s192] sm:$0xff]
      %v199 = vld [vmem:[%s192 + $0x8] sm:$0xf]
      %v200 = vld [vmem:[%s1] sm:$0xf]
      %202 = vset.pattern.permute.xlu0 0
      %203 = vperm.xlu0 %202, %v200
      %v204 = vpop.permute.xlu0 %203
      %v206 = vunpack.c.l.s4 839922192
      %v207 = vunpack.c.0.s8 %v206
      %v208 = vlaneseq
      %v209 = vshrl.u32 %v208, 7
      %v210 = vsub.s32 %v207, %v209
      %v211 = vrot.slane %v204, %v210
      %v213 = vmul.f32 %v198, %v211
      %v214 = vmul.f32 %v199, %v211
      %v215 = vld [vmem:[%s2] sm:$0xf]
      %217 = vset.pattern.permute.xlu0 0
      %218 = vperm.xlu0 %217, %v215
      %v219 = vpop.permute.xlu0 %218
      %v221 = vunpack.c.l.s4 839922192
      %v222 = vunpack.c.0.s8 %v221
      %v223 = vlaneseq
      %v224 = vshrl.u32 %v223, 7
      %v225 = vsub.s32 %v222, %v224
      %v226 = vrot.slane %v219, %v225
      %v228 = vadd.f32 %v213, %v226
      %v229 = vadd.f32 %v214, %v226
      %vm230 = vcmp.ge.f32.partialorder %v228, 0.0
      %vm231 = vcmp.ge.f32.partialorder %v229, 0.0
      %v232 = vmul.f32 %v228, 0.1
      %v233 = vmul.f32 %v229, 0.1
      %v234 = vsel %vm230, %v228, %v232
      %v235 = vsel %vm231, %v229, %v233
      %v236 = vld [vmem:[%s3] sm:$0x7]
      %v238 = vlaneseq
      %v239 = vshrl.u32 %v238, 7
      %v240 = vsub.s32 0, %v239
      %v241 = vrot.slane %v236, %v240
      %v242 = vlaneseq
      %v243 = vshrl.u32 %v242, 7
      %v244 = vsub.s32 1, %v243
      %v245 = vrot.slane %v236, %v244
      %v246 = vlaneseq
      %v247 = vshrl.u32 %v246, 7
      %v248 = vsub.s32 2, %v247
      %v249 = vrot.slane %v236, %v248
      %v251 = vcombine.low %v241, %v245
      %v253 = vmul.f32 %v234, %v251
      %v254 = vmul.f32 %v235, %v249
      %255 = vst [vmem:[%s197] sm:$0xff] %v253
      %vm256 = vcmask 551936
      %257 = vst.msk [vmem:[%s197 + $0x8] sm:$0xf] %vm256, %v254
      %p258 = scmp.lt.s32.totalorder %s15, 1
      %s259 = scalar_select %p258, %s15, 1
      %s260 = smul.addr %s259, 3
      %s261 = smul.addr %s260, 4
      %s262 = scalar_lea.vmem %s4, %s261
      // Predicated region
      $region37: #{_lambda_.13} parent=35 // pred_check
        %p263 = pneg %p122
      $region38: #{_lambda_.13} parent=35 // pred_check_branch
        %265 = sbr.rel (%p263) target = $region40
      $region39: #{_lambda_.13} parent=35 // pred_region
        _
      $region40: #{_lambda_.13} parent=35 // pred_fallthru
        _
    $region36: #{_lambda_.13} parent=5 // pred_fallthru
      _
    %p266 = scmp.le.s32.totalorder 2, %s10
    // Predicated region
    $region41: #{_lambda_.13} parent=5 // pred_check
      %p267 = pneg %p266
    $region42: #{_lambda_.13} parent=5 // pred_check_branch
      %269 = sbr.rel (%p267) target = $region44
    $region43: #{_lambda_.13} parent=5 // pred_region
      %s270 = ssub.s32 %s10, 2
      // Predicated region
      $region45: #{_lambda_.13} parent=43 // pred_check
        %p271 = pneg %p128
      $region46: #{_lambda_.13} parent=43 // pred_check_branch
        %273 = sbr.rel (%p271) target = $region48
      $region47: #{_lambda_.13} parent=43 // pred_region
        %p274 = scmp.lt.s32.totalorder %s16, 1
        %s275 = scalar_select %p274, %s16, 1
        %s276 = smul.addr %s275, 3
        %s277 = smul.addr %s276, 4
        %s278 = scalar_lea.vmem %s4, %s277
      $region48: #{_lambda_.13} parent=43 // pred_fallthru
        _
    $region44: #{_lambda_.13} parent=5 // pred_fallthru
      _
  $region6: #{_lambda_.13} parent=0 // loop_footer
    %s14 = sadd.s32 1, %s10
  $region7: #{_lambda_.13} parent=0 // loop_footer_branch
    %9 = sbr.rel target = $region3
  $region8: #{_lambda_.13} parent=0 // loop_exit
    _

// kernel: _lambda_.12
$region0: #{_lambda_.12}
  #allocation0 [shape = 'u32[]', space=smem, size = 0x4, offset = 0x4, fixed_abs, tag = 'smem constant byte address 0x4 - core index']
  #allocation1 [shape = 'u32[144,128]{1,0:T(1,128)}', space=vmem, size = 0x12000, scoped, tag = 'internal scratch']
  %s0 = inlined_call_operand.vmem [shape: f32[2,4,362], index: 0, kind: input, shape index: {}]
  %s1 = inlined_call_operand.vmem [shape: f32[9,4,4], index: 1, kind: input, shape index: {}]
  %s2 = inlined_call_operand.vmem [shape: f32[1,324], index: 2, kind: input, shape index: {}]
  %s3 = inlined_call_operand.vmem [shape: f32[2,4,324], index: 3, kind: output, shape index: {0}]
  %s4 = inlined_call_operand.vmem [shape: f32[4,1], index: 4, kind: output, shape index: {1}]
  %s5 = inlined_call_operand.vmem [shape: f32[4,1], index: 5, kind: output, shape index: {2}]
  %6 = xla_tuple %s3, %s4, %s5
  %s7 = sld [smem:[#allocation0]]
  $region65: #{_lambda_.12} parent=0
    _
  %s9 = ssub.s32 1, %s7
  %s10 = scalar_select 0, %s9, %s7
  loop: start=0, step=1, limit=4
  $region2: #{_lambda_.12} parent=0 // loop_pre_header
    _
  $region3: #{_lambda_.12} parent=0 // loop_header
    %s12 = sphi 0, %s16
    %p13 = scmp.ge.s32.totalorder %s12, 4
    %s22 = sphi 0, %s24
    %s25 = sphi 0, %s22
    %s26 = sphi 0, %s25
    %s42 = sphi 0, %s26
    %s46 = sphi 0, %s46
    %s48 = sphi 0, %s46
    %s49 = sphi 0, %s48
    %s63 = sphi 0, %s49
    %s67 = sphi 0, %s67
    %s69 = sphi 0, %s67
    %s70 = sphi 0, %s69
    %s84 = sphi 0, %s70
    %s90 = sphi 0, %s92
    %s93 = sphi 0, %s90
    %s94 = sphi 0, %s93
    %s110 = sphi 0, %s94
    %s114 = sphi 0, %s114
    %s116 = sphi 0, %s114
    %s117 = sphi 0, %s116
    %s131 = sphi 0, %s117
    %s135 = sphi 0, %s135
    %s137 = sphi 0, %s135
    %s138 = sphi 0, %s137
    %s152 = sphi 0, %s138
  $region4: #{_lambda_.12} parent=0 // loop_header_branch
    %15 = sbr.rel (%p13) target = $region8
  $region5: #{_lambda_.12} parent=0 // loop_body
    %s17 = ssub.s32 %s12, 1
    %s18 = ssub.s32 %s12, 2
    %s19 = sadd.s32 %s12, 1
    %s20 = ssub.s32 %s12, %s19
    %p21 = scmp.eq.s32.totalorder %s20, 0
    %s23 = sadd.s32 %s22, 1
    %s24 = scalar_select %p21, %s22, %s23
    %p27 = pneg %p21
    %p28 = scmp.eq.s32.totalorder %s12, 1
    %p29 = por %p27, %p28
    %p30 = scmp.ne.s32.totalorder %s22, %s25
    %p31 = scmp.eq.s32.totalorder %s12, 0
    %p32 = por %p30, %p31
    %p33 = scmp.ne.s32.totalorder %s22, %s25
    %p34 = scmp.eq.s32.totalorder %s17, 1
    %p35 = por %p33, %p34
    %p36 = scmp.ne.s32.totalorder %s25, %s26
    %p37 = scmp.eq.s32.totalorder %s17, 0
    %p38 = por %p36, %p37
    %p39 = scmp.ne.s32.totalorder %s25, %s26
    %p40 = scmp.eq.s32.totalorder %s18, 1
    %p41 = por %p39, %p40
    %p43 = scmp.ne.s32.totalorder %s26, %s42
    %p44 = scmp.eq.s32.totalorder %s18, 0
    %p45 = por %p43, %p44
    %s47 = sadd.s32 %s46, 1
    %p50 = scmp.eq.s32.totalorder %s12, 1
    %p51 = scmp.ne.s32.totalorder %s46, %s48
    %p52 = scmp.eq.s32.totalorder %s12, 0
    %p53 = por %p51, %p52
    %p54 = scmp.ne.s32.totalorder %s46, %s48
    %p55 = scmp.eq.s32.totalorder %s17, 1
    %p56 = por %p54, %p55
    %p57 = scmp.ne.s32.totalorder %s48, %s49
    %p58 = scmp.eq.s32.totalorder %s17, 0
    %p59 = por %p57, %p58
    %p60 = scmp.ne.s32.totalorder %s48, %s49
    %p61 = scmp.eq.s32.totalorder %s18, 1
    %p62 = por %p60, %p61
    %p64 = scmp.ne.s32.totalorder %s49, %s63
    %p65 = scmp.eq.s32.totalorder %s18, 0
    %p66 = por %p64, %p65
    %s68 = sadd.s32 %s67, 1
    %p71 = scmp.eq.s32.totalorder %s12, 1
    %p72 = scmp.ne.s32.totalorder %s67, %s69
    %p73 = scmp.eq.s32.totalorder %s12, 0
    %p74 = por %p72, %p73
    %p75 = scmp.ne.s32.totalorder %s67, %s69
    %p76 = scmp.eq.s32.totalorder %s17, 1
    %p77 = por %p75, %p76
    %p78 = scmp.ne.s32.totalorder %s69, %s70
    %p79 = scmp.eq.s32.totalorder %s17, 0
    %p80 = por %p78, %p79
    %p81 = scmp.ne.s32.totalorder %s69, %s70
    %p82 = scmp.eq.s32.totalorder %s18, 1
    %p83 = por %p81, %p82
    %p85 = scmp.ne.s32.totalorder %s70, %s84
    %p86 = scmp.eq.s32.totalorder %s18, 0
    %p87 = por %p85, %p86
    %s88 = ssub.s32 %s12, %s19
    %p89 = scmp.eq.s32.totalorder %s88, 0
    %s91 = sadd.s32 %s90, 1
    %s92 = scalar_select %p89, %s90, %s91
    %p95 = pneg %p89
    %p96 = scmp.eq.s32.totalorder %s12, 1
    %p97 = por %p95, %p96
    %p98 = scmp.ne.s32.totalorder %s90, %s93
    %p99 = scmp.eq.s32.totalorder %s12, 0
    %p100 = por %p98, %p99
    %p101 = scmp.ne.s32.totalorder %s90, %s93
    %p102 = scmp.eq.s32.totalorder %s17, 1
    %p103 = por %p101, %p102
    %p104 = scmp.ne.s32.totalorder %s93, %s94
    %p105 = scmp.eq.s32.totalorder %s17, 0
    %p106 = por %p104, %p105
    %p107 = scmp.ne.s32.totalorder %s93, %s94
    %p108 = scmp.eq.s32.totalorder %s18, 1
    %p109 = por %p107, %p108
    %p111 = scmp.ne.s32.totalorder %s94, %s110
    %p112 = scmp.eq.s32.totalorder %s18, 0
    %p113 = por %p111, %p112
    %s115 = sadd.s32 %s114, 1
    %p118 = scmp.eq.s32.totalorder %s12, 1
    %p119 = scmp.ne.s32.totalorder %s114, %s116
    %p120 = scmp.eq.s32.totalorder %s12, 0
    %p121 = por %p119, %p120
    %p122 = scmp.ne.s32.totalorder %s114, %s116
    %p123 = scmp.eq.s32.totalorder %s17, 1
    %p124 = por %p122, %p123
    %p125 = scmp.ne.s32.totalorder %s116, %s117
    %p126 = scmp.eq.s32.totalorder %s17, 0
    %p127 = por %p125, %p126
    %p128 = scmp.ne.s32.totalorder %s116, %s117
    %p129 = scmp.eq.s32.totalorder %s18, 1
    %p130 = por %p128, %p129
    %p132 = scmp.ne.s32.totalorder %s117, %s131
    %p133 = scmp.eq.s32.totalorder %s18, 0
    %p134 = por %p132, %p133
    %s136 = sadd.s32 %s135, 1
    %p139 = scmp.eq.s32.totalorder %s12, 1
    %p140 = scmp.ne.s32.totalorder %s135, %s137
    %p141 = scmp.eq.s32.totalorder %s12, 0
    %p142 = por %p140, %p141
    %p143 = scmp.ne.s32.totalorder %s135, %s137
    %p144 = scmp.eq.s32.totalorder %s17, 1
    %p145 = por %p143, %p144
    %p146 = scmp.ne.s32.totalorder %s137, %s138
    %p147 = scmp.eq.s32.totalorder %s17, 0
    %p148 = por %p146, %p147
    %p149 = scmp.ne.s32.totalorder %s137, %s138
    %p150 = scmp.eq.s32.totalorder %s18, 1
    %p151 = por %p149, %p150
    %p153 = scmp.ne.s32.totalorder %s138, %s152
    %p154 = scmp.eq.s32.totalorder %s18, 0
    %p155 = por %p153, %p154
    %p156 = scmp.le.s32.totalorder 1, %s12
    %p157 = scmp.lt.s32.totalorder %s12, 3
    %p158 = pnand %p156, %p157
    %p159 = pneg %p158
    // Predicated region
    $region9: #{_lambda_.12} parent=5 // pred_check
      _
    $region10: #{_lambda_.12} parent=5 // pred_check_branch
      %161 = sbr.rel (%p158) target = $region12
    $region11: #{_lambda_.12} parent=5 // pred_region
      %s162 = ssub.s32 %s12, 1
      // Predicated region
      $region13: #{_lambda_.12} parent=11 // pred_check
        %p163 = pneg %p59
      $region14: #{_lambda_.12} parent=11 // pred_check_branch
        %165 = sbr.rel (%p163) target = $region16
      $region15: #{_lambda_.12} parent=11 // pred_region
        _
      $region16: #{_lambda_.12} parent=11 // pred_fallthru
        _
      // Predicated region
      $region17: #{_lambda_.12} parent=11 // pred_check
        %p166 = pneg %p80
      $region18: #{_lambda_.12} parent=11 // pred_check_branch
        %168 = sbr.rel (%p166) target = $region20
      $region19: #{_lambda_.12} parent=11 // pred_region
        _
      $region20: #{_lambda_.12} parent=11 // pred_fallthru
        _
    $region12: #{_lambda_.12} parent=5 // pred_fallthru
      _
    %p169 = scmp.lt.s32.totalorder %s12, 2
    // Predicated region
    $region21: #{_lambda_.12} parent=5 // pred_check
      %p170 = pneg %p169
    $region22: #{_lambda_.12} parent=5 // pred_check_branch
      %172 = sbr.rel (%p170) target = $region24
    $region23: #{_lambda_.12} parent=5 // pred_region
      // Predicated region
      $region25: #{_lambda_.12} parent=23 // pred_check
        %p173 = pneg %p32
      $region26: #{_lambda_.12} parent=23 // pred_check_branch
        %175 = sbr.rel (%p173) target = $region28
      $region27: #{_lambda_.12} parent=23 // pred_region
        %p176 = scmp.lt.s32.totalorder %s12, 1
        %s177 = scalar_select %p176, %s12, 1
        %s178 = smul.addr %s177, 3
        %s179 = smul.addr %s178, 4
        %s180 = scalar_lea.vmem %s0, %s179
      $region28: #{_lambda_.12} parent=23 // pred_fallthru
        _
    $region24: #{_lambda_.12} parent=5 // pred_fallthru
      _
    %p181 = scmp.le.s32.totalorder 1, %s12
    %p182 = scmp.lt.s32.totalorder %s12, 3
    %p183 = pnand %p181, %p182
    %p184 = pneg %p183
    // Predicated region
    $region29: #{_lambda_.12} parent=5 // pred_check
      _
    $region30: #{_lambda_.12} parent=5 // pred_check_branch
      %186 = sbr.rel (%p183) target = $region32
    $region31: #{_lambda_.12} parent=5 // pred_region
      %s187 = ssub.s32 %s12, 1
      %p188 = scmp.lt.s32.totalorder %s17, 1
      %s189 = scalar_select %p188, %s17, 1
      %s190 = smul.addr %s189, 3
      %s191 = smul.addr %s190, 4
      %s192 = scalar_lea.vmem %s0, %s191
      %p193 = pneg %p38
      %p194 = pneg %p35
      %p195 = pneg %p59
      %p196 = pneg %p56
      %p197 = pneg %p80
      %p198 = pneg %p77
      %p199 = pneg %p106
      %p200 = pneg %p103
      %p201 = scmp.lt.s32.totalorder %s17, 1
      %s202 = scalar_select %p201, %s17, 1
      %s203 = smul.addr %s202, 3
      %s204 = smul.addr %s203, 4
      %s205 = scalar_lea.vmem %s3, %s204
      %p206 = pneg %p127
      %p207 = pneg %p124
      %p208 = pneg %p148
      %p209 = pneg %p145
      %p210 = scmp.lt.s32.totalorder %s17, 1
      %s211 = scalar_select %p210, %s17, 1
      %s212 = smul.addr %s211, 3
      %s213 = smul.addr %s212, 4
      %s214 = scalar_lea.vmem %s0, %s213
      %p215 = scmp.lt.s32.totalorder %s17, 1
      %s216 = scalar_select %p215, %s17, 1
      %s217 = smul.addr %s216, 3
      %s218 = smul.addr %s217, 4
      %s219 = scalar_lea.vmem %s3, %s218
      %v220 = vld [vmem:[%s214] sm:$0xff]
      %v221 = vld [vmem:[%s214 + $0x8] sm:$0xf]
      %v222 = vld [vmem:[%s1] sm:$0xf]
      %s223 = scalar_lea.vmem %s1, 4
      %v224 = vld [vmem:[%s223] sm:$0xf]
      %v227 = vcombine.high %v220, %v220
      %228 = vrot.lane.b32.xlu0 %v220, 127
      %v229 = vpop.permute.xlu0 %228
      %230 = vrot.lane.b32.xlu0 %v227, 127
      %v231 = vpop.permute.xlu0 %230
      %232 = vrot.lane.b32.xlu0 %v221, 127
      %v233 = vpop.permute.xlu0 %232
      %vm234 = vcmask 1039360
      %v235 = vsel %vm234, %v229, %v231
      %v236 = vsel %vm234, %v231, %v233
      %vm237 = vcmask 31744
      %v239 = vsel %vm237, %v224, 0
      %vm241 = vcmask 1043456
      %v242 = vsel %vm241, %v235, 0
      %v244 = vsel %vm241, %v236, 0
      %v246 = vsel %vm241, %v233, 0
      %248 = vmatprep.subr.mxu0 %v244
      %249 = vmatpush1.msra.mxu0 %v242
      %250 = vmatprep.subr.mxu0 0.0
      %251 = vmatpush1.msra.mxu0 0.0
      %252 = vmatprep.subr.mxu0 0.0
      %253 = vmatpush1.msra.mxu0 0.0
      %254 = vmatprep.subr.mxu0 0.0
      %255 = vmatpush1.msra.mxu0 0.0
      %256 = vmatprep.subr.mxu0 0.0
      %257 = vmatpush1.msra.mxu0 0.0
      %258 = vmatprep.subr.mxu0 0.0
      %259 = vmatpush1.msra.mxu0 0.0
      %260 = vmatprep.subr.mxu0 0.0
      %261 = vmatpush1.msra.mxu0 0.0
      %262 = vmatprep.subr.mxu0 0.0
      %263 = vmatpush1.msra.mxu0 0.0
      %264 = vmatprep.subr.mxu0 0.0
      %265 = vmatpush1.msra.mxu0 0.0
      %266 = vmatprep.subr.mxu0 0.0
      %267 = vmatpush1.msra.mxu0 0.0
      %268 = vmatprep.subr.mxu0 0.0
      %269 = vmatpush1.msra.mxu0 0.0
      %270 = vmatprep.subr.mxu0 0.0
      %271 = vmatpush1.msra.mxu0 0.0
      %272 = vmatprep.subr.mxu0 0.0
      %273 = vmatpush1.msra.mxu0 0.0
      %274 = vmatprep.subr.mxu0 0.0
      %275 = vmatpush1.msra.mxu0 0.0
      %276 = vmatprep.subr.mxu0 0.0
      %277 = vmatpush1.msra.mxu0 0.0
      %278 = vmatprep.subr.mxu0 0.0
      %279 = vmatpush1.msra.mxu0 0.0
      %280 = vmatprep.subr.mxu0 0.0
      %281 = vmatpush1.msra.mxu0 0.0
      %282 = vmatprep.subr.mxu0 0.0
      %283 = vmatpush1.msra.mxu0 0.0
      %284 = vmatprep.subr.mxu0 0.0
      %285 = vmatpush1.msra.mxu0 0.0
      %286 = vmatprep.subr.mxu0 0.0
      %287 = vmatpush1.msra.mxu0 0.0
      %288 = vmatprep.subr.mxu0 0.0
      %289 = vmatpush1.msra.mxu0 0.0
      %290 = vmatprep.subr.mxu0 0.0
      %291 = vmatpush1.msra.mxu0 0.0
      %292 = vmatprep.subr.mxu0 0.0
      %293 = vmatpush1.msra.mxu0 0.0
      %294 = vmatprep.subr.mxu0 0.0
      %295 = vmatpush1.msra.mxu0 0.0
      %296 = vmatprep.subr.mxu0 0.0
      %297 = vmatpush1.msra.mxu0 0.0
      %298 = vmatprep.subr.mxu0 0.0
      %299 = vmatpush1.msra.mxu0 0.0
      %300 = vmatprep.subr.mxu0 0.0
      %301 = vmatpush1.msra.mxu0 0.0
      %302 = vmatprep.subr.mxu0 0.0
      %303 = vmatpush1.msra.mxu0 0.0
      %304 = vmatprep.subr.mxu0 0.0
      %305 = vmatpush1.msra.mxu0 0.0
      %306 = vmatprep.subr.mxu0 0.0
      %307 = vmatpush1.msra.mxu0 0.0
      %308 = vmatprep.subr.mxu0 0.0
      %309 = vmatpush1.msra.mxu0 0.0
      %310 = vmatprep.subr.mxu0 0.0
      %311 = vmatpush1.msra.mxu0 0.0
      %312 = vmatprep.mubr.f32.mxu0 0.0
      %313 = vmatmul.mubr.f32.gmra.mrb[0].mxu0 %v239
      %v314 = vpop.f32.mrb[0].mxu0
      %v315 = vadd.f32 0.0, %v314
      %v316 = vpop.f32.mrb[0].mxu0
      %v317 = vadd.f32 0.0, %v316
      %318 = vdwg.mxu0
      %319 = vmatprep.subr.mxu0 0.0
      %320 = vmatpush1.msra.mxu0 %v246
      %321 = vmatprep.subr.mxu0 0.0
      %322 = vmatpush1.msra.mxu0 0.0
      %323 = vmatprep.subr.mxu0 0.0
      %324 = vmatpush1.msra.mxu0 0.0
      %325 = vmatprep.subr.mxu0 0.0
      %326 = vmatpush1.msra.mxu0 0.0
      %327 = vmatprep.subr.mxu0 0.0
      %328 = vmatpush1.msra.mxu0 0.0
      %329 = vmatprep.subr.mxu0 0.0
      %330 = vmatpush1.msra.mxu0 0.0
      %331 = vmatprep.subr.mxu0 0.0
      %332 = vmatpush1.msra.mxu0 0.0
      %333 = vmatprep.subr.mxu0 0.0
      %334 = vmatpush1.msra.mxu0 0.0
      %335 = vmatprep.subr.mxu0 0.0
      %336 = vmatpush1.msra.mxu0 0.0
      %337 = vmatprep.subr.mxu0 0.0
      %338 = vmatpush1.msra.mxu0 0.0
      %339 = vmatprep.subr.mxu0 0.0
      %340 = vmatpush1.msra.mxu0 0.0
      %341 = vmatprep.subr.mxu0 0.0
      %342 = vmatpush1.msra.mxu0 0.0
      %343 = vmatprep.subr.mxu0 0.0
      %344 = vmatpush1.msra.mxu0 0.0
      %345 = vmatprep.subr.mxu0 0.0
      %346 = vmatpush1.msra.mxu0 0.0
      %347 = vmatprep.subr.mxu0 0.0
      %348 = vmatpush1.msra.mxu0 0.0
      %349 = vmatprep.subr.mxu0 0.0
      %350 = vmatpush1.msra.mxu0 0.0
      %351 = vmatprep.subr.mxu0 0.0
      %352 = vmatpush1.msra.mxu0 0.0
      %353 = vmatprep.subr.mxu0 0.0
      %354 = vmatpush1.msra.mxu0 0.0
      %355 = vmatprep.subr.mxu0 0.0
      %356 = vmatpush1.msra.mxu0 0.0
      %357 = vmatprep.subr.mxu0 0.0
      %358 = vmatpush1.msra.mxu0 0.0
      %359 = vmatprep.subr.mxu0 0.0
      %360 = vmatpush1.msra.mxu0 0.0
      %361 = vmatprep.subr.mxu0 0.0
      %362 = vmatpush1.msra.mxu0 0.0
      %363 = vmatprep.subr.mxu0 0.0
      %364 = vmatpush1.msra.mxu0 0.0
      %365 = vmatprep.subr.mxu0 0.0
      %366 = vmatpush1.msra.mxu0 0.0
      %367 = vmatprep.subr.mxu0 0.0
      %368 = vmatpush1.msra.mxu0 0.0
      %369 = vmatprep.subr.mxu0 0.0
      %370 = vmatpush1.msra.mxu0 0.0
      %371 = vmatprep.subr.mxu0 0.0
      %372 = vmatpush1.msra.mxu0 0.0
      %373 = vmatprep.subr.mxu0 0.0
      %374 = vmatpush1.msra.mxu0 0.0
      %375 = vmatprep.subr.mxu0 0.0
      %376 = vmatpush1.msra.mxu0 0.0
      %377 = vmatprep.subr.mxu0 0.0
      %378 = vmatpush1.msra.mxu0 0.0
      %379 = vmatprep.subr.mxu0 0.0
      %380 = vmatpush1.msra.mxu0 0.0
      %381 = vmatprep.subr.mxu0 0.0
      %382 = vmatpush1.msra.mxu0 0.0
      %383 = vmatprep.mubr.f32.mxu0 0.0
      %384 = vmatmul.mubr.f32.gmra.mrb[0].mxu0 %v239
      %v385 = vpop.f32.mrb[0].mxu0
      %v386 = vadd.f32 0.0, %v385
      %v387 = vpop.f32.mrb[0].mxu0
      %388 = vdwg.mxu0
      %v390 = vsel %vm237, %v222, 0
      %v392 = vsel %vm241, %v220, 0
      %v394 = vsel %vm241, %v227, 0
      %v396 = vsel %vm241, %v221, 0
      %398 = vmatprep.subr.mxu0 %v394
      %399 = vmatpush1.msra.mxu0 %v392
      %400 = vmatprep.subr.mxu0 0.0
      %401 = vmatpush1.msra.mxu0 0.0
      %402 = vmatprep.subr.mxu0 0.0
      %403 = vmatpush1.msra.mxu0 0.0
      %404 = vmatprep.subr.mxu0 0.0
      %405 = vmatpush1.msra.mxu0 0.0
      %406 = vmatprep.subr.mxu0 0.0
      %407 = vmatpush1.msra.mxu0 0.0
      %408 = vmatprep.subr.mxu0 0.0
      %409 = vmatpush1.msra.mxu0 0.0
      %410 = vmatprep.subr.mxu0 0.0
      %411 = vmatpush1.msra.mxu0 0.0
      %412 = vmatprep.subr.mxu0 0.0
      %413 = vmatpush1.msra.mxu0 0.0
      %414 = vmatprep.subr.mxu0 0.0
      %415 = vmatpush1.msra.mxu0 0.0
      %416 = vmatprep.subr.mxu0 0.0
      %417 = vmatpush1.msra.mxu0 0.0
      %418 = vmatprep.subr.mxu0 0.0
      %419 = vmatpush1.msra.mxu0 0.0
      %420 = vmatprep.subr.mxu0 0.0
      %421 = vmatpush1.msra.mxu0 0.0
      %422 = vmatprep.subr.mxu0 0.0
      %423 = vmatpush1.msra.mxu0 0.0
      %424 = vmatprep.subr.mxu0 0.0
      %425 = vmatpush1.msra.mxu0 0.0
      %426 = vmatprep.subr.mxu0 0.0
      %427 = vmatpush1.msra.mxu0 0.0
      %428 = vmatprep.subr.mxu0 0.0
      %429 = vmatpush1.msra.mxu0 0.0
      %430 = vmatprep.subr.mxu0 0.0
      %431 = vmatpush1.msra.mxu0 0.0
      %432 = vmatprep.subr.mxu0 0.0
      %433 = vmatpush1.msra.mxu0 0.0
      %434 = vmatprep.subr.mxu0 0.0
      %435 = vmatpush1.msra.mxu0 0.0
      %436 = vmatprep.subr.mxu0 0.0
      %437 = vmatpush1.msra.mxu0 0.0
      %438 = vmatprep.subr.mxu0 0.0
      %439 = vmatpush1.msra.mxu0 0.0
      %440 = vmatprep.subr.mxu0 0.0
      %441 = vmatpush1.msra.mxu0 0.0
      %442 = vmatprep.subr.mxu0 0.0
      %443 = vmatpush1.msra.mxu0 0.0
      %444 = vmatprep.subr.mxu0 0.0
      %445 = vmatpush1.msra.mxu0 0.0
      %446 = vmatprep.subr.mxu0 0.0
      %447 = vmatpush1.msra.mxu0 0.0
      %448 = vmatprep.subr.mxu0 0.0
      %449 = vmatpush1.msra.mxu0 0.0
      %450 = vmatprep.subr.mxu0 0.0
      %451 = vmatpush1.msra.mxu0 0.0
      %452 = vmatprep.subr.mxu0 0.0
      %453 = vmatpush1.msra.mxu0 0.0
      %454 = vmatprep.subr.mxu0 0.0
      %455 = vmatpush1.msra.mxu0 0.0
      %456 = vmatprep.subr.mxu0 0.0
      %457 = vmatpush1.msra.mxu0 0.0
      %458 = vmatprep.subr.mxu0 0.0
      %459 = vmatpush1.msra.mxu0 0.0
      %460 = vmatprep.subr.mxu0 0.0
      %461 = vmatpush1.msra.mxu0 0.0
      %462 = vmatprep.mubr.f32.mxu0 0.0
      %463 = vmatmul.mubr.f32.gmra.mrb[0].mxu0 %v390
      %v464 = vpop.f32.mrb[0].mxu0
      %v465 = vadd.f32 %v315, %v464
      %v466 = vpop.f32.mrb[0].mxu0
      %v467 = vadd.f32 %v317, %v466
      %468 = vdwg.mxu0
      %469 = vmatprep.subr.mxu0 0.0
      %470 = vmatpush1.msra.mxu0 %v396
      %471 = vmatprep.subr.mxu0 0.0
      %472 = vmatpush1.msra.mxu0 0.0
      %473 = vmatprep.subr.mxu0 0.0
      %474 = vmatpush1.msra.mxu0 0.0
      %475 = vmatprep.subr.mxu0 0.0
      %476 = vmatpush1.msra.mxu0 0.0
      %477 = vmatprep.subr.mxu0 0.0
      %478 = vmatpush1.msra.mxu0 0.0
      %479 = vmatprep.subr.mxu0 0.0
      %480 = vmatpush1.msra.mxu0 0.0
      %481 = vmatprep.subr.mxu0 0.0
      %482 = vmatpush1.msra.mxu0 0.0
      %483 = vmatprep.subr.mxu0 0.0
      %484 = vmatpush1.msra.mxu0 0.0
      %485 = vmatprep.subr.mxu0 0.0
      %486 = vmatpush1.msra.mxu0 0.0
      %487 = vmatprep.subr.mxu0 0.0
      %488 = vmatpush1.msra.mxu0 0.0
      %489 = vmatprep.subr.mxu0 0.0
      %490 = vmatpush1.msra.mxu0 0.0
      %491 = vmatprep.subr.mxu0 0.0
      %492 = vmatpush1.msra.mxu0 0.0
      %493 = vmatprep.subr.mxu0 0.0
      %494 = vmatpush1.msra.mxu0 0.0
      %495 = vmatprep.subr.mxu0 0.0
      %496 = vmatpush1.msra.mxu0 0.0
      %497 = vmatprep.subr.mxu0 0.0
      %498 = vmatpush1.msra.mxu0 0.0
      %499 = vmatprep.subr.mxu0 0.0
      %500 = vmatpush1.msra.mxu0 0.0
      %501 = vmatprep.subr.mxu0 0.0
      %502 = vmatpush1.msra.mxu0 0.0
      %503 = vmatprep.subr.mxu0 0.0
      %504 = vmatpush1.msra.mxu0 0.0
      %505 = vmatprep.subr.mxu0 0.0
      %506 = vmatpush1.msra.mxu0 0.0
      %507 = vmatprep.subr.mxu0 0.0
      %508 = vmatpush1.msra.mxu0 0.0
      %509 = vmatprep.subr.mxu0 0.0
      %510 = vmatpush1.msra.mxu0 0.0
      %511 = vmatprep.subr.mxu0 0.0
      %512 = vmatpush1.msra.mxu0 0.0
      %513 = vmatprep.subr.mxu0 0.0
      %514 = vmatpush1.msra.mxu0 0.0
      %515 = vmatprep.subr.mxu0 0.0
      %516 = vmatpush1.msra.mxu0 0.0
      %517 = vmatprep.subr.mxu0 0.0
      %518 = vmatpush1.msra.mxu0 0.0
      %519 = vmatprep.subr.mxu0 0.0
      %520 = vmatpush1.msra.mxu0 0.0
      %521 = vmatprep.subr.mxu0 0.0
      %522 = vmatpush1.msra.mxu0 0.0
      %523 = vmatprep.subr.mxu0 0.0
      %524 = vmatpush1.msra.mxu0 0.0
      %525 = vmatprep.subr.mxu0 0.0
      %526 = vmatpush1.msra.mxu0 0.0
      %527 = vmatprep.subr.mxu0 0.0
      %528 = vmatpush1.msra.mxu0 0.0
      %529 = vmatprep.subr.mxu0 0.0
      %530 = vmatpush1.msra.mxu0 0.0
      %531 = vmatprep.subr.mxu0 0.0
      %532 = vmatpush1.msra.mxu0 0.0
      %533 = vmatprep.mubr.f32.mxu0 0.0
      %534 = vmatmul.mubr.f32.gmra.mrb[0].mxu0 %v390
      %v535 = vpop.f32.mrb[0].mxu0
      %v536 = vadd.f32 %v386, %v535
      %v537 = vpop.f32.mrb[0].mxu0
      %538 = vdwg.mxu0
      %v539 = vld [vmem:[%s214] sm:$0xff]
      %v540 = vld [vmem:[%s214 + $0x8] sm:$0xf]
      %s541 = scalar_lea.vmem %s1, 8
      %v542 = vld [vmem:[%s541] sm:$0xf]
      %v545 = vcombine.high %v539, %v539
      %546 = vrot.lane.b32.xlu0 %v539, 126
      %v547 = vpop.permute.xlu0 %546
      %548 = vrot.lane.b32.xlu0 %v545, 126
      %v549 = vpop.permute.xlu0 %548
      %550 = vrot.lane.b32.xlu0 %v540, 126
      %v551 = vpop.permute.xlu0 %550
      %vm552 = vcmask 1031168
      %v553 = vsel %vm552, %v547, %v549
      %v554 = vsel %vm552, %v549, %v551
      %v556 = vsel %vm237, %v542, 0
      %v558 = vsel %vm241, %v553, 0
      %v560 = vsel %vm241, %v554, 0
      %v562 = vsel %vm241, %v551, 0
      %564 = vmatprep.subr.mxu0 %v560
      %565 = vmatpush1.msra.mxu0 %v558
      %566 = vmatprep.subr.mxu0 0.0
      %567 = vmatpush1.msra.mxu0 0.0
      %568 = vmatprep.subr.mxu0 0.0
      %569 = vmatpush1.msra.mxu0 0.0
      %570 = vmatprep.subr.mxu0 0.0
      %571 = vmatpush1.msra.mxu0 0.0
      %572 = vmatprep.subr.mxu0 0.0
      %573 = vmatpush1.msra.mxu0 0.0
      %574 = vmatprep.subr.mxu0 0.0
      %575 = vmatpush1.msra.mxu0 0.0
      %576 = vmatprep.subr.mxu0 0.0
      %577 = vmatpush1.msra.mxu0 0.0
      %578 = vmatprep.subr.mxu0 0.0
      %579 = vmatpush1.msra.mxu0 0.0
      %580 = vmatprep.subr.mxu0 0.0
      %581 = vmatpush1.msra.mxu0 0.0
      %582 = vmatprep.subr.mxu0 0.0
      %583 = vmatpush1.msra.mxu0 0.0
      %584 = vmatprep.subr.mxu0 0.0
      %585 = vmatpush1.msra.mxu0 0.0
      %586 = vmatprep.subr.mxu0 0.0
      %587 = vmatpush1.msra.mxu0 0.0
      %588 = vmatprep.subr.mxu0 0.0
      %589 = vmatpush1.msra.mxu0 0.0
      %590 = vmatprep.subr.mxu0 0.0
      %591 = vmatpush1.msra.mxu0 0.0
      %592 = vmatprep.subr.mxu0 0.0
      %593 = vmatpush1.msra.mxu0 0.0
      %594 = vmatprep.subr.mxu0 0.0
      %595 = vmatpush1.msra.mxu0 0.0
      %596 = vmatprep.subr.mxu0 0.0
      %597 = vmatpush1.msra.mxu0 0.0
      %598 = vmatprep.subr.mxu0 0.0
      %599 = vmatpush1.msra.mxu0 0.0
      %600 = vmatprep.subr.mxu0 0.0
      %601 = vmatpush1.msra.mxu0 0.0
      %602 = vmatprep.subr.mxu0 0.0
      %603 = vmatpush1.msra.mxu0 0.0
      %604 = vmatprep.subr.mxu0 0.0
      %605 = vmatpush1.msra.mxu0 0.0
      %606 = vmatprep.subr.mxu0 0.0
      %607 = vmatpush1.msra.mxu0 0.0
      %608 = vmatprep.subr.mxu0 0.0
      %609 = vmatpush1.msra.mxu0 0.0
      %610 = vmatprep.subr.mxu0 0.0
      %611 = vmatpush1.msra.mxu0 0.0
      %612 = vmatprep.subr.mxu0 0.0
      %613 = vmatpush1.msra.mxu0 0.0
      %614 = vmatprep.subr.mxu0 0.0
      %615 = vmatpush1.msra.mxu0 0.0
      %616 = vmatprep.subr.mxu0 0.0
      %617 = vmatpush1.msra.mxu0 0.0
      %618 = vmatprep.subr.mxu0 0.0
      %619 = vmatpush1.msra.mxu0 0.0
      %620 = vmatprep.subr.mxu0 0.0
      %621 = vmatpush1.msra.mxu0 0.0
      %622 = vmatprep.subr.mxu0 0.0
      %623 = vmatpush1.msra.mxu0 0.0
      %624 = vmatprep.subr.mxu0 0.0
      %625 = vmatpush1.msra.mxu0 0.0
      %626 = vmatprep.subr.mxu0 0.0
      %627 = vmatpush1.msra.mxu0 0.0
      %628 = vmatprep.mubr.f32.mxu0 0.0
      %629 = vmatmul.mubr.f32.gmra.mrb[0].mxu0 %v556
      %v630 = vpop.f32.mrb[0].mxu0
      %v631 = vadd.f32 0.0, %v630
      %v632 = vpop.f32.mrb[0].mxu0
      %v633 = vadd.f32 0.0, %v632
      %634 = vdwg.mxu0
      %635 = vmatprep.subr.mxu0 0.0
      %636 = vmatpush1.msra.mxu0 %v562
      %637 = vmatprep.subr.mxu0 0.0
      %638 = vmatpush1.msra.mxu0 0.0
      %639 = vmatprep.subr.mxu0 0.0
      %640 = vmatpush1.msra.mxu0 0.0
      %641 = vmatprep.subr.mxu0 0.0
      %642 = vmatpush1.msra.mxu0 0.0
      %643 = vmatprep.subr.mxu0 0.0
      %644 = vmatpush1.msra.mxu0 0.0
      %645 = vmatprep.subr.mxu0 0.0
      %646 = vmatpush1.msra.mxu0 0.0
      %647 = vmatprep.subr.mxu0 0.0
      %648 = vmatpush1.msra.mxu0 0.0
      %649 = vmatprep.subr.mxu0 0.0
      %650 = vmatpush1.msra.mxu0 0.0
      %651 = vmatprep.subr.mxu0 0.0
      %652 = vmatpush1.msra.mxu0 0.0
      %653 = vmatprep.subr.mxu0 0.0
      %654 = vmatpush1.msra.mxu0 0.0
      %655 = vmatprep.subr.mxu0 0.0
      %656 = vmatpush1.msra.mxu0 0.0
      %657 = vmatprep.subr.mxu0 0.0
      %658 = vmatpush1.msra.mxu0 0.0
      %659 = vmatprep.subr.mxu0 0.0
      %660 = vmatpush1.msra.mxu0 0.0
      %661 = vmatprep.subr.mxu0 0.0
      %662 = vmatpush1.msra.mxu0 0.0
      %663 = vmatprep.subr.mxu0 0.0
      %664 = vmatpush1.msra.mxu0 0.0
      %665 = vmatprep.subr.mxu0 0.0
      %666 = vmatpush1.msra.mxu0 0.0
      %667 = vmatprep.subr.mxu0 0.0
      %668 = vmatpush1.msra.mxu0 0.0
      %669 = vmatprep.subr.mxu0 0.0
      %670 = vmatpush1.msra.mxu0 0.0
      %671 = vmatprep.subr.mxu0 0.0
      %672 = vmatpush1.msra.mxu0 0.0
      %673 = vmatprep.subr.mxu0 0.0
      %674 = vmatpush1.msra.mxu0 0.0
      %675 = vmatprep.subr.mxu0 0.0
      %676 = vmatpush1.msra.mxu0 0.0
      %677 = vmatprep.subr.mxu0 0.0
      %678 = vmatpush1.msra.mxu0 0.0
      %679 = vmatprep.subr.mxu0 0.0
      %680 = vmatpush1.msra.mxu0 0.0
      %681 = vmatprep.subr.mxu0 0.0
      %682 = vmatpush1.msra.mxu0 0.0
      %683 = vmatprep.subr.mxu0 0.0
      %684 = vmatpush1.msra.mxu0 0.0
      %685 = vmatprep.subr.mxu0 0.0
      %686 = vmatpush1.msra.mxu0 0.0
      %687 = vmatprep.subr.mxu0 0.0
      %688 = vmatpush1.msra.mxu0 0.0
      %689 = vmatprep.subr.mxu0 0.0
      %690 = vmatpush1.msra.mxu0 0.0
      %691 = vmatprep.subr.mxu0 0.0
      %692 = vmatpush1.msra.mxu0 0.0
      %693 = vmatprep.subr.mxu0 0.0
      %694 = vmatpush1.msra.mxu0 0.0
      %695 = vmatprep.subr.mxu0 0.0
      %696 = vmatpush1.msra.mxu0 0.0
      %697 = vmatprep.subr.mxu0 0.0
      %698 = vmatpush1.msra.mxu0 0.0
      %699 = vmatprep.mubr.f32.mxu0 0.0
      %700 = vmatmul.mubr.f32.gmra.mrb[0].mxu0 %v556
      %v701 = vpop.f32.mrb[0].mxu0
      %v702 = vadd.f32 0.0, %v701
      %v703 = vpop.f32.mrb[0].mxu0
      %704 = vdwg.mxu0
      %v705 = vadd.f32 %v465, %v631
      %v706 = vadd.f32 %v467, %v633
      %v707 = vadd.f32 %v536, %v702
      %v708 = vld [vmem:[%s214] sm:$0xff]
      %v709 = vld [vmem:[%s214 + $0x8] sm:$0xf]
      %s710 = scalar_lea.vmem %s1, 12
      %v711 = vld [vmem:[%s710] sm:$0xf]
      %v714 = vcombine.high %v708, %v708
      %715 = vrot.lane.b32.xlu0 %v708, 110
      %v716 = vpop.permute.xlu0 %715
      %717 = vrot.lane.b32.xlu0 %v714, 110
      %v718 = vpop.permute.xlu0 %717
      %719 = vrot.lane.b32.xlu0 %v709, 110
      %v720 = vpop.permute.xlu0 %719
      %vm721 = vcmask 900096
      %v722 = vsel %vm721, %v716, %v718
      %v723 = vsel %vm721, %v718, %v720
      %v725 = vsel %vm237, %v711, 0
      %v727 = vsel %vm241, %v722, 0
      %v729 = vsel %vm241, %v723, 0
      %v731 = vsel %vm241, %v720, 0
      %733 = vmatprep.subr.mxu0 %v729
      %734 = vmatpush1.msra.mxu0 %v727
      %735 = vmatprep.subr.mxu0 0.0
      %736 = vmatpush1.msra.mxu0 0.0
      %737 = vmatprep.subr.mxu0 0.0
      %738 = vmatpush1.msra.mxu0 0.0
      %739 = vmatprep.subr.mxu0 0.0
      %740 = vmatpush1.msra.mxu0 0.0
      %741 = vmatprep.subr.mxu0 0.0
      %742 = vmatpush1.msra.mxu0 0.0
      %743 = vmatprep.subr.mxu0 0.0
      %744 = vmatpush1.msra.mxu0 0.0
      %745 = vmatprep.subr.mxu0 0.0
      %746 = vmatpush1.msra.mxu0 0.0
      %747 = vmatprep.subr.mxu0 0.0
      %748 = vmatpush1.msra.mxu0 0.0
      %749 = vmatprep.subr.mxu0 0.0
      %750 = vmatpush1.msra.mxu0 0.0
      %751 = vmatprep.subr.mxu0 0.0
      %752 = vmatpush1.msra.mxu0 0.0
      %753 = vmatprep.subr.mxu0 0.0
      %754 = vmatpush1.msra.mxu0 0.0
      %755 = vmatprep.subr.mxu0 0.0
      %756 = vmatpush1.msra.mxu0 0.0
      %757 = vmatprep.subr.mxu0 0.0
      %758 = vmatpush1.msra.mxu0 0.0
      %759 = vmatprep.subr.mxu0 0.0
      %760 = vmatpush1.msra.mxu0 0.0
      %761 = vmatprep.subr.mxu0 0.0
      %762 = vmatpush1.msra.mxu0 0.0
      %763 = vmatprep.subr.mxu0 0.0
      %764 = vmatpush1.msra.mxu0 0.0
      %765 = vmatprep.subr.mxu0 0.0
      %766 = vmatpush1.msra.mxu0 0.0
      %767 = vmatprep.subr.mxu0 0.0
      %768 = vmatpush1.msra.mxu0 0.0
      %769 = vmatprep.subr.mxu0 0.0
      %770 = vmatpush1.msra.mxu0 0.0
      %771 = vmatprep.subr.mxu0 0.0
      %772 = vmatpush1.msra.mxu0 0.0
      %773 = vmatprep.subr.mxu0 0.0
      %774 = vmatpush1.msra.mxu0 0.0
      %775 = vmatprep.subr.mxu0 0.0
      %776 = vmatpush1.msra.mxu0 0.0
      %777 = vmatprep.subr.mxu0 0.0
      %778 = vmatpush1.msra.mxu0 0.0
      %779 = vmatprep.subr.mxu0 0.0
      %780 = vmatpush1.msra.mxu0 0.0
      %781 = vmatprep.subr.mxu0 0.0
      %782 = vmatpush1.msra.mxu0 0.0
      %783 = vmatprep.subr.mxu0 0.0
      %784 = vmatpush1.msra.mxu0 0.0
      %785 = vmatprep.subr.mxu0 0.0
      %786 = vmatpush1.msra.mxu0 0.0
      %787 = vmatprep.subr.mxu0 0.0
      %788 = vmatpush1.msra.mxu0 0.0
      %789 = vmatprep.subr.mxu0 0.0
      %790 = vmatpush1.msra.mxu0 0.0
      %791 = vmatprep.subr.mxu0 0.0
      %792 = vmatpush1.msra.mxu0 0.0
      %793 = vmatprep.subr.mxu0 0.0
      %794 = vmatpush1.msra.mxu0 0.0
      %795 = vmatprep.subr.mxu0 0.0
      %796 = vmatpush1.msra.mxu0 0.0
      %797 = vmatprep.mubr.f32.mxu0 0.0
      %798 = vmatmul.mubr.f32.gmra.mrb[0].mxu0 %v725
      %v799 = vpop.f32.mrb[0].mxu0
      %v800 = vadd.f32 0.0, %v799
      %v801 = vpop.f32.mrb[0].mxu0
      %v802 = vadd.f32 0.0, %v801
      %803 = vdwg.mxu0
      %804 = vmatprep.subr.mxu0 0.0
      %805 = vmatpush1.msra.mxu0 %v731
      %806 = vmatprep.subr.mxu0 0.0
      %807 = vmatpush1.msra.mxu0 0.0
      %808 = vmatprep.subr.mxu0 0.0
      %809 = vmatpush1.msra.mxu0 0.0
      %810 = vmatprep.subr.mxu0 0.0
      %811 = vmatpush1.msra.mxu0 0.0
      %812 = vmatprep.subr.mxu0 0.0
      %813 = vmatpush1.msra.mxu0 0.0
      %814 = vmatprep.subr.mxu0 0.0
      %815 = vmatpush1.msra.mxu0 0.0
      %816 = vmatprep.subr.mxu0 0.0
      %817 = vmatpush1.msra.mxu0 0.0
      %818 = vmatprep.subr.mxu0 0.0
      %819 = vmatpush1.msra.mxu0 0.0
      %820 = vmatprep.subr.mxu0 0.0
      %821 = vmatpush1.msra.mxu0 0.0
      %822 = vmatprep.subr.mxu0 0.0
      %823 = vmatpush1.msra.mxu0 0.0
      %824 = vmatprep.subr.mxu0 0.0
      %825 = vmatpush1.msra.mxu0 0.0
      %826 = vmatprep.subr.mxu0 0.0
      %827 = vmatpush1.msra.mxu0 0.0
      %828 = vmatprep.subr.mxu0 0.0
      %829 = vmatpush1.msra.mxu0 0.0
      %830 = vmatprep.subr.mxu0 0.0
      %831 = vmatpush1.msra.mxu0 0.0
      %832 = vmatprep.subr.mxu0 0.0
      %833 = vmatpush1.msra.mxu0 0.0
      %834 = vmatprep.subr.mxu0 0.0
      %835 = vmatpush1.msra.mxu0 0.0
      %836 = vmatprep.subr.mxu0 0.0
      %837 = vmatpush1.msra.mxu0 0.0
      %838 = vmatprep.subr.mxu0 0.0
      %839 = vmatpush1.msra.mxu0 0.0
      %840 = vmatprep.subr.mxu0 0.0
      %841 = vmatpush1.msra.mxu0 0.0
      %842 = vmatprep.subr.mxu0 0.0
      %843 = vmatpush1.msra.mxu0 0.0
      %844 = vmatprep.subr.mxu0 0.0
      %845 = vmatpush1.msra.mxu0 0.0
      %846 = vmatprep.subr.mxu0 0.0
      %847 = vmatpush1.msra.mxu0 0.0
      %848 = vmatprep.subr.mxu0 0.0
      %849 = vmatpush1.msra.mxu0 0.0
      %850 = vmatprep.subr.mxu0 0.0
      %851 = vmatpush1.msra.mxu0 0.0
      %852 = vmatprep.subr.mxu0 0.0
      %853 = vmatpush1.msra.mxu0 0.0
      %854 = vmatprep.subr.mxu0 0.0
      %855 = vmatpush1.msra.mxu0 0.0
      %856 = vmatprep.subr.mxu0 0.0
      %857 = vmatpush1.msra.mxu0 0.0
      %858 = vmatprep.subr.mxu0 0.0
      %859 = vmatpush1.msra.mxu0 0.0
      %860 = vmatprep.subr.mxu0 0.0
      %861 = vmatpush1.msra.mxu0 0.0
      %862 = vmatprep.subr.mxu0 0.0
      %863 = vmatpush1.msra.mxu0 0.0
      %864 = vmatprep.subr.mxu0 0.0
      %865 = vmatpush1.msra.mxu0 0.0
      %866 = vmatprep.subr.mxu0 0.0
      %867 = vmatpush1.msra.mxu0 0.0
      %868 = vmatprep.mubr.f32.mxu0 0.0
      %869 = vmatmul.mubr.f32.gmra.mrb[0].mxu0 %v725
      %v870 = vpop.f32.mrb[0].mxu0
      %v871 = vadd.f32 0.0, %v870
      %v872 = vpop.f32.mrb[0].mxu0
      %873 = vdwg.mxu0
      %v874 = vadd.f32 %v705, %v800
      %v875 = vadd.f32 %v706, %v802
      %v876 = vadd.f32 %v707, %v871
      %v877 = vld [vmem:[%s214] sm:$0xff]
      %v878 = vld [vmem:[%s214 + $0x8] sm:$0xf]
      %s879 = scalar_lea.vmem %s1, 16
      %v880 = vld [vmem:[%s879] sm:$0xf]
      %v883 = vcombine.high %v877, %v877
      %884 = vrot.lane.b32.xlu0 %v877, 109
      %v885 = vpop.permute.xlu0 %884
      %886 = vrot.lane.b32.xlu0 %v883, 109
      %v887 = vpop.permute.xlu0 %886
      %888 = vrot.lane.b32.xlu0 %v878, 109
      %v889 = vpop.permute.xlu0 %888
      %vm890 = vcmask 891904
      %v891 = vsel %vm890, %v885, %v887
      %v892 = vsel %vm890, %v887, %v889
      %v894 = vsel %vm237, %v880, 0
      %v896 = vsel %vm241, %v891, 0
      %v898 = vsel %vm241, %v892, 0
      %v900 = vsel %vm241, %v889, 0
      %902 = vmatprep.subr.mxu0 %v898
      %903 = vmatpush1.msra.mxu0 %v896
      %904 = vmatprep.subr.mxu0 0.0
      %905 = vmatpush1.msra.mxu0 0.0
      %906 = vmatprep.subr.mxu0 0.0
      %907 = vmatpush1.msra.mxu0 0.0
      %908 = vmatprep.subr.mxu0 0.0
      %909 = vmatpush1.msra.mxu0 0.0
      %910 = vmatprep.subr.mxu0 0.0
      %911 = vmatpush1.msra.mxu0 0.0
      %912 = vmatprep.subr.mxu0 0.0
      %913 = vmatpush1.msra.mxu0 0.0
      %914 = vmatprep.subr.mxu0 0.0
      %915 = vmatpush1.msra.mxu0 0.0
      %916 = vmatprep.subr.mxu0 0.0
      %917 = vmatpush1.msra.mxu0 0.0
      %918 = vmatprep.subr.mxu0 0.0
      %919 = vmatpush1.msra.mxu0 0.0
      %920 = vmatprep.subr.mxu0 0.0
      %921 = vmatpush1.msra.mxu0 0.0
      %922 = vmatprep.subr.mxu0 0.0
      %923 = vmatpush1.msra.mxu0 0.0
      %924 = vmatprep.subr.mxu0 0.0
      %925 = vmatpush1.msra.mxu0 0.0
      %926 = vmatprep.subr.mxu0 0.0
      %927 = vmatpush1.msra.mxu0 0.0
      %928 = vmatprep.subr.mxu0 0.0
      %929 = vmatpush1.msra.mxu0 0.0
      %930 = vmatprep.subr.mxu0 0.0
      %931 = vmatpush1.msra.mxu0 0.0
      %932 = vmatprep.subr.mxu0 0.0
      %933 = vmatpush1.msra.mxu0 0.0
      %934 = vmatprep.subr.mxu0 0.0
      %935 = vmatpush1.msra.mxu0 0.0
      %936 = vmatprep.subr.mxu0 0.0
      %937 = vmatpush1.msra.mxu0 0.0
      %938 = vmatprep.subr.mxu0 0.0
      %939 = vmatpush1.msra.mxu0 0.0
      %940 = vmatprep.subr.mxu0 0.0
      %941 = vmatpush1.msra.mxu0 0.0
      %942 = vmatprep.subr.mxu0 0.0
      %943 = vmatpush1.msra.mxu0 0.0
      %944 = vmatprep.subr.mxu0 0.0
      %945 = vmatpush1.msra.mxu0 0.0
      %946 = vmatprep.subr.mxu0 0.0
      %947 = vmatpush1.msra.mxu0 0.0
      %948 = vmatprep.subr.mxu0 0.0
      %949 = vmatpush1.msra.mxu0 0.0
      %950 = vmatprep.subr.mxu0 0.0
      %951 = vmatpush1.msra.mxu0 0.0
      %952 = vmatprep.subr.mxu0 0.0
      %953 = vmatpush1.msra.mxu0 0.0
      %954 = vmatprep.subr.mxu0 0.0
      %955 = vmatpush1.msra.mxu0 0.0
      %956 = vmatprep.subr.mxu0 0.0
      %957 = vmatpush1.msra.mxu0 0.0
      %958 = vmatprep.subr.mxu0 0.0
      %959 = vmatpush1.msra.mxu0 0.0
      %960 = vmatprep.subr.mxu0 0.0
      %961 = vmatpush1.msra.mxu0 0.0
      %962 = vmatprep.subr.mxu0 0.0
      %963 = vmatpush1.msra.mxu0 0.0
      %964 = vmatprep.subr.mxu0 0.0
      %965 = vmatpush1.msra.mxu0 0.0
      %966 = vmatprep.mubr.f32.mxu0 0.0
      %967 = vmatmul.mubr.f32.gmra.mrb[0].mxu0 %v894
      %v968 = vpop.f32.mrb[0].mxu0
      %v969 = vadd.f32 0.0, %v968
      %v970 = vpop.f32.mrb[0].mxu0
      %v971 = vadd.f32 0.0, %v970
      %972 = vdwg.mxu0
      %973 = vmatprep.subr.mxu0 0.0
      %974 = vmatpush1.msra.mxu0 %v900
      %975 = vmatprep.subr.mxu0 0.0
      %976 = vmatpush1.msra.mxu0 0.0
      %977 = vmatprep.subr.mxu0 0.0
      %978 = vmatpush1.msra.mxu0 0.0
      %979 = vmatprep.subr.mxu0 0.0
      %980 = vmatpush1.msra.mxu0 0.0
      %981 = vmatprep.subr.mxu0 0.0
      %982 = vmatpush1.msra.mxu0 0.0
      %983 = vmatprep.subr.mxu0 0.0
      %984 = vmatpush1.msra.mxu0 0.0
      %985 = vmatprep.subr.mxu0 0.0
      %986 = vmatpush1.msra.mxu0 0.0
      %987 = vmatprep.subr.mxu0 0.0
      %988 = vmatpush1.msra.mxu0 0.0
      %989 = vmatprep.subr.mxu0 0.0
      %990 = vmatpush1.msra.mxu0 0.0
      %991 = vmatprep.subr.mxu0 0.0
      %992 = vmatpush1.msra.mxu0 0.0
      %993 = vmatprep.subr.mxu0 0.0
      %994 = vmatpush1.msra.mxu0 0.0
      %995 = vmatprep.subr.mxu0 0.0
      %996 = vmatpush1.msra.mxu0 0.0
      %997 = vmatprep.subr.mxu0 0.0
      %998 = vmatpush1.msra.mxu0 0.0
      %999 = vmatprep.subr.mxu0 0.0
      %1000 = vmatpush1.msra.mxu0 0.0
      %1001 = vmatprep.subr.mxu0 0.0
      %1002 = vmatpush1.msra.mxu0 0.0
      %1003 = vmatprep.subr.mxu0 0.0
      %1004 = vmatpush1.msra.mxu0 0.0
      %1005 = vmatprep.subr.mxu0 0.0
      %1006 = vmatpush1.msra.mxu0 0.0
      %1007 = vmatprep.subr.mxu0 0.0
      %1008 = vmatpush1.msra.mxu0 0.0
      %1009 = vmatprep.subr.mxu0 0.0
      %1010 = vmatpush1.msra.mxu0 0.0
      %1011 = vmatprep.subr.mxu0 0.0
      %1012 = vmatpush1.msra.mxu0 0.0
      %1013 = vmatprep.subr.mxu0 0.0
      %1014 = vmatpush1.msra.mxu0 0.0
      %1015 = vmatprep.subr.mxu0 0.0
      %1016 = vmatpush1.msra.mxu0 0.0
      %1017 = vmatprep.subr.mxu0 0.0
      %1018 = vmatpush1.msra.mxu0 0.0
      %1019 = vmatprep.subr.mxu0 0.0
      %1020 = vmatpush1.msra.mxu0 0.0
      %1021 = vmatprep.subr.mxu0 0.0
      %1022 = vmatpush1.msra.mxu0 0.0
      %1023 = vmatprep.subr.mxu0 0.0
      %1024 = vmatpush1.msra.mxu0 0.0
      %1025 = vmatprep.subr.mxu0 0.0
      %1026 = vmatpush1.msra.mxu0 0.0
      %1027 = vmatprep.subr.mxu0 0.0
      %1028 = vmatpush1.msra.mxu0 0.0
      %1029 = vmatprep.subr.mxu0 0.0
      %1030 = vmatpush1.msra.mxu0 0.0
      %1031 = vmatprep.subr.mxu0 0.0
      %1032 = vmatpush1.msra.mxu0 0.0
      %1033 = vmatprep.subr.mxu0 0.0
      %1034 = vmatpush1.msra.mxu0 0.0
      %1035 = vmatprep.subr.mxu0 0.0
      %1036 = vmatpush1.msra.mxu0 0.0
      %1037 = vmatprep.mubr.f32.mxu0 0.0
      %1038 = vmatmul.mubr.f32.gmra.mrb[0].mxu0 %v894
      %v1039 = vpop.f32.mrb[0].mxu0
      %v1040 = vadd.f32 0.0, %v1039
      %v1041 = vpop.f32.mrb[0].mxu0
      %1042 = vdwg.mxu0
      %v1043 = vadd.f32 %v874, %v969
      %v1044 = vadd.f32 %v875, %v971
      %v1045 = vadd.f32 %v876, %v1040
      %v1046 = vld [vmem:[%s214] sm:$0xff]
      %v1047 = vld [vmem:[%s214 + $0x8] sm:$0xf]
      %s1048 = scalar_lea.vmem %s1, 20
      %v1049 = vld [vmem:[%s1048] sm:$0xf]
      %v1052 = vcombine.high %v1046, %v1046
      %1053 = vrot.lane.b32.xlu0 %v1046, 108
      %v1054 = vpop.permute.xlu0 %1053
      %1055 = vrot.lane.b32.xlu0 %v1052, 108
      %v1056 = vpop.permute.xlu0 %1055
      %1057 = vrot.lane.b32.xlu0 %v1047, 108
      %v1058 = vpop.permute.xlu0 %1057
      %vm1059 = vcmask 883712
      %v1060 = vsel %vm1059, %v1054, %v1056
      %v1061 = vsel %vm1059, %v1056, %v1058
      %v1063 = vsel %vm237, %v1049, 0
      %v1065 = vsel %vm241, %v1060, 0
      %v1067 = vsel %vm241, %v1061, 0
      %v1069 = vsel %vm241, %v1058, 0
      %1071 = vmatprep.subr.mxu0 %v1067
      %1072 = vmatpush1.msra.mxu0 %v1065
      %1073 = vmatprep.subr.mxu0 0.0
      %1074 = vmatpush1.msra.mxu0 0.0
      %1075 = vmatprep.subr.mxu0 0.0
      %1076 = vmatpush1.msra.mxu0 0.0
      %1077 = vmatprep.subr.mxu0 0.0
      %1078 = vmatpush1.msra.mxu0 0.0
      %1079 = vmatprep.subr.mxu0 0.0
      %1080 = vmatpush1.msra.mxu0 0.0
      %1081 = vmatprep.subr.mxu0 0.0
      %1082 = vmatpush1.msra.mxu0 0.0
      %1083 = vmatprep.subr.mxu0 0.0
      %1084 = vmatpush1.msra.mxu0 0.0
      %1085 = vmatprep.subr.mxu0 0.0
      %1086 = vmatpush1.msra.mxu0 0.0
      %1087 = vmatprep.subr.mxu0 0.0
      %1088 = vmatpush1.msra.mxu0 0.0
      %1089 = vmatprep.subr.mxu0 0.0
      %1090 = vmatpush1.msra.mxu0 0.0
      %1091 = vmatprep.subr.mxu0 0.0
      %1092 = vmatpush1.msra.mxu0 0.0
      %1093 = vmatprep.subr.mxu0 0.0
      %1094 = vmatpush1.msra.mxu0 0.0
      %1095 = vmatprep.subr.mxu0 0.0
      %1096 = vmatpush1.msra.mxu0 0.0
      %1097 = vmatprep.subr.mxu0 0.0
      %1098 = vmatpush1.msra.mxu0 0.0
      %1099 = vmatprep.subr.mxu0 0.0
      %1100 = vmatpush1.msra.mxu0 0.0
      %1101 = vmatprep.subr.mxu0 0.0
      %1102 = vmatpush1.msra.mxu0 0.0
      %1103 = vmatprep.subr.mxu0 0.0
      %1104 = vmatpush1.msra.mxu0 0.0
      %1105 = vmatprep.subr.mxu0 0.0
      %1106 = vmatpush1.msra.mxu0 0.0
      %1107 = vmatprep.subr.mxu0 0.0
      %1108 = vmatpush1.msra.mxu0 0.0
      %1109 = vmatprep.subr.mxu0 0.0
      %1110 = vmatpush1.msra.mxu0 0.0
      %1111 = vmatprep.subr.mxu0 0.0
      %1112 = vmatpush1.msra.mxu0 0.0
      %1113 = vmatprep.subr.mxu0 0.0
      %1114 = vmatpush1.msra.mxu0 0.0
      %1115 = vmatprep.subr.mxu0 0.0
      %1116 = vmatpush1.msra.mxu0 0.0
      %1117 = vmatprep.subr.mxu0 0.0
      %1118 = vmatpush1.msra.mxu0 0.0
      %1119 = vmatprep.subr.mxu0 0.0
      %1120 = vmatpush1.msra.mxu0 0.0
      %1121 = vmatprep.subr.mxu0 0.0
      %1122 = vmatpush1.msra.mxu0 0.0
      %1123 = vmatprep.subr.mxu0 0.0
      %1124 = vmatpush1.msra.mxu0 0.0
      %1125 = vmatprep.subr.mxu0 0.0
      %1126 = vmatpush1.msra.mxu0 0.0
      %1127 = vmatprep.subr.mxu0 0.0
      %1128 = vmatpush1.msra.mxu0 0.0
      %1129 = vmatprep.subr.mxu0 0.0
      %1130 = vmatpush1.msra.mxu0 0.0
      %1131 = vmatprep.subr.mxu0 0.0
      %1132 = vmatpush1.msra.mxu0 0.0
      %1133 = vmatprep.subr.mxu0 0.0
      %1134 = vmatpush1.msra.mxu0 0.0
      %1135 = vmatprep.mubr.f32.mxu0 0.0
      %1136 = vmatmul.mubr.f32.gmra.mrb[0].mxu0 %v1063
      %v1137 = vpop.f32.mrb[0].mxu0
      %v1138 = vadd.f32 0.0, %v1137
      %v1139 = vpop.f32.mrb[0].mxu0
      %v1140 = vadd.f32 0.0, %v1139
      %1141 = vdwg.mxu0
      %1142 = vmatprep.subr.mxu0 0.0
      %1143 = vmatpush1.msra.mxu0 %v1069
      %1144 = vmatprep.subr.mxu0 0.0
      %1145 = vmatpush1.msra.mxu0 0.0
      %1146 = vmatprep.subr.mxu0 0.0
      %1147 = vmatpush1.msra.mxu0 0.0
      %1148 = vmatprep.subr.mxu0 0.0
      %1149 = vmatpush1.msra.mxu0 0.0
      %1150 = vmatprep.subr.mxu0 0.0
      %1151 = vmatpush1.msra.mxu0 0.0
      %1152 = vmatprep.subr.mxu0 0.0
      %1153 = vmatpush1.msra.mxu0 0.0
      %1154 = vmatprep.subr.mxu0 0.0
      %1155 = vmatpush1.msra.mxu0 0.0
      %1156 = vmatprep.subr.mxu0 0.0
      %1157 = vmatpush1.msra.mxu0 0.0
      %1158 = vmatprep.subr.mxu0 0.0
      %1159 = vmatpush1.msra.mxu0 0.0
      %1160 = vmatprep.subr.mxu0 0.0
      %1161 = vmatpush1.msra.mxu0 0.0
      %1162 = vmatprep.subr.mxu0 0.0
      %1163 = vmatpush1.msra.mxu0 0.0
      %1164 = vmatprep.subr.mxu0 0.0
      %1165 = vmatpush1.msra.mxu0 0.0
      %1166 = vmatprep.subr.mxu0 0.0
      %1167 = vmatpush1.msra.mxu0 0.0
      %1168 = vmatprep.subr.mxu0 0.0
      %1169 = vmatpush1.msra.mxu0 0.0
      %1170 = vmatprep.subr.mxu0 0.0
      %1171 = vmatpush1.msra.mxu0 0.0
      %1172 = vmatprep.subr.mxu0 0.0
      %1173 = vmatpush1.msra.mxu0 0.0
      %1174 = vmatprep.subr.mxu0 0.0
      %1175 = vmatpush1.msra.mxu0 0.0
      %1176 = vmatprep.subr.mxu0 0.0
      %1177 = vmatpush1.msra.mxu0 0.0
      %1178 = vmatprep.subr.mxu0 0.0
      %1179 = vmatpush1.msra.mxu0 0.0
      %1180 = vmatprep.subr.mxu0 0.0
      %1181 = vmatpush1.msra.mxu0 0.0
      %1182 = vmatprep.subr.mxu0 0.0
      %1183 = vmatpush1.msra.mxu0 0.0
      %1184 = vmatprep.subr.mxu0 0.0
      %1185 = vmatpush1.msra.mxu0 0.0
      %1186 = vmatprep.subr.mxu0 0.0
      %1187 = vmatpush1.msra.mxu0 0.0
      %1188 = vmatprep.subr.mxu0 0.0
      %1189 = vmatpush1.msra.mxu0 0.0
      %1190 = vmatprep.subr.mxu0 0.0
      %1191 = vmatpush1.msra.mxu0 0.0
      %1192 = vmatprep.subr.mxu0 0.0
      %1193 = vmatpush1.msra.mxu0 0.0
      %1194 = vmatprep.subr.mxu0 0.0
      %1195 = vmatpush1.msra.mxu0 0.0
      %1196 = vmatprep.subr.mxu0 0.0
      %1197 = vmatpush1.msra.mxu0 0.0
      %1198 = vmatprep.subr.mxu0 0.0
      %1199 = vmatpush1.msra.mxu0 0.0
      %1200 = vmatprep.subr.mxu0 0.0
      %1201 = vmatpush1.msra.mxu0 0.0
      %1202 = vmatprep.subr.mxu0 0.0
      %1203 = vmatpush1.msra.mxu0 0.0
      %1204 = vmatprep.subr.mxu0 0.0
      %1205 = vmatpush1.msra.mxu0 0.0
      %1206 = vmatprep.mubr.f32.mxu0 0.0
      %1207 = vmatmul.mubr.f32.gmra.mrb[0].mxu0 %v1063
      %v1208 = vpop.f32.mrb[0].mxu0
      %v1209 = vadd.f32 0.0, %v1208
      %v1210 = vpop.f32.mrb[0].mxu0
      %1211 = vdwg.mxu0
      %v1212 = vadd.f32 %v1043, %v1138
      %v1213 = vadd.f32 %v1044, %v1140
      %v1214 = vadd.f32 %v1045, %v1209
      %v1215 = vld [vmem:[%s214] sm:$0xff]
      %v1216 = vld [vmem:[%s214 + $0x8] sm:$0xf]
      %s1217 = scalar_lea.vmem %s1, 24
      %v1218 = vld [vmem:[%s1217] sm:$0xf]
      %v1221 = vcombine.high %v1215, %v1215
      %1222 = vrot.lane.b32.xlu0 %v1215, 92
      %v1223 = vpop.permute.xlu0 %1222
      %1224 = vrot.lane.b32.xlu0 %v1221, 92
      %v1225 = vpop.permute.xlu0 %1224
      %1226 = vrot.lane.b32.xlu0 %v1216, 92
      %v1227 = vpop.permute.xlu0 %1226
      %vm1228 = vcmask 752640
      %v1229 = vsel %vm1228, %v1223, %v1225
      %v1230 = vsel %vm1228, %v1225, %v1227
      %v1232 = vsel %vm237, %v1218, 0
      %v1234 = vsel %vm241, %v1229, 0
      %v1236 = vsel %vm241, %v1230, 0
      %v1238 = vsel %vm241, %v1227, 0
      %1240 = vmatprep.subr.mxu0 %v1236
      %1241 = vmatpush1.msra.mxu0 %v1234
      %1242 = vmatprep.subr.mxu0 0.0
      %1243 = vmatpush1.msra.mxu0 0.0
      %1244 = vmatprep.subr.mxu0 0.0
      %1245 = vmatpush1.msra.mxu0 0.0
      %1246 = vmatprep.subr.mxu0 0.0
      %1247 = vmatpush1.msra.mxu0 0.0
      %1248 = vmatprep.subr.mxu0 0.0
      %1249 = vmatpush1.msra.mxu0 0.0
      %1250 = vmatprep.subr.mxu0 0.0
      %1251 = vmatpush1.msra.mxu0 0.0
      %1252 = vmatprep.subr.mxu0 0.0
      %1253 = vmatpush1.msra.mxu0 0.0
      %1254 = vmatprep.subr.mxu0 0.0
      %1255 = vmatpush1.msra.mxu0 0.0
      %1256 = vmatprep.subr.mxu0 0.0
      %1257 = vmatpush1.msra.mxu0 0.0
      %1258 = vmatprep.subr.mxu0 0.0
      %1259 = vmatpush1.msra.mxu0 0.0
      %1260 = vmatprep.subr.mxu0 0.0
      %1261 = vmatpush1.msra.mxu0 0.0
      %1262 = vmatprep.subr.mxu0 0.0
      %1263 = vmatpush1.msra.mxu0 0.0
      %1264 = vmatprep.subr.mxu0 0.0
      %1265 = vmatpush1.msra.mxu0 0.0
      %1266 = vmatprep.subr.mxu0 0.0
      %1267 = vmatpush1.msra.mxu0 0.0
      %1268 = vmatprep.subr.mxu0 0.0
      %1269 = vmatpush1.msra.mxu0 0.0
      %1270 = vmatprep.subr.mxu0 0.0
      %1271 = vmatpush1.msra.mxu0 0.0
      %1272 = vmatprep.subr.mxu0 0.0
      %1273 = vmatpush1.msra.mxu0 0.0
      %1274 = vmatprep.subr.mxu0 0.0
      %1275 = vmatpush1.msra.mxu0 0.0
      %1276 = vmatprep.subr.mxu0 0.0
      %1277 = vmatpush1.msra.mxu0 0.0
      %1278 = vmatprep.subr.mxu0 0.0
      %1279 = vmatpush1.msra.mxu0 0.0
      %1280 = vmatprep.subr.mxu0 0.0
      %1281 = vmatpush1.msra.mxu0 0.0
      %1282 = vmatprep.subr.mxu0 0.0
      %1283 = vmatpush1.msra.mxu0 0.0
      %1284 = vmatprep.subr.mxu0 0.0
      %1285 = vmatpush1.msra.mxu0 0.0
      %1286 = vmatprep.subr.mxu0 0.0
      %1287 = vmatpush1.msra.mxu0 0.0
      %1288 = vmatprep.subr.mxu0 0.0
      %1289 = vmatpush1.msra.mxu0 0.0
      %1290 = vmatprep.subr.mxu0 0.0
      %1291 = vmatpush1.msra.mxu0 0.0
      %1292 = vmatprep.subr.mxu0 0.0
      %1293 = vmatpush1.msra.mxu0 0.0
      %1294 = vmatprep.subr.mxu0 0.0
      %1295 = vmatpush1.msra.mxu0 0.0
      %1296 = vmatprep.subr.mxu0 0.0
      %1297 = vmatpush1.msra.mxu0 0.0
      %1298 = vmatprep.subr.mxu0 0.0
      %1299 = vmatpush1.msra.mxu0 0.0
      %1300 = vmatprep.subr.mxu0 0.0
      %1301 = vmatpush1.msra.mxu0 0.0
      %1302 = vmatprep.subr.mxu0 0.0
      %1303 = vmatpush1.msra.mxu0 0.0
      %1304 = vmatprep.mubr.f32.mxu0 0.0
      %1305 = vmatmul.mubr.f32.gmra.mrb[0].mxu0 %v1232
      %v1306 = vpop.f32.mrb[0].mxu0
      %v1307 = vadd.f32 0.0, %v1306
      %v1308 = vpop.f32.mrb[0].mxu0
      %v1309 = vadd.f32 0.0, %v1308
      %1310 = vdwg.mxu0
      %1311 = vmatprep.subr.mxu0 0.0
      %1312 = vmatpush1.msra.mxu0 %v1238
      %1313 = vmatprep.subr.mxu0 0.0
      %1314 = vmatpush1.msra.mxu0 0.0
      %1315 = vmatprep.subr.mxu0 0.0
      %1316 = vmatpush1.msra.mxu0 0.0
      %1317 = vmatprep.subr.mxu0 0.0
      %1318 = vmatpush1.msra.mxu0 0.0
      %1319 = vmatprep.subr.mxu0 0.0
      %1320 = vmatpush1.msra.mxu0 0.0
      %1321 = vmatprep.subr.mxu0 0.0
      %1322 = vmatpush1.msra.mxu0 0.0
      %1323 = vmatprep.subr.mxu0 0.0
      %1324 = vmatpush1.msra.mxu0 0.0
      %1325 = vmatprep.subr.mxu0 0.0
      %1326 = vmatpush1.msra.mxu0 0.0
      %1327 = vmatprep.subr.mxu0 0.0
      %1328 = vmatpush1.msra.mxu0 0.0
      %1329 = vmatprep.subr.mxu0 0.0
      %1330 = vmatpush1.msra.mxu0 0.0
      %1331 = vmatprep.subr.mxu0 0.0
      %1332 = vmatpush1.msra.mxu0 0.0
      %1333 = vmatprep.subr.mxu0 0.0
      %1334 = vmatpush1.msra.mxu0 0.0
      %1335 = vmatprep.subr.mxu0 0.0
      %1336 = vmatpush1.msra.mxu0 0.0
      %1337 = vmatprep.subr.mxu0 0.0
      %1338 = vmatpush1.msra.mxu0 0.0
      %1339 = vmatprep.subr.mxu0 0.0
      %1340 = vmatpush1.msra.mxu0 0.0
      %1341 = vmatprep.subr.mxu0 0.0
      %1342 = vmatpush1.msra.mxu0 0.0
      %1343 = vmatprep.subr.mxu0 0.0
      %1344 = vmatpush1.msra.mxu0 0.0
      %1345 = vmatprep.subr.mxu0 0.0
      %1346 = vmatpush1.msra.mxu0 0.0
      %1347 = vmatprep.subr.mxu0 0.0
      %1348 = vmatpush1.msra.mxu0 0.0
      %1349 = vmatprep.subr.mxu0 0.0
      %1350 = vmatpush1.msra.mxu0 0.0
      %1351 = vmatprep.subr.mxu0 0.0
      %1352 = vmatpush1.msra.mxu0 0.0
      %1353 = vmatprep.subr.mxu0 0.0
      %1354 = vmatpush1.msra.mxu0 0.0
      %1355 = vmatprep.subr.mxu0 0.0
      %1356 = vmatpush1.msra.mxu0 0.0
      %1357 = vmatprep.subr.mxu0 0.0
      %1358 = vmatpush1.msra.mxu0 0.0
      %1359 = vmatprep.subr.mxu0 0.0
      %1360 = vmatpush1.msra.mxu0 0.0
      %1361 = vmatprep.subr.mxu0 0.0
      %1362 = vmatpush1.msra.mxu0 0.0
      %1363 = vmatprep.subr.mxu0 0.0
      %1364 = vmatpush1.msra.mxu0 0.0
      %1365 = vmatprep.subr.mxu0 0.0
      %1366 = vmatpush1.msra.mxu0 0.0
      %1367 = vmatprep.subr.mxu0 0.0
      %1368 = vmatpush1.msra.mxu0 0.0
      %1369 = vmatprep.subr.mxu0 0.0
      %1370 = vmatpush1.msra.mxu0 0.0
      %1371 = vmatprep.subr.mxu0 0.0
      %1372 = vmatpush1.msra.mxu0 0.0
      %1373 = vmatprep.subr.mxu0 0.0
      %1374 = vmatpush1.msra.mxu0 0.0
      %1375 = vmatprep.mubr.f32.mxu0 0.0
      %1376 = vmatmul.mubr.f32.gmra.mrb[0].mxu0 %v1232
      %v1377 = vpop.f32.mrb[0].mxu0
      %v1378 = vadd.f32 0.0, %v1377
      %v1379 = vpop.f32.mrb[0].mxu0
      %1380 = vdwg.mxu0
      %v1381 = vadd.f32 %v1212, %v1307
      %v1382 = vadd.f32 %v1213, %v1309
      %v1383 = vadd.f32 %v1214, %v1378
      %v1384 = vld [vmem:[%s214] sm:$0xff]
      %v1385 = vld [vmem:[%s214 + $0x8] sm:$0xf]
      %s1386 = scalar_lea.vmem %s1, 28
      %v1387 = vld [vmem:[%s1386] sm:$0xf]
      %v1390 = vcombine.high %v1384, %v1384
      %1391 = vrot.lane.b32.xlu0 %v1384, 91
      %v1392 = vpop.permute.xlu0 %1391
      %1393 = vrot.lane.b32.xlu0 %v1390, 91
      %v1394 = vpop.permute.xlu0 %1393
      %1395 = vrot.lane.b32.xlu0 %v1385, 91
      %v1396 = vpop.permute.xlu0 %1395
      %vm1397 = vcmask 744448
      %v1398 = vsel %vm1397, %v1392, %v1394
      %v1399 = vsel %vm1397, %v1394, %v1396
      %v1401 = vsel %vm237, %v1387, 0
      %v1403 = vsel %vm241, %v1398, 0
      %v1405 = vsel %vm241, %v1399, 0
      %v1407 = vsel %vm241, %v1396, 0
      %1409 = vmatprep.subr.mxu0 %v1405
      %1410 = vmatpush1.msra.mxu0 %v1403
      %1411 = vmatprep.subr.mxu0 0.0
      %1412 = vmatpush1.msra.mxu0 0.0
      %1413 = vmatprep.subr.mxu0 0.0
      %1414 = vmatpush1.msra.mxu0 0.0
      %1415 = vmatprep.subr.mxu0 0.0
      %1416 = vmatpush1.msra.mxu0 0.0
      %1417 = vmatprep.subr.mxu0 0.0
      %1418 = vmatpush1.msra.mxu0 0.0
      %1419 = vmatprep.subr.mxu0 0.0
      %1420 = vmatpush1.msra.mxu0 0.0
      %1421 = vmatprep.subr.mxu0 0.0
      %1422 = vmatpush1.msra.mxu0 0.0
      %1423 = vmatprep.subr.mxu0 0.0
      %1424 = vmatpush1.msra.mxu0 0.0
      %1425 = vmatprep.subr.mxu0 0.0
      %1426 = vmatpush1.msra.mxu0 0.0
      %1427 = vmatprep.subr.mxu0 0.0
      %1428 = vmatpush1.msra.mxu0 0.0
      %1429 = vmatprep.subr.mxu0 0.0
      %1430 = vmatpush1.msra.mxu0 0.0
      %1431 = vmatprep.subr.mxu0 0.0
      %1432 = vmatpush1.msra.mxu0 0.0
      %1433 = vmatprep.subr.mxu0 0.0
      %1434 = vmatpush1.msra.mxu0 0.0
      %1435 = vmatprep.subr.mxu0 0.0
      %1436 = vmatpush1.msra.mxu0 0.0
      %1437 = vmatprep.subr.mxu0 0.0
      %1438 = vmatpush1.msra.mxu0 0.0
      %1439 = vmatprep.subr.mxu0 0.0
      %1440 = vmatpush1.msra.mxu0 0.0
      %1441 = vmatprep.subr.mxu0 0.0
      %1442 = vmatpush1.msra.mxu0 0.0
      %1443 = vmatprep.subr.mxu0 0.0
      %1444 = vmatpush1.msra.mxu0 0.0
      %1445 = vmatprep.subr.mxu0 0.0
      %1446 = vmatpush1.msra.mxu0 0.0
      %1447 = vmatprep.subr.mxu0 0.0
      %1448 = vmatpush1.msra.mxu0 0.0
      %1449 = vmatprep.subr.mxu0 0.0
      %1450 = vmatpush1.msra.mxu0 0.0
      %1451 = vmatprep.subr.mxu0 0.0
      %1452 = vmatpush1.msra.mxu0 0.0
      %1453 = vmatprep.subr.mxu0 0.0
      %1454 = vmatpush1.msra.mxu0 0.0
      %1455 = vmatprep.subr.mxu0 0.0
      %1456 = vmatpush1.msra.mxu0 0.0
      %1457 = vmatprep.subr.mxu0 0.0
      %1458 = vmatpush1.msra.mxu0 0.0
      %1459 = vmatprep.subr.mxu0 0.0
      %1460 = vmatpush1.msra.mxu0 0.0
      %1461 = vmatprep.subr.mxu0 0.0
      %1462 = vmatpush1.msra.mxu0 0.0
      %1463 = vmatprep.subr.mxu0 0.0
      %1464 = vmatpush1.msra.mxu0 0.0
      %1465 = vmatprep.subr.mxu0 0.0
      %1466 = vmatpush1.msra.mxu0 0.0
      %1467 = vmatprep.subr.mxu0 0.0
      %1468 = vmatpush1.msra.mxu0 0.0
      %1469 = vmatprep.subr.mxu0 0.0
      %1470 = vmatpush1.msra.mxu0 0.0
      %1471 = vmatprep.subr.mxu0 0.0
      %1472 = vmatpush1.msra.mxu0 0.0
      %1473 = vmatprep.mubr.f32.mxu0 0.0
      %1474 = vmatmul.mubr.f32.gmra.mrb[0].mxu0 %v1401
      %v1475 = vpop.f32.mrb[0].mxu0
      %v1476 = vadd.f32 0.0, %v1475
      %v1477 = vpop.f32.mrb[0].mxu0
      %v1478 = vadd.f32 0.0, %v1477
      %1479 = vdwg.mxu0
      %1480 = vmatprep.subr.mxu0 0.0
      %1481 = vmatpush1.msra.mxu0 %v1407
      %1482 = vmatprep.subr.mxu0 0.0
      %1483 = vmatpush1.msra.mxu0 0.0
      %1484 = vmatprep.subr.mxu0 0.0
      %1485 = vmatpush1.msra.mxu0 0.0
      %1486 = vmatprep.subr.mxu0 0.0
      %1487 = vmatpush1.msra.mxu0 0.0
      %1488 = vmatprep.subr.mxu0 0.0
      %1489 = vmatpush1.msra.mxu0 0.0
      %1490 = vmatprep.subr.mxu0 0.0
      %1491 = vmatpush1.msra.mxu0 0.0
      %1492 = vmatprep.subr.mxu0 0.0
      %1493 = vmatpush1.msra.mxu0 0.0
      %1494 = vmatprep.subr.mxu0 0.0
      %1495 = vmatpush1.msra.mxu0 0.0
      %1496 = vmatprep.subr.mxu0 0.0
      %1497 = vmatpush1.msra.mxu0 0.0
      %1498 = vmatprep.subr.mxu0 0.0
      %1499 = vmatpush1.msra.mxu0 0.0
      %1500 = vmatprep.subr.mxu0 0.0
      %1501 = vmatpush1.msra.mxu0 0.0
      %1502 = vmatprep.subr.mxu0 0.0
      %1503 = vmatpush1.msra.mxu0 0.0
      %1504 = vmatprep.subr.mxu0 0.0
      %1505 = vmatpush1.msra.mxu0 0.0
      %1506 = vmatprep.subr.mxu0 0.0
      %1507 = vmatpush1.msra.mxu0 0.0
      %1508 = vmatprep.subr.mxu0 0.0
      %1509 = vmatpush1.msra.mxu0 0.0
      %1510 = vmatprep.subr.mxu0 0.0
      %1511 = vmatpush1.msra.mxu0 0.0
      %1512 = vmatprep.subr.mxu0 0.0
      %1513 = vmatpush1.msra.mxu0 0.0
      %1514 = vmatprep.subr.mxu0 0.0
      %1515 = vmatpush1.msra.mxu0 0.0
      %1516 = vmatprep.subr.mxu0 0.0
      %1517 = vmatpush1.msra.mxu0 0.0
      %1518 = vmatprep.subr.mxu0 0.0
      %1519 = vmatpush1.msra.mxu0 0.0
      %1520 = vmatprep.subr.mxu0 0.0
      %1521 = vmatpush1.msra.mxu0 0.0
      %1522 = vmatprep.subr.mxu0 0.0
      %1523 = vmatpush1.msra.mxu0 0.0
      %1524 = vmatprep.subr.mxu0 0.0
      %1525 = vmatpush1.msra.mxu0 0.0
      %1526 = vmatprep.subr.mxu0 0.0
      %1527 = vmatpush1.msra.mxu0 0.0
      %1528 = vmatprep.subr.mxu0 0.0
      %1529 = vmatpush1.msra.mxu0 0.0
      %1530 = vmatprep.subr.mxu0 0.0
      %1531 = vmatpush1.msra.mxu0 0.0
      %1532 = vmatprep.subr.mxu0 0.0
      %1533 = vmatpush1.msra.mxu0 0.0
      %1534 = vmatprep.subr.mxu0 0.0
      %1535 = vmatpush1.msra.mxu0 0.0
      %1536 = vmatprep.subr.mxu0 0.0
      %1537 = vmatpush1.msra.mxu0 0.0
      %1538 = vmatprep.subr.mxu0 0.0
      %1539 = vmatpush1.msra.mxu0 0.0
      %1540 = vmatprep.subr.mxu0 0.0
      %1541 = vmatpush1.msra.mxu0 0.0
      %1542 = vmatprep.subr.mxu0 0.0
      %1543 = vmatpush1.msra.mxu0 0.0
      %1544 = vmatprep.mubr.f32.mxu0 0.0
      %1545 = vmatmul.mubr.f32.gmra.mrb[0].mxu0 %v1401
      %v1546 = vpop.f32.mrb[0].mxu0
      %v1547 = vadd.f32 0.0, %v1546
      %v1548 = vpop.f32.mrb[0].mxu0
      %1549 = vdwg.mxu0
      %v1550 = vadd.f32 %v1381, %v1476
      %v1551 = vadd.f32 %v1382, %v1478
      %v1552 = vadd.f32 %v1383, %v1547
      %v1553 = vld [vmem:[%s214] sm:$0xff]
      %v1554 = vld [vmem:[%s214 + $0x8] sm:$0xf]
      %s1555 = scalar_lea.vmem %s1, 32
      %v1556 = vld [vmem:[%s1555] sm:$0xf]
      %v1559 = vcombine.high %v1553, %v1553
      %1560 = vrot.lane.b32.xlu0 %v1553, 90
      %v1561 = vpop.permute.xlu0 %1560
      %1562 = vrot.lane.b32.xlu0 %v1559, 90
      %v1563 = vpop.permute.xlu0 %1562
      %1564 = vrot.lane.b32.xlu0 %v1554, 90
      %v1565 = vpop.permute.xlu0 %1564
      %vm1566 = vcmask 736256
      %v1567 = vsel %vm1566, %v1561, %v1563
      %v1568 = vsel %vm1566, %v1563, %v1565
      %v1570 = vsel %vm237, %v1556, 0
      %v1572 = vsel %vm241, %v1567, 0
      %v1574 = vsel %vm241, %v1568, 0
      %v1576 = vsel %vm241, %v1565, 0
      %1578 = vmatprep.subr.mxu0 %v1574
      %1579 = vmatpush1.msra.mxu0 %v1572
      %1580 = vmatprep.subr.mxu0 0.0
      %1581 = vmatpush1.msra.mxu0 0.0
      %1582 = vmatprep.subr.mxu0 0.0
      %1583 = vmatpush1.msra.mxu0 0.0
      %1584 = vmatprep.subr.mxu0 0.0
      %1585 = vmatpush1.msra.mxu0 0.0
      %1586 = vmatprep.subr.mxu0 0.0
      %1587 = vmatpush1.msra.mxu0 0.0
      %1588 = vmatprep.subr.mxu0 0.0
      %1589 = vmatpush1.msra.mxu0 0.0
      %1590 = vmatprep.subr.mxu0 0.0
      %1591 = vmatpush1.msra.mxu0 0.0
      %1592 = vmatprep.subr.mxu0 0.0
      %1593 = vmatpush1.msra.mxu0 0.0
      %1594 = vmatprep.subr.mxu0 0.0
      %1595 = vmatpush1.msra.mxu0 0.0
      %1596 = vmatprep.subr.mxu0 0.0
      %1597 = vmatpush1.msra.mxu0 0.0
      %1598 = vmatprep.subr.mxu0 0.0
      %1599 = vmatpush1.msra.mxu0 0.0
      %1600 = vmatprep.subr.mxu0 0.0
      %1601 = vmatpush1.msra.mxu0 0.0
      %1602 = vmatprep.subr.mxu0 0.0
      %1603 = vmatpush1.msra.mxu0 0.0
      %1604 = vmatprep.subr.mxu0 0.0
      %1605 = vmatpush1.msra.mxu0 0.0
      %1606 = vmatprep.subr.mxu0 0.0
      %1607 = vmatpush1.msra.mxu0 0.0
      %1608 = vmatprep.subr.mxu0 0.0
      %1609 = vmatpush1.msra.mxu0 0.0
      %1610 = vmatprep.subr.mxu0 0.0
      %1611 = vmatpush1.msra.mxu0 0.0
      %1612 = vmatprep.subr.mxu0 0.0
      %1613 = vmatpush1.msra.mxu0 0.0
      %1614 = vmatprep.subr.mxu0 0.0
      %1615 = vmatpush1.msra.mxu0 0.0
      %1616 = vmatprep.subr.mxu0 0.0
      %1617 = vmatpush1.msra.mxu0 0.0
      %1618 = vmatprep.subr.mxu0 0.0
      %1619 = vmatpush1.msra.mxu0 0.0
      %1620 = vmatprep.subr.mxu0 0.0
      %1621 = vmatpush1.msra.mxu0 0.0
      %1622 = vmatprep.subr.mxu0 0.0
      %1623 = vmatpush1.msra.mxu0 0.0
      %1624 = vmatprep.subr.mxu0 0.0
      %1625 = vmatpush1.msra.mxu0 0.0
      %1626 = vmatprep.subr.mxu0 0.0
      %1627 = vmatpush1.msra.mxu0 0.0
      %1628 = vmatprep.subr.mxu0 0.0
      %1629 = vmatpush1.msra.mxu0 0.0
      %1630 = vmatprep.subr.mxu0 0.0
      %1631 = vmatpush1.msra.mxu0 0.0
      %1632 = vmatprep.subr.mxu0 0.0
      %1633 = vmatpush1.msra.mxu0 0.0
      %1634 = vmatprep.subr.mxu0 0.0
      %1635 = vmatpush1.msra.mxu0 0.0
      %1636 = vmatprep.subr.mxu0 0.0
      %1637 = vmatpush1.msra.mxu0 0.0
      %1638 = vmatprep.subr.mxu0 0.0
      %1639 = vmatpush1.msra.mxu0 0.0
      %1640 = vmatprep.subr.mxu0 0.0
      %1641 = vmatpush1.msra.mxu0 0.0
      %1642 = vmatprep.mubr.f32.mxu0 0.0
      %1643 = vmatmul.mubr.f32.gmra.mrb[0].mxu0 %v1570
      %v1644 = vpop.f32.mrb[0].mxu0
      %v1645 = vadd.f32 0.0, %v1644
      %v1646 = vpop.f32.mrb[0].mxu0
      %v1647 = vadd.f32 0.0, %v1646
      %1648 = vdwg.mxu0
      %1649 = vmatprep.subr.mxu0 0.0
      %1650 = vmatpush1.msra.mxu0 %v1576
      %1651 = vmatprep.subr.mxu0 0.0
      %1652 = vmatpush1.msra.mxu0 0.0
      %1653 = vmatprep.subr.mxu0 0.0
      %1654 = vmatpush1.msra.mxu0 0.0
      %1655 = vmatprep.subr.mxu0 0.0
      %1656 = vmatpush1.msra.mxu0 0.0
      %1657 = vmatprep.subr.mxu0 0.0
      %1658 = vmatpush1.msra.mxu0 0.0
      %1659 = vmatprep.subr.mxu0 0.0
      %1660 = vmatpush1.msra.mxu0 0.0
      %1661 = vmatprep.subr.mxu0 0.0
      %1662 = vmatpush1.msra.mxu0 0.0
      %1663 = vmatprep.subr.mxu0 0.0
      %1664 = vmatpush1.msra.mxu0 0.0
      %1665 = vmatprep.subr.mxu0 0.0
      %1666 = vmatpush1.msra.mxu0 0.0
      %1667 = vmatprep.subr.mxu0 0.0
      %1668 = vmatpush1.msra.mxu0 0.0
      %1669 = vmatprep.subr.mxu0 0.0
      %1670 = vmatpush1.msra.mxu0 0.0
      %1671 = vmatprep.subr.mxu0 0.0
      %1672 = vmatpush1.msra.mxu0 0.0
      %1673 = vmatprep.subr.mxu0 0.0
      %1674 = vmatpush1.msra.mxu0 0.0
      %1675 = vmatprep.subr.mxu0 0.0
      %1676 = vmatpush1.msra.mxu0 0.0
      %1677 = vmatprep.subr.mxu0 0.0
      %1678 = vmatpush1.msra.mxu0 0.0
      %1679 = vmatprep.subr.mxu0 0.0
      %1680 = vmatpush1.msra.mxu0 0.0
      %1681 = vmatprep.subr.mxu0 0.0
      %1682 = vmatpush1.msra.mxu0 0.0
      %1683 = vmatprep.subr.mxu0 0.0
      %1684 = vmatpush1.msra.mxu0 0.0
      %1685 = vmatprep.subr.mxu0 0.0
      %1686 = vmatpush1.msra.mxu0 0.0
      %1687 = vmatprep.subr.mxu0 0.0
      %1688 = vmatpush1.msra.mxu0 0.0
      %1689 = vmatprep.subr.mxu0 0.0
      %1690 = vmatpush1.msra.mxu0 0.0
      %1691 = vmatprep.subr.mxu0 0.0
      %1692 = vmatpush1.msra.mxu0 0.0
      %1693 = vmatprep.subr.mxu0 0.0
      %1694 = vmatpush1.msra.mxu0 0.0
      %1695 = vmatprep.subr.mxu0 0.0
      %1696 = vmatpush1.msra.mxu0 0.0
      %1697 = vmatprep.subr.mxu0 0.0
      %1698 = vmatpush1.msra.mxu0 0.0
      %1699 = vmatprep.subr.mxu0 0.0
      %1700 = vmatpush1.msra.mxu0 0.0
      %1701 = vmatprep.subr.mxu0 0.0
      %1702 = vmatpush1.msra.mxu0 0.0
      %1703 = vmatprep.subr.mxu0 0.0
      %1704 = vmatpush1.msra.mxu0 0.0
      %1705 = vmatprep.subr.mxu0 0.0
      %1706 = vmatpush1.msra.mxu0 0.0
      %1707 = vmatprep.subr.mxu0 0.0
      %1708 = vmatpush1.msra.mxu0 0.0
      %1709 = vmatprep.subr.mxu0 0.0
      %1710 = vmatpush1.msra.mxu0 0.0
      %1711 = vmatprep.subr.mxu0 0.0
      %1712 = vmatpush1.msra.mxu0 0.0
      %1713 = vmatprep.mubr.f32.mxu0 0.0
      %1714 = vmatmul.mubr.f32.gmra.mrb[0].mxu0 %v1570
      %v1715 = vpop.f32.mrb[0].mxu0
      %v1716 = vadd.f32 0.0, %v1715
      %v1717 = vpop.f32.mrb[0].mxu0
      %1718 = vdwg.mxu0
      %v1719 = vadd.f32 %v1550, %v1645
      %v1720 = vadd.f32 %v1551, %v1647
      %v1721 = vadd.f32 %v1552, %v1716
      %v1724 = vcombine.low %v1719, %v1720
      %1726 = vst [vmem:[%s219] sm:$0xff] %v1724
      %vm1727 = vcmask 551936
      %1728 = vst.msk [vmem:[%s219 + $0x8] sm:$0xf] %vm1727, %v1721
      %v1729 = vld [vmem:[%s2] sm:$0x7]
      %v1731 = vlaneseq
      %v1732 = vshrl.u32 %v1731, 7
      %v1733 = vsub.s32 0, %v1732
      %v1734 = vrot.slane %v1729, %v1733
      %v1735 = vlaneseq
      %v1736 = vshrl.u32 %v1735, 7
      %v1737 = vsub.s32 1, %v1736
      %v1738 = vrot.slane %v1729, %v1737
      %v1739 = vlaneseq
      %v1740 = vshrl.u32 %v1739, 7
      %v1741 = vsub.s32 2, %v1740
      %v1742 = vrot.slane %v1729, %v1741
      %v1746 = vmul.f32 %v1719, %v1734
      %v1747 = vmul.f32 %v1720, %v1738
      %v1748 = vmul.f32 %v1721, %v1742
      %p1749 = scmp.eq.s32.totalorder %s17, 0
      // Predicated region
      $region33: #{_lambda_.12} parent=31 // pred_check
        %p1750 = pneg %p1749
      $region34: #{_lambda_.12} parent=31 // pred_check_branch
        %1752 = sbr.rel (%p1750) target = $region36
      $region35: #{_lambda_.12} parent=31 // pred_region
        %vm1753 = vcmask 3072
        %1754 = vst.msk [vmem:[%s4] sm:$0xf] %vm1753, 0.0
        %1755 = vst.msk [vmem:[%s5] sm:$0xf] %vm1753, 0.0
      $region36: #{_lambda_.12} parent=31 // pred_fallthru
        _
      %v1756 = vld [vmem:[%s4] sm:$0xf]
      %v1757 = vsel %vm241, %v1746, 0.0
      %v1758 = vsel %vm241, %v1747, 0.0
      %v1759 = vadd.f32 %v1757, %v1758
      %v1760 = vsel %vm1727, %v1748, 0.0
      %v1761 = vadd.f32 %v1759, %v1760
      %1762 = vadd.xlane.f32.xlu0 %v1761
      %v1763 = vpop.xlane.xlu0 %1762
      %v1764 = vadd.f32 %v1756, %v1763
      %vm1765 = vcmask 3072
      %1766 = vst.msk [vmem:[%s4] sm:$0xf] %vm1765, %v1764
      %v1767 = vld [vmem:[%s5] sm:$0xf]
      %v1768 = vmul.f32 %v1746, %v1719
      %v1769 = vmul.f32 %v1747, %v1720
      %v1770 = vmul.f32 %v1748, %v1721
      %v1771 = vsel %vm241, %v1768, 0.0
      %v1772 = vsel %vm241, %v1769, 0.0
      %v1773 = vadd.f32 %v1771, %v1772
      %v1774 = vsel %vm1727, %v1770, 0.0
      %v1775 = vadd.f32 %v1773, %v1774
      %1776 = vadd.xlane.f32.xlu0 %v1775
      %v1777 = vpop.xlane.xlu0 %1776
      %v1778 = vadd.f32 %v1767, %v1777
      %1779 = vst.msk [vmem:[%s5] sm:$0xf] %vm1765, %v1778
      %p1780 = scmp.lt.s32.totalorder %s17, 1
      %s1781 = scalar_select %p1780, %s17, 1
      %s1782 = smul.addr %s1781, 3
      %s1783 = smul.addr %s1782, 4
      %s1784 = scalar_lea.vmem %s3, %s1783
      // Predicated region
      $region37: #{_lambda_.12} parent=31 // pred_check
        %p1785 = pneg %p103
      $region38: #{_lambda_.12} parent=31 // pred_check_branch
        %1787 = sbr.rel (%p1785) target = $region40
      $region39: #{_lambda_.12} parent=31 // pred_region
        _
      $region40: #{_lambda_.12} parent=31 // pred_fallthru
        _
      // Predicated region
      $region41: #{_lambda_.12} parent=31 // pred_check
        %p1788 = pneg %p124
      $region42: #{_lambda_.12} parent=31 // pred_check_branch
        %1790 = sbr.rel (%p1788) target = $region44
      $region43: #{_lambda_.12} parent=31 // pred_region
        _
      $region44: #{_lambda_.12} parent=31 // pred_fallthru
        _
      // Predicated region
      $region45: #{_lambda_.12} parent=31 // pred_check
        %p1791 = pneg %p145
      $region46: #{_lambda_.12} parent=31 // pred_check_branch
        %1793 = sbr.rel (%p1791) target = $region48
      $region47: #{_lambda_.12} parent=31 // pred_region
        _
      $region48: #{_lambda_.12} parent=31 // pred_fallthru
        _
      // Predicated region
      $region49: #{_lambda_.12} parent=31 // pred_check
        %p1794 = pneg %p124
      $region50: #{_lambda_.12} parent=31 // pred_check_branch
        %1796 = sbr.rel (%p1794) target = $region52
      $region51: #{_lambda_.12} parent=31 // pred_region
        _
      $region52: #{_lambda_.12} parent=31 // pred_fallthru
        _
      // Predicated region
      $region53: #{_lambda_.12} parent=31 // pred_check
        %p1797 = pneg %p145
      $region54: #{_lambda_.12} parent=31 // pred_check_branch
        %1799 = sbr.rel (%p1797) target = $region56
      $region55: #{_lambda_.12} parent=31 // pred_region
        _
      $region56: #{_lambda_.12} parent=31 // pred_fallthru
        _
    $region32: #{_lambda_.12} parent=5 // pred_fallthru
      _
    %p1800 = scmp.le.s32.totalorder 2, %s12
    // Predicated region
    $region57: #{_lambda_.12} parent=5 // pred_check
      %p1801 = pneg %p1800
    $region58: #{_lambda_.12} parent=5 // pred_check_branch
      %1803 = sbr.rel (%p1801) target = $region60
    $region59: #{_lambda_.12} parent=5 // pred_region
      %s1804 = ssub.s32 %s12, 2
      // Predicated region
      $region61: #{_lambda_.12} parent=59 // pred_check
        %p1805 = pneg %p109
      $region62: #{_lambda_.12} parent=59 // pred_check_branch
        %1807 = sbr.rel (%p1805) target = $region64
      $region63: #{_lambda_.12} parent=59 // pred_region
        %p1808 = scmp.lt.s32.totalorder %s18, 1
        %s1809 = scalar_select %p1808, %s18, 1
        %s1810 = smul.addr %s1809, 3
        %s1811 = smul.addr %s1810, 4
        %s1812 = scalar_lea.vmem %s3, %s1811
      $region64: #{_lambda_.12} parent=59 // pred_fallthru
        _
    $region60: #{_lambda_.12} parent=5 // pred_fallthru
      _
  $region6: #{_lambda_.12} parent=0 // loop_footer
    %s16 = sadd.s32 1, %s12
  $region7: #{_lambda_.12} parent=0 // loop_footer_branch
    %11 = sbr.rel target = $region3
  $region8: #{_lambda_.12} parent=0 // loop_exit
    _

</llo_original>
